<compile_context>
chip_gen: v7x
topology: tpu7x:2x2x1
jax: 0.10.0
libtpu: 0.0.40
codegen_flags: <defaults>
</compile_context>

<pallas_src>
import jax
import jax.numpy as jnp
from jax import lax
from jax.experimental import pallas as pl
from jax.experimental.pallas import tpu as pltpu


def _round_up(x, m):
    return ((x + m - 1) // m) * m


# ----------------------------------------------------------------------------
# Kernel
# ----------------------------------------------------------------------------
def _make_residual_group_kernel(n_res, H, W, C, Cr):
    n_conv = 2 * n_res + 1          # 2 convs per RCAB + trailing ConvBlock
    HW = H * W
    KC = 9 * C                      # tap-stacked contraction length
    FRONT = _round_up(W + 1, 128)   # zero guard ahead of the flat image (aligned)
    BACK = _round_up(W + 1, 128)    # zero guard behind the flat image
    P = FRONT + HW + BACK
    TAPS = [(dy, dx) for dy in range(3) for dx in range(3)]

    def kernel(x_ref, w3_ref, b3_ref, w1_ref, b1_ref, w2_ref, b2_ref,
               out_ref, pad_ref, col_ref, act_ref):
        # x_ref / out_ref : (C, HW)          one image (N squeezed), lane-dense
        # w3_ref          : (n_conv, C, 9C)  bf16  transposed packed 3x3 weights
        # b3_ref          : (n_conv, C, 1)   f32
        # w1_ref / b1_ref : (n_res, C, Cr) / (n_res, 1, Cr)  f32  CA squeeze
        # w2_ref / b2_ref : (n_res, C, Cr) / (n_res, C, 1)   f32  CA excite (W2^T)
        # pad_ref         : (C, P)    bf16   flat zero-guarded activation copy
        # col_ref         : (9C, HW)  bf16   tap-stacked im2col operand
        # act_ref         : (C, HW)   f32    running residual-stream state

        # x-boundary validity masks (computed once; y-overflow taps read the
        # zero guard bands of pad_ref so they need no mask).
        pos = lax.broadcasted_iota(jnp.int32, (1, HW), 1)
        xm = pos % W
        mask_l = xm >= 1            # source pixel x-1 exists
        mask_r = xm <= W - 2        # source pixel x+1 exists

        # Zero the guard bands once; only the interior is rewritten per conv.
        pad_ref[...] = jnp.zeros(pad_ref.shape, pad_ref.dtype)

        def conv3x3(a, ci):
            """3x3 same-conv of the (C, HW) f32 activation `a`; ci = conv idx."""
            # One f32->bf16 cast per conv; aligned, full-lane interior store.
            pad_ref[:, FRONT:FRONT + HW] = a.astype(pad_ref.dtype)
            # Build the tap-stacked im2col operand: each tap is a full-lane
            # sublane-band store, feeding a single K=9*C, N=HW MXU matmul.
            for t, (dy, dx) in enumerate(TAPS):
                s = (dy - 1) * W + (dx - 1)
                band = pad_ref[:, FRONT + s:FRONT + s + HW]      # (C, HW) bf16
                if dx == 0:
                    band = jnp.where(mask_l, band, jnp.zeros_like(band))
                elif dx == 2:
                    band = jnp.where(mask_r, band, jnp.zeros_like(band))
                col_ref[t * C:(t + 1) * C, :] = band
            acc = jnp.dot(w3_ref[ci], col_ref[...],
                          preferred_element_type=jnp.float32)    # (C, HW) f32
            return acc + b3_ref[ci]                              # (C, 1) bias

        # Initialize the residual stream from the input block.
        act_ref[...] = x_ref[...]

        def rcab(r, carry):
            a = act_ref[...]                                     # (C, HW) f32
            t = conv3x3(a, 2 * r)
            t = jnp.maximum(t, 0.0)                              # ReLU
            t = conv3x3(t, 2 * r + 1)

            # CALayer on VPU/XLU (no tiny MXU matmuls):
            # global avg-pool -> 1x1 -> ReLU -> 1x1 -> sigmoid -> scale.
            y = jnp.mean(t, axis=1, keepdims=True)               # (C, 1)
            y1 = jnp.sum(w1_ref[r] * y, axis=0, keepdims=True) + b1_ref[r]
            y1 = jnp.maximum(y1, 0.0)                            # (1, Cr)
            y2 = jnp.sum(w2_ref[r] * y1, axis=1, keepdims=True) + b2_ref[r]
            y2 = 1.0 / (1.0 + jnp.exp(-y2))                      # exact sigmoid, (C,1)

            act_ref[...] = t * y2 + a                            # RCAB residual
            return carry

        lax.fori_loop(0, n_res, rcab, 0,
                      unroll=True if n_res <= 4 else 2)

        # Trailing ConvBlock (no activation / norm) + group residual.
        res = conv3x3(act_ref[...], n_conv - 1)
        out_ref[...] = (res + x_ref[...]).astype(out_ref.dtype)

    return kernel


# ----------------------------------------------------------------------------
# Wrapper (native NCHW — no layout transposes)
# ----------------------------------------------------------------------------
@jax.jit
def residual_group_forward(x_nchw, params):
    N, C, H, W = x_nchw.shape
    n_res, _, Cr = params["w1"].shape
    n_conv = 2 * n_res + 1
    HW, KC = H * W, 9 * C
    FRONT = _round_up(W + 1, 128)
    P = 2 * FRONT + HW

    # Pack 3x3 weights (n_conv, 3, 3, Cin, Cout) -> (n_conv, Cout, 9*Cin) bf16
    # so the conv GEMM is (Cout, 9C) @ (9C, HW) with HW on the result lanes.
    w3 = (jnp.transpose(params["w3"], (0, 4, 1, 2, 3))
          .reshape(n_conv, C, KC).astype(jnp.bfloat16))
    b3 = params["b3"].reshape(n_conv, C, 1)
    w1 = params["w1"]                                      # (n_res, C, Cr)
    b1 = params["b1"].reshape(n_res, 1, Cr)
    w2 = jnp.transpose(params["w2"], (0, 2, 1))            # (n_res, C, Cr) = W2^T
    b2 = params["b2"].reshape(n_res, C, 1)

    x_flat = x_nchw.reshape(N, C, HW)                      # free, row-major

    kernel = _make_residual_group_kernel(n_res, H, W, C, Cr)

    flops = N * (n_conv * 2 * C * KC * HW + n_res * 2 * (C * Cr + Cr * C))
    transcendentals = N * n_res * C
    bytes_accessed = (2 * x_nchw.size * 4 + w3.size * 2
                      + (b3.size + w1.size + b1.size + w2.size + b2.size) * 4)

    out_flat = pl.pallas_call(
        kernel,
        grid=(N,),
        out_shape=jax.ShapeDtypeStruct((N, C, HW), x_nchw.dtype),
        in_specs=[
            pl.BlockSpec((None, C, HW), lambda n: (n, 0, 0)),    # x (1 image/step)
            pl.BlockSpec((n_conv, C, KC), lambda n: (0, 0, 0)),  # packed 3x3 weights
            pl.BlockSpec((n_conv, C, 1), lambda n: (0, 0, 0)),   # conv biases
            pl.BlockSpec((n_res, C, Cr), lambda n: (0, 0, 0)),   # CA squeeze weight
            pl.BlockSpec((n_res, 1, Cr), lambda n: (0, 0, 0)),   # CA squeeze bias
            pl.BlockSpec((n_res, C, Cr), lambda n: (0, 0, 0)),   # CA excite weight^T
            pl.BlockSpec((n_res, C, 1), lambda n: (0, 0, 0)),    # CA excite bias
        ],
        out_specs=pl.BlockSpec((None, C, HW), lambda n: (n, 0, 0)),
        scratch_shapes=[
            pltpu.VMEM((C, P), jnp.bfloat16),        # flat zero-guarded activation
            pltpu.VMEM((KC, HW), jnp.bfloat16),      # tap-stacked im2col operand
            pltpu.VMEM((C, HW), jnp.float32),        # residual-stream state
        ],
        compiler_params=pltpu.CompilerParams(
            dimension_semantics=("parallel",),       # batch -> 2 TCs on v7x
            vmem_limit_bytes=8 * 1024 * 1024,
        ),
        cost_estimate=pl.CostEstimate(
            flops=flops,
            transcendentals=transcendentals,
            bytes_accessed=bytes_accessed,
        ),
    )(x_flat, w3, b3, w1, b1, w2, b2)

    return out_flat.reshape(N, C, H, W)


# ----------------------------------------------------------------------------
# Deterministic synthetic parameters (shapes implied by the module __init__)
# ----------------------------------------------------------------------------
def init_params(key, n_feat, reduction, n_resblocks):
    n_conv = 2 * n_resblocks + 1
    cr = n_feat // reduction
    ks = jax.random.split(key, 6)
    return {
        # 3x3 convs, HWIO per conv: (n_conv, 3, 3, Cin, Cout)
        "w3": 0.05 * jax.random.normal(ks[0], (n_conv, 3, 3, n_feat, n_feat), jnp.float32),
        "b3": 0.01 * jax.random.normal(ks[1], (n_conv, n_feat), jnp.float32),
        # CALayer 1x1 convs per RCAB, as matrices
        "w1": 0.1 * jax.random.normal(ks[2], (n_resblocks, n_feat, cr), jnp.float32),
        "b1": 0.01 * jax.random.normal(ks[3], (n_resblocks, cr), jnp.float32),
        "w2": 0.1 * jax.random.normal(ks[4], (n_resblocks, cr, n_feat), jnp.float32),
        "b2": 0.01 * jax.random.normal(ks[5], (n_resblocks, n_feat), jnp.float32),
    }


# ----------------------------------------------------------------------------
# Pure-JAX reference (f32, for correctness check)
# ----------------------------------------------------------------------------
def reference_forward(x_nchw, params):
    x = jnp.transpose(x_nchw, (0, 2, 3, 1))
    n_res = params["w1"].shape[0]

    def conv3x3(v, w, b):
        return lax.conv_general_dilated(
            v, w, window_strides=(1, 1), padding=((1, 1), (1, 1)),
            dimension_numbers=("NHWC", "HWIO", "NHWC")) + b

    cur = x
    for r in range(n_res):
        t = conv3x3(cur, params["w3"][2 * r], params["b3"][2 * r])
        t = jnp.maximum(t, 0.0)
        t = conv3x3(t, params["w3"][2 * r + 1], params["b3"][2 * r + 1])
        y = jnp.mean(t, axis=(1, 2))
        y1 = jnp.maximum(y @ params["w1"][r] + params["b1"][r], 0.0)
        y2 = jax.nn.sigmoid(y1 @ params["w2"][r] + params["b2"][r])
        cur = t * y2[:, None, None, :] + cur
    res = conv3x3(cur, params["w3"][-1], params["b3"][-1])
    out = res + x
    return jnp.transpose(out, (0, 3, 1, 2))


# ----------------------------------------------------------------------------
if __name__ == "__main__":
    # ResidualGroup(n_feat=32, kernel_size=3, reduction=16, act=ReLU,
    #               res_scale=1, n_resblocks=2)
    n_feat, reduction, n_resblocks = 32, 16, 2
    N, H, W = 2, 16, 16

    key = jax.random.PRNGKey(0)
    k_x, k_p = jax.random.split(key)
    x = jax.random.normal(k_x, (N, n_feat, H, W), jnp.float32)  # NCHW
    params = init_params(k_p, n_feat, reduction, n_resblocks)

    out = jax.block_until_ready(residual_group_forward(x, params))
    ref = reference_forward(x, params)

    assert out.shape == x.shape and out.dtype == x.dtype
    # Conv matmuls use bf16 MXU operands with f32 accumulation, so compare at a
    # bf16-appropriate tolerance against the pure-f32 reference.
    # TODO(synk): add an interpret-mode / f32-operand structural test path.
    assert jnp.allclose(out, ref, atol=5e-2, rtol=5e-2), (
        float(jnp.max(jnp.abs(out - ref))))

    print("KERNEL_OK")
</pallas_src>

<mosaic_0001>
module attributes {stable_mosaic.version = 11 : i64} {
  func.func @kernel(%arg0: i32, %arg1: memref<1x32x256xf32, #tpu.memory_space<vmem>>, %arg2: memref<5x32x288xbf16, #tpu.memory_space<vmem>>, %arg3: memref<5x32x1xf32, #tpu.memory_space<vmem>>, %arg4: memref<2x32x2xf32, #tpu.memory_space<vmem>>, %arg5: memref<2x1x2xf32, #tpu.memory_space<vmem>>, %arg6: memref<2x32x2xf32, #tpu.memory_space<vmem>>, %arg7: memref<2x32x1xf32, #tpu.memory_space<vmem>>, %arg8: memref<1x32x256xf32, #tpu.memory_space<vmem>>, %arg9: memref<32x512xbf16, #tpu.memory_space<vmem>>, %arg10: memref<288x256xbf16, #tpu.memory_space<vmem>>, %arg11: memref<32x256xf32, #tpu.memory_space<vmem>>) attributes {dimension_semantics = [#tpu.dimension_semantics<parallel>], iteration_bounds = array<i64: 2>, scalar_prefetch = 0 : i64, scratch_operands = 3 : i64, tpu.core_type = #tpu.core_type<tc>, window_params = [{transform_indices = @transform_0, window_bounds = array<i64: 1, 32, 256>}, {pipeline_mode = #tpu.pipeline_mode<synchronous>, transform_indices = @transform_1, window_bounds = array<i64: 5, 32, 288>}, {pipeline_mode = #tpu.pipeline_mode<synchronous>, transform_indices = @transform_2, window_bounds = array<i64: 5, 32, 1>}, {pipeline_mode = #tpu.pipeline_mode<synchronous>, transform_indices = @transform_3, window_bounds = array<i64: 2, 32, 2>}, {pipeline_mode = #tpu.pipeline_mode<synchronous>, transform_indices = @transform_4, window_bounds = array<i64: 2, 1, 2>}, {pipeline_mode = #tpu.pipeline_mode<synchronous>, transform_indices = @transform_5, window_bounds = array<i64: 2, 32, 2>}, {pipeline_mode = #tpu.pipeline_mode<synchronous>, transform_indices = @transform_6, window_bounds = array<i64: 2, 32, 1>}, {transform_indices = @transform_7, window_bounds = array<i64: 1, 32, 256>}]} {
    %0 = tpu.iota {dimensions = array<i32: 1>} : vector<1x256xi32>
    %c16_i32 = arith.constant 16 : i32
    %c0_i32 = arith.constant 0 : i32
    %1 = arith.cmpi eq, %c16_i32, %c0_i32 : i32
    %c1_i32 = arith.constant 1 : i32
    %2 = arith.select %1, %c1_i32, %c16_i32 : i32
    %3 = vector.broadcast %2 : i32 to vector<1x256xi32>
    %4 = arith.remsi %0, %3 : vector<1x256xi32>
    %c0_i32_0 = arith.constant 0 : i32
    %5 = vector.broadcast %c0_i32_0 : i32 to vector<1x256xi32>
    %6 = arith.cmpi ne, %4, %5 : vector<1x256xi32>
    %c0_i32_1 = arith.constant 0 : i32
    %7 = vector.broadcast %c0_i32_1 : i32 to vector<1x256xi32>
    %8 = arith.cmpi slt, %4, %7 : vector<1x256xi32>
    %c0_i32_2 = arith.constant 0 : i32
    %9 = arith.cmpi slt, %2, %c0_i32_2 : i32
    %10 = vector.broadcast %9 : i1 to vector<1x256xi1>
    %11 = vector.broadcast %10 : vector<1x256xi1> to vector<1x256xi1>
    %12 = arith.xori %8, %11 : vector<1x256xi1>
    %13 = arith.andi %12, %6 : vector<1x256xi1>
    %14 = vector.broadcast %2 : i32 to vector<1x256xi32>
    %15 = arith.addi %4, %14 : vector<1x256xi32>
    %16 = arith.select %13, %15, %4 : vector<1x256xi1>, vector<1x256xi32>
    %c1_i32_3 = arith.constant 1 : i32
    %17 = vector.broadcast %c1_i32_3 : i32 to vector<1x256xi32>
    %18 = arith.cmpi sge, %16, %17 : vector<1x256xi32>
    %c14_i32 = arith.constant 14 : i32
    %19 = vector.broadcast %c14_i32 : i32 to vector<1x256xi32>
    %20 = arith.cmpi sle, %16, %19 : vector<1x256xi32>
    %cst = arith.constant 0.000000e+00 : bf16
    %21 = vector.broadcast %cst : bf16 to vector<32x512xbf16>
    %c0 = arith.constant 0 : index
    %c0_4 = arith.constant 0 : index
    %22 = vector.load %arg9[%c0, %c0_4] : memref<32x512xbf16, #tpu.memory_space<vmem>>, vector<32x512xbf16>
    tpu.vector_store %arg9[%c0, %c0_4], %21 {strides = array<i32>} : memref<32x512xbf16, #tpu.memory_space<vmem>>, vector<32x512xbf16>,
    %c0_5 = arith.constant 0 : index
    %c0_6 = arith.constant 0 : index
    %c0_7 = arith.constant 0 : index
    %23 = vector.load %arg1[%c0_5, %c0_6, %c0_7] : memref<1x32x256xf32, #tpu.memory_space<vmem>>, vector<1x32x256xf32>
    %24 = vector.shape_cast %23 : vector<1x32x256xf32> to vector<32x256xf32>
    %c0_8 = arith.constant 0 : index
    %c0_9 = arith.constant 0 : index
    %25 = vector.load %arg11[%c0_8, %c0_9] : memref<32x256xf32, #tpu.memory_space<vmem>>, vector<32x256xf32>
    tpu.vector_store %arg11[%c0_8, %c0_9], %24 {strides = array<i32>} : memref<32x256xf32, #tpu.memory_space<vmem>>, vector<32x256xf32>,
    %c0_i32_10 = arith.constant 0 : i32
    %c0_11 = arith.constant 0 : index
    %c0_12 = arith.constant 0 : index
    %26 = vector.load %arg11[%c0_11, %c0_12] : memref<32x256xf32, #tpu.memory_space<vmem>>, vector<32x256xf32>
    %c2_i32 = arith.constant 2 : i32
    %27 = arith.muli %c2_i32, %c0_i32_10 : i32
    %28 = arith.truncf %26 : vector<32x256xf32> to vector<32x256xbf16>
    %c0_13 = arith.constant 0 : index
    %c128 = arith.constant 128 : index
    %29 = vector.load %arg9[%c0_13, %c128] : memref<32x512xbf16, #tpu.memory_space<vmem>>, vector<32x256xbf16>
    tpu.vector_store %arg9[%c0_13, %c128], %28 {strides = array<i32>} : memref<32x512xbf16, #tpu.memory_space<vmem>>, vector<32x256xbf16>,
    %c0_14 = arith.constant 0 : index
    %c111 = arith.constant 111 : index
    %30 = vector.load %arg9[%c0_14, %c111] : memref<32x512xbf16, #tpu.memory_space<vmem>>, vector<32x256xbf16>
    %cst_15 = arith.constant 0.000000e+00 : bf16
    %31 = vector.broadcast %cst_15 : bf16 to vector<32x256xbf16>
    %32 = vector.shape_cast %18 : vector<1x256xi1> to vector<1x256xi1>
    %33 = vector.broadcast %32 : vector<1x256xi1> to vector<32x256xi1>
    %34 = arith.select %33, %30, %31 : vector<32x256xi1>, vector<32x256xbf16>
    %c0_16 = arith.constant 0 : index
    %c0_17 = arith.constant 0 : index
    %35 = vector.load %arg10[%c0_16, %c0_17] : memref<288x256xbf16, #tpu.memory_space<vmem>>, vector<32x256xbf16>
    tpu.vector_store %arg10[%c0_16, %c0_17], %34 {strides = array<i32>} : memref<288x256xbf16, #tpu.memory_space<vmem>>, vector<32x256xbf16>,
    %c0_18 = arith.constant 0 : index
    %c112 = arith.constant 112 : index
    %36 = vector.load %arg9[%c0_18, %c112] : memref<32x512xbf16, #tpu.memory_space<vmem>>, vector<32x256xbf16>
    %c32 = arith.constant 32 : index
    %c0_19 = arith.constant 0 : index
    %37 = vector.load %arg10[%c32, %c0_19] : memref<288x256xbf16, #tpu.memory_space<vmem>>, vector<32x256xbf16>
    tpu.vector_store %arg10[%c32, %c0_19], %36 {strides = array<i32>} : memref<288x256xbf16, #tpu.memory_space<vmem>>, vector<32x256xbf16>,
    %c0_20 = arith.constant 0 : index
    %c113 = arith.constant 113 : index
    %38 = vector.load %arg9[%c0_20, %c113] : memref<32x512xbf16, #tpu.memory_space<vmem>>, vector<32x256xbf16>
    %cst_21 = arith.constant 0.000000e+00 : bf16
    %39 = vector.broadcast %cst_21 : bf16 to vector<32x256xbf16>
    %40 = vector.shape_cast %20 : vector<1x256xi1> to vector<1x256xi1>
    %41 = vector.broadcast %40 : vector<1x256xi1> to vector<32x256xi1>
    %42 = arith.select %41, %38, %39 : vector<32x256xi1>, vector<32x256xbf16>
    %c64 = arith.constant 64 : index
    %c0_22 = arith.constant 0 : index
    %43 = vector.load %arg10[%c64, %c0_22] : memref<288x256xbf16, #tpu.memory_space<vmem>>, vector<32x256xbf16>
    tpu.vector_store %arg10[%c64, %c0_22], %42 {strides = array<i32>} : memref<288x256xbf16, #tpu.memory_space<vmem>>, vector<32x256xbf16>,
    %c0_23 = arith.constant 0 : index
    %c127 = arith.constant 127 : index
    %44 = vector.load %arg9[%c0_23, %c127] : memref<32x512xbf16, #tpu.memory_space<vmem>>, vector<32x256xbf16>
    %cst_24 = arith.constant 0.000000e+00 : bf16
    %45 = vector.broadcast %cst_24 : bf16 to vector<32x256xbf16>
    %46 = vector.shape_cast %18 : vector<1x256xi1> to vector<1x256xi1>
    %47 = vector.broadcast %46 : vector<1x256xi1> to vector<32x256xi1>
    %48 = arith.select %47, %44, %45 : vector<32x256xi1>, vector<32x256xbf16>
    %c96 = arith.constant 96 : index
    %c0_25 = arith.constant 0 : index
    %49 = vector.load %arg10[%c96, %c0_25] : memref<288x256xbf16, #tpu.memory_space<vmem>>, vector<32x256xbf16>
    tpu.vector_store %arg10[%c96, %c0_25], %48 {strides = array<i32>} : memref<288x256xbf16, #tpu.memory_space<vmem>>, vector<32x256xbf16>,
    %c0_26 = arith.constant 0 : index
    %c128_27 = arith.constant 128 : index
    %50 = vector.load %arg9[%c0_26, %c128_27] : memref<32x512xbf16, #tpu.memory_space<vmem>>, vector<32x256xbf16>
    %c128_28 = arith.constant 128 : index
    %c0_29 = arith.constant 0 : index
    %51 = vector.load %arg10[%c128_28, %c0_29] : memref<288x256xbf16, #tpu.memory_space<vmem>>, vector<32x256xbf16>
    tpu.vector_store %arg10[%c128_28, %c0_29], %50 {strides = array<i32>} : memref<288x256xbf16, #tpu.memory_space<vmem>>, vector<32x256xbf16>,
    %c0_30 = arith.constant 0 : index
    %c129 = arith.constant 129 : index
    %52 = vector.load %arg9[%c0_30, %c129] : memref<32x512xbf16, #tpu.memory_space<vmem>>, vector<32x256xbf16>
    %cst_31 = arith.constant 0.000000e+00 : bf16
    %53 = vector.broadcast %cst_31 : bf16 to vector<32x256xbf16>
    %54 = vector.shape_cast %20 : vector<1x256xi1> to vector<1x256xi1>
    %55 = vector.broadcast %54 : vector<1x256xi1> to vector<32x256xi1>
    %56 = arith.select %55, %52, %53 : vector<32x256xi1>, vector<32x256xbf16>
    %c160 = arith.constant 160 : index
    %c0_32 = arith.constant 0 : index
    %57 = vector.load %arg10[%c160, %c0_32] : memref<288x256xbf16, #tpu.memory_space<vmem>>, vector<32x256xbf16>
    tpu.vector_store %arg10[%c160, %c0_32], %56 {strides = array<i32>} : memref<288x256xbf16, #tpu.memory_space<vmem>>, vector<32x256xbf16>,
    %c0_33 = arith.constant 0 : index
    %c143 = arith.constant 143 : index
    %58 = vector.load %arg9[%c0_33, %c143] : memref<32x512xbf16, #tpu.memory_space<vmem>>, vector<32x256xbf16>
    %cst_34 = arith.constant 0.000000e+00 : bf16
    %59 = vector.broadcast %cst_34 : bf16 to vector<32x256xbf16>
    %60 = vector.shape_cast %18 : vector<1x256xi1> to vector<1x256xi1>
    %61 = vector.broadcast %60 : vector<1x256xi1> to vector<32x256xi1>
    %62 = arith.select %61, %58, %59 : vector<32x256xi1>, vector<32x256xbf16>
    %c192 = arith.constant 192 : index
    %c0_35 = arith.constant 0 : index
    %63 = vector.load %arg10[%c192, %c0_35] : memref<288x256xbf16, #tpu.memory_space<vmem>>, vector<32x256xbf16>
    tpu.vector_store %arg10[%c192, %c0_35], %62 {strides = array<i32>} : memref<288x256xbf16, #tpu.memory_space<vmem>>, vector<32x256xbf16>,
    %c0_36 = arith.constant 0 : index
    %c144 = arith.constant 144 : index
    %64 = vector.load %arg9[%c0_36, %c144] : memref<32x512xbf16, #tpu.memory_space<vmem>>, vector<32x256xbf16>
    %c224 = arith.constant 224 : index
    %c0_37 = arith.constant 0 : index
    %65 = vector.load %arg10[%c224, %c0_37] : memref<288x256xbf16, #tpu.memory_space<vmem>>, vector<32x256xbf16>
    tpu.vector_store %arg10[%c224, %c0_37], %64 {strides = array<i32>} : memref<288x256xbf16, #tpu.memory_space<vmem>>, vector<32x256xbf16>,
    %c0_38 = arith.constant 0 : index
    %c145 = arith.constant 145 : index
    %66 = vector.load %arg9[%c0_38, %c145] : memref<32x512xbf16, #tpu.memory_space<vmem>>, vector<32x256xbf16>
    %cst_39 = arith.constant 0.000000e+00 : bf16
    %67 = vector.broadcast %cst_39 : bf16 to vector<32x256xbf16>
    %68 = vector.shape_cast %20 : vector<1x256xi1> to vector<1x256xi1>
    %69 = vector.broadcast %68 : vector<1x256xi1> to vector<32x256xi1>
    %70 = arith.select %69, %66, %67 : vector<32x256xi1>, vector<32x256xbf16>
    %c256 = arith.constant 256 : index
    %c0_40 = arith.constant 0 : index
    %71 = vector.load %arg10[%c256, %c0_40] : memref<288x256xbf16, #tpu.memory_space<vmem>>, vector<32x256xbf16>
    tpu.vector_store %arg10[%c256, %c0_40], %70 {strides = array<i32>} : memref<288x256xbf16, #tpu.memory_space<vmem>>, vector<32x256xbf16>,
    %72 = arith.index_cast %27 : i32 to index
    %c0_41 = arith.constant 0 : index
    %c0_42 = arith.constant 0 : index
    %73 = vector.load %arg2[%72, %c0_41, %c0_42] : memref<5x32x288xbf16, #tpu.memory_space<vmem>>, vector<1x32x288xbf16>
    %74 = vector.shape_cast %73 : vector<1x32x288xbf16> to vector<32x288xbf16>
    %c0_43 = arith.constant 0 : index
    %c0_44 = arith.constant 0 : index
    %75 = vector.load %arg10[%c0_43, %c0_44] : memref<288x256xbf16, #tpu.memory_space<vmem>>, vector<288x256xbf16>
    %cst_45 = arith.constant dense<0.000000e+00> : vector<32x256xf32>
    %76 = tpu.matmul %74, %75, %cst_45 {dimension_numbers = #tpu.dot_dimension_numbers<[1], [0], [0], [1], [0, 0, 1, 1], [], []>} : vector<32x288xbf16>, vector<288x256xbf16>, vector<32x256xf32> -> vector<32x256xf32>
    %77 = arith.index_cast %27 : i32 to index
    %c0_46 = arith.constant 0 : index
    %c0_47 = arith.constant 0 : index
    %78 = vector.load %arg3[%77, %c0_46, %c0_47] : memref<5x32x1xf32, #tpu.memory_space<vmem>>, vector<1x32x1xf32>
    %79 = vector.shape_cast %78 : vector<1x32x1xf32> to vector<32x1xf32>
    %80 = vector.broadcast %79 : vector<32x1xf32> to vector<32x256xf32>
    %81 = arith.addf %76, %80 : vector<32x256xf32>
    %cst_48 = arith.constant 0.000000e+00 : f32
    %82 = vector.broadcast %cst_48 : f32 to vector<32x256xf32>
    %83 = arith.maximumf %81, %82 : vector<32x256xf32>
    %c2_i32_49 = arith.constant 2 : i32
    %84 = arith.muli %c2_i32_49, %c0_i32_10 : i32
    %c1_i32_50 = arith.constant 1 : i32
    %85 = arith.addi %84, %c1_i32_50 : i32
    %86 = arith.truncf %83 : vector<32x256xf32> to vector<32x256xbf16>
    %c0_51 = arith.constant 0 : index
    %c128_52 = arith.constant 128 : index
    %87 = vector.load %arg9[%c0_51, %c128_52] : memref<32x512xbf16, #tpu.memory_space<vmem>>, vector<32x256xbf16>
    tpu.vector_store %arg9[%c0_51, %c128_52], %86 {strides = array<i32>} : memref<32x512xbf16, #tpu.memory_space<vmem>>, vector<32x256xbf16>,
    %c0_53 = arith.constant 0 : index
    %c111_54 = arith.constant 111 : index
    %88 = vector.load %arg9[%c0_53, %c111_54] : memref<32x512xbf16, #tpu.memory_space<vmem>>, vector<32x256xbf16>
    %cst_55 = arith.constant 0.000000e+00 : bf16
    %89 = vector.broadcast %cst_55 : bf16 to vector<32x256xbf16>
    %90 = vector.shape_cast %18 : vector<1x256xi1> to vector<1x256xi1>
    %91 = vector.broadcast %90 : vector<1x256xi1> to vector<32x256xi1>
    %92 = arith.select %91, %88, %89 : vector<32x256xi1>, vector<32x256xbf16>
    %c0_56 = arith.constant 0 : index
    %c0_57 = arith.constant 0 : index
    %93 = vector.load %arg10[%c0_56, %c0_57] : memref<288x256xbf16, #tpu.memory_space<vmem>>, vector<32x256xbf16>
    tpu.vector_store %arg10[%c0_56, %c0_57], %92 {strides = array<i32>} : memref<288x256xbf16, #tpu.memory_space<vmem>>, vector<32x256xbf16>,
    %c0_58 = arith.constant 0 : index
    %c112_59 = arith.constant 112 : index
    %94 = vector.load %arg9[%c0_58, %c112_59] : memref<32x512xbf16, #tpu.memory_space<vmem>>, vector<32x256xbf16>
    %c32_60 = arith.constant 32 : index
    %c0_61 = arith.constant 0 : index
    %95 = vector.load %arg10[%c32_60, %c0_61] : memref<288x256xbf16, #tpu.memory_space<vmem>>, vector<32x256xbf16>
    tpu.vector_store %arg10[%c32_60, %c0_61], %94 {strides = array<i32>} : memref<288x256xbf16, #tpu.memory_space<vmem>>, vector<32x256xbf16>,
    %c0_62 = arith.constant 0 : index
    %c113_63 = arith.constant 113 : index
    %96 = vector.load %arg9[%c0_62, %c113_63] : memref<32x512xbf16, #tpu.memory_space<vmem>>, vector<32x256xbf16>
    %cst_64 = arith.constant 0.000000e+00 : bf16
    %97 = vector.broadcast %cst_64 : bf16 to vector<32x256xbf16>
    %98 = vector.shape_cast %20 : vector<1x256xi1> to vector<1x256xi1>
    %99 = vector.broadcast %98 : vector<1x256xi1> to vector<32x256xi1>
    %100 = arith.select %99, %96, %97 : vector<32x256xi1>, vector<32x256xbf16>
    %c64_65 = arith.constant 64 : index
    %c0_66 = arith.constant 0 : index
    %101 = vector.load %arg10[%c64_65, %c0_66] : memref<288x256xbf16, #tpu.memory_space<vmem>>, vector<32x256xbf16>
    tpu.vector_store %arg10[%c64_65, %c0_66], %100 {strides = array<i32>} : memref<288x256xbf16, #tpu.memory_space<vmem>>, vector<32x256xbf16>,
    %c0_67 = arith.constant 0 : index
    %c127_68 = arith.constant 127 : index
    %102 = vector.load %arg9[%c0_67, %c127_68] : memref<32x512xbf16, #tpu.memory_space<vmem>>, vector<32x256xbf16>
    %cst_69 = arith.constant 0.000000e+00 : bf16
    %103 = vector.broadcast %cst_69 : bf16 to vector<32x256xbf16>
    %104 = vector.shape_cast %18 : vector<1x256xi1> to vector<1x256xi1>
    %105 = vector.broadcast %104 : vector<1x256xi1> to vector<32x256xi1>
    %106 = arith.select %105, %102, %103 : vector<32x256xi1>, vector<32x256xbf16>
    %c96_70 = arith.constant 96 : index
    %c0_71 = arith.constant 0 : index
    %107 = vector.load %arg10[%c96_70, %c0_71] : memref<288x256xbf16, #tpu.memory_space<vmem>>, vector<32x256xbf16>
    tpu.vector_store %arg10[%c96_70, %c0_71], %106 {strides = array<i32>} : memref<288x256xbf16, #tpu.memory_space<vmem>>, vector<32x256xbf16>,
    %c0_72 = arith.constant 0 : index
    %c128_73 = arith.constant 128 : index
    %108 = vector.load %arg9[%c0_72, %c128_73] : memref<32x512xbf16, #tpu.memory_space<vmem>>, vector<32x256xbf16>
    %c128_74 = arith.constant 128 : index
    %c0_75 = arith.constant 0 : index
    %109 = vector.load %arg10[%c128_74, %c0_75] : memref<288x256xbf16, #tpu.memory_space<vmem>>, vector<32x256xbf16>
    tpu.vector_store %arg10[%c128_74, %c0_75], %108 {strides = array<i32>} : memref<288x256xbf16, #tpu.memory_space<vmem>>, vector<32x256xbf16>,
    %c0_76 = arith.constant 0 : index
    %c129_77 = arith.constant 129 : index
    %110 = vector.load %arg9[%c0_76, %c129_77] : memref<32x512xbf16, #tpu.memory_space<vmem>>, vector<32x256xbf16>
    %cst_78 = arith.constant 0.000000e+00 : bf16
    %111 = vector.broadcast %cst_78 : bf16 to vector<32x256xbf16>
    %112 = vector.shape_cast %20 : vector<1x256xi1> to vector<1x256xi1>
    %113 = vector.broadcast %112 : vector<1x256xi1> to vector<32x256xi1>
    %114 = arith.select %113, %110, %111 : vector<32x256xi1>, vector<32x256xbf16>
    %c160_79 = arith.constant 160 : index
    %c0_80 = arith.constant 0 : index
    %115 = vector.load %arg10[%c160_79, %c0_80] : memref<288x256xbf16, #tpu.memory_space<vmem>>, vector<32x256xbf16>
    tpu.vector_store %arg10[%c160_79, %c0_80], %114 {strides = array<i32>} : memref<288x256xbf16, #tpu.memory_space<vmem>>, vector<32x256xbf16>,
    %c0_81 = arith.constant 0 : index
    %c143_82 = arith.constant 143 : index
    %116 = vector.load %arg9[%c0_81, %c143_82] : memref<32x512xbf16, #tpu.memory_space<vmem>>, vector<32x256xbf16>
    %cst_83 = arith.constant 0.000000e+00 : bf16
    %117 = vector.broadcast %cst_83 : bf16 to vector<32x256xbf16>
    %118 = vector.shape_cast %18 : vector<1x256xi1> to vector<1x256xi1>
    %119 = vector.broadcast %118 : vector<1x256xi1> to vector<32x256xi1>
    %120 = arith.select %119, %116, %117 : vector<32x256xi1>, vector<32x256xbf16>
    %c192_84 = arith.constant 192 : index
    %c0_85 = arith.constant 0 : index
    %121 = vector.load %arg10[%c192_84, %c0_85] : memref<288x256xbf16, #tpu.memory_space<vmem>>, vector<32x256xbf16>
    tpu.vector_store %arg10[%c192_84, %c0_85], %120 {strides = array<i32>} : memref<288x256xbf16, #tpu.memory_space<vmem>>, vector<32x256xbf16>,
    %c0_86 = arith.constant 0 : index
    %c144_87 = arith.constant 144 : index
    %122 = vector.load %arg9[%c0_86, %c144_87] : memref<32x512xbf16, #tpu.memory_space<vmem>>, vector<32x256xbf16>
    %c224_88 = arith.constant 224 : index
    %c0_89 = arith.constant 0 : index
    %123 = vector.load %arg10[%c224_88, %c0_89] : memref<288x256xbf16, #tpu.memory_space<vmem>>, vector<32x256xbf16>
    tpu.vector_store %arg10[%c224_88, %c0_89], %122 {strides = array<i32>} : memref<288x256xbf16, #tpu.memory_space<vmem>>, vector<32x256xbf16>,
    %c0_90 = arith.constant 0 : index
    %c145_91 = arith.constant 145 : index
    %124 = vector.load %arg9[%c0_90, %c145_91] : memref<32x512xbf16, #tpu.memory_space<vmem>>, vector<32x256xbf16>
    %cst_92 = arith.constant 0.000000e+00 : bf16
    %125 = vector.broadcast %cst_92 : bf16 to vector<32x256xbf16>
    %126 = vector.shape_cast %20 : vector<1x256xi1> to vector<1x256xi1>
    %127 = vector.broadcast %126 : vector<1x256xi1> to vector<32x256xi1>
    %128 = arith.select %127, %124, %125 : vector<32x256xi1>, vector<32x256xbf16>
    %c256_93 = arith.constant 256 : index
    %c0_94 = arith.constant 0 : index
    %129 = vector.load %arg10[%c256_93, %c0_94] : memref<288x256xbf16, #tpu.memory_space<vmem>>, vector<32x256xbf16>
    tpu.vector_store %arg10[%c256_93, %c0_94], %128 {strides = array<i32>} : memref<288x256xbf16, #tpu.memory_space<vmem>>, vector<32x256xbf16>,
    %130 = arith.index_cast %85 : i32 to index
    %c0_95 = arith.constant 0 : index
    %c0_96 = arith.constant 0 : index
    %131 = vector.load %arg2[%130, %c0_95, %c0_96] : memref<5x32x288xbf16, #tpu.memory_space<vmem>>, vector<1x32x288xbf16>
    %132 = vector.shape_cast %131 : vector<1x32x288xbf16> to vector<32x288xbf16>
    %c0_97 = arith.constant 0 : index
    %c0_98 = arith.constant 0 : index
    %133 = vector.load %arg10[%c0_97, %c0_98] : memref<288x256xbf16, #tpu.memory_space<vmem>>, vector<288x256xbf16>
    %cst_99 = arith.constant dense<0.000000e+00> : vector<32x256xf32>
    %134 = tpu.matmul %132, %133, %cst_99 {dimension_numbers = #tpu.dot_dimension_numbers<[1], [0], [0], [1], [0, 0, 1, 1], [], []>} : vector<32x288xbf16>, vector<288x256xbf16>, vector<32x256xf32> -> vector<32x256xf32>
    %135 = arith.index_cast %85 : i32 to index
    %c0_100 = arith.constant 0 : index
    %c0_101 = arith.constant 0 : index
    %136 = vector.load %arg3[%135, %c0_100, %c0_101] : memref<5x32x1xf32, #tpu.memory_space<vmem>>, vector<1x32x1xf32>
    %137 = vector.shape_cast %136 : vector<1x32x1xf32> to vector<32x1xf32>
    %138 = vector.broadcast %137 : vector<32x1xf32> to vector<32x256xf32>
    %139 = arith.addf %134, %138 : vector<32x256xf32>
    %cst_102 = arith.constant dense<0.000000e+00> : vector<32xf32>
    %140 = vector.multi_reduction <add>, %139, %cst_102 [1] : vector<32x256xf32> to vector<32xf32>
    %141 = vector.shape_cast %140 : vector<32xf32> to vector<32x1xf32>
    %cst_103 = arith.constant 2.560000e+02 : f32
    %142 = vector.broadcast %cst_103 : f32 to vector<32x1xf32>
    %143 = arith.divf %141, %142 : vector<32x1xf32>
    %144 = arith.index_cast %c0_i32_10 : i32 to index
    %c0_104 = arith.constant 0 : index
    %c0_105 = arith.constant 0 : index
    %145 = vector.load %arg4[%144, %c0_104, %c0_105] : memref<2x32x2xf32, #tpu.memory_space<vmem>>, vector<1x32x2xf32>
    %146 = vector.shape_cast %145 : vector<1x32x2xf32> to vector<32x2xf32>
    %147 = vector.broadcast %143 : vector<32x1xf32> to vector<32x2xf32>
    %148 = arith.mulf %146, %147 : vector<32x2xf32>
    %cst_106 = arith.constant dense<0.000000e+00> : vector<2xf32>
    %149 = vector.multi_reduction <add>, %148, %cst_106 [0] : vector<32x2xf32> to vector<2xf32>
    %150 = vector.shape_cast %149 : vector<2xf32> to vector<1x2xf32>
    %151 = arith.index_cast %c0_i32_10 : i32 to index
    %c0_107 = arith.constant 0 : index
    %c0_108 = arith.constant 0 : index
    %152 = vector.load %arg5[%151, %c0_107, %c0_108] : memref<2x1x2xf32, #tpu.memory_space<vmem>>, vector<1x1x2xf32>
    %153 = vector.shape_cast %152 : vector<1x1x2xf32> to vector<1x2xf32>
    %154 = arith.addf %150, %153 : vector<1x2xf32>
    %cst_109 = arith.constant 0.000000e+00 : f32
    %155 = vector.broadcast %cst_109 : f32 to vector<1x2xf32>
    %156 = arith.maximumf %154, %155 : vector<1x2xf32>
    %157 = arith.index_cast %c0_i32_10 : i32 to index
    %c0_110 = arith.constant 0 : index
    %c0_111 = arith.constant 0 : index
    %158 = vector.load %arg6[%157, %c0_110, %c0_111] : memref<2x32x2xf32, #tpu.memory_space<vmem>>, vector<1x32x2xf32>
    %159 = vector.shape_cast %158 : vector<1x32x2xf32> to vector<32x2xf32>
    %160 = vector.broadcast %156 : vector<1x2xf32> to vector<32x2xf32>
    %161 = arith.mulf %159, %160 : vector<32x2xf32>
    %cst_112 = arith.constant dense<0.000000e+00> : vector<32xf32>
    %162 = vector.multi_reduction <add>, %161, %cst_112 [1] : vector<32x2xf32> to vector<32xf32>
    %163 = vector.shape_cast %162 : vector<32xf32> to vector<32x1xf32>
    %164 = arith.index_cast %c0_i32_10 : i32 to index
    %c0_113 = arith.constant 0 : index
    %c0_114 = arith.constant 0 : index
    %165 = vector.load %arg7[%164, %c0_113, %c0_114] : memref<2x32x1xf32, #tpu.memory_space<vmem>>, vector<1x32x1xf32>
    %166 = vector.shape_cast %165 : vector<1x32x1xf32> to vector<32x1xf32>
    %167 = arith.addf %163, %166 : vector<32x1xf32>
    %cst_115 = arith.constant 0.000000e+00 : f32
    %168 = vector.broadcast %cst_115 : f32 to vector<32x1xf32>
    %169 = arith.subf %168, %167 : vector<32x1xf32>
    %170 = math.exp %169 : vector<32x1xf32>
    %cst_116 = arith.constant 1.000000e+00 : f32
    %171 = vector.broadcast %cst_116 : f32 to vector<32x1xf32>
    %172 = arith.addf %171, %170 : vector<32x1xf32>
    %cst_117 = arith.constant 1.000000e+00 : f32
    %173 = vector.broadcast %cst_117 : f32 to vector<32x1xf32>
    %174 = arith.divf %173, %172 : vector<32x1xf32>
    %175 = vector.broadcast %174 : vector<32x1xf32> to vector<32x256xf32>
    %176 = arith.mulf %139, %175 : vector<32x256xf32>
    %177 = arith.addf %176, %26 : vector<32x256xf32>
    %c0_118 = arith.constant 0 : index
    %c0_119 = arith.constant 0 : index
    %178 = vector.load %arg11[%c0_118, %c0_119] : memref<32x256xf32, #tpu.memory_space<vmem>>, vector<32x256xf32>
    tpu.vector_store %arg11[%c0_118, %c0_119], %177 {strides = array<i32>} : memref<32x256xf32, #tpu.memory_space<vmem>>, vector<32x256xf32>,
    %c1_i32_120 = arith.constant 1 : i32
    %c0_121 = arith.constant 0 : index
    %c0_122 = arith.constant 0 : index
    %179 = vector.load %arg11[%c0_121, %c0_122] : memref<32x256xf32, #tpu.memory_space<vmem>>, vector<32x256xf32>
    %c2_i32_123 = arith.constant 2 : i32
    %180 = arith.muli %c2_i32_123, %c1_i32_120 : i32
    %181 = arith.truncf %179 : vector<32x256xf32> to vector<32x256xbf16>
    %c0_124 = arith.constant 0 : index
    %c128_125 = arith.constant 128 : index
    %182 = vector.load %arg9[%c0_124, %c128_125] : memref<32x512xbf16, #tpu.memory_space<vmem>>, vector<32x256xbf16>
    tpu.vector_store %arg9[%c0_124, %c128_125], %181 {strides = array<i32>} : memref<32x512xbf16, #tpu.memory_space<vmem>>, vector<32x256xbf16>,
    %c0_126 = arith.constant 0 : index
    %c111_127 = arith.constant 111 : index
    %183 = vector.load %arg9[%c0_126, %c111_127] : memref<32x512xbf16, #tpu.memory_space<vmem>>, vector<32x256xbf16>
    %cst_128 = arith.constant 0.000000e+00 : bf16
    %184 = vector.broadcast %cst_128 : bf16 to vector<32x256xbf16>
    %185 = vector.shape_cast %18 : vector<1x256xi1> to vector<1x256xi1>
    %186 = vector.broadcast %185 : vector<1x256xi1> to vector<32x256xi1>
    %187 = arith.select %186, %183, %184 : vector<32x256xi1>, vector<32x256xbf16>
    %c0_129 = arith.constant 0 : index
    %c0_130 = arith.constant 0 : index
    %188 = vector.load %arg10[%c0_129, %c0_130] : memref<288x256xbf16, #tpu.memory_space<vmem>>, vector<32x256xbf16>
    tpu.vector_store %arg10[%c0_129, %c0_130], %187 {strides = array<i32>} : memref<288x256xbf16, #tpu.memory_space<vmem>>, vector<32x256xbf16>,
    %c0_131 = arith.constant 0 : index
    %c112_132 = arith.constant 112 : index
    %189 = vector.load %arg9[%c0_131, %c112_132] : memref<32x512xbf16, #tpu.memory_space<vmem>>, vector<32x256xbf16>
    %c32_133 = arith.constant 32 : index
    %c0_134 = arith.constant 0 : index
    %190 = vector.load %arg10[%c32_133, %c0_134] : memref<288x256xbf16, #tpu.memory_space<vmem>>, vector<32x256xbf16>
    tpu.vector_store %arg10[%c32_133, %c0_134], %189 {strides = array<i32>} : memref<288x256xbf16, #tpu.memory_space<vmem>>, vector<32x256xbf16>,
    %c0_135 = arith.constant 0 : index
    %c113_136 = arith.constant 113 : index
    %191 = vector.load %arg9[%c0_135, %c113_136] : memref<32x512xbf16, #tpu.memory_space<vmem>>, vector<32x256xbf16>
    %cst_137 = arith.constant 0.000000e+00 : bf16
    %192 = vector.broadcast %cst_137 : bf16 to vector<32x256xbf16>
    %193 = vector.shape_cast %20 : vector<1x256xi1> to vector<1x256xi1>
    %194 = vector.broadcast %193 : vector<1x256xi1> to vector<32x256xi1>
    %195 = arith.select %194, %191, %192 : vector<32x256xi1>, vector<32x256xbf16>
    %c64_138 = arith.constant 64 : index
    %c0_139 = arith.constant 0 : index
    %196 = vector.load %arg10[%c64_138, %c0_139] : memref<288x256xbf16, #tpu.memory_space<vmem>>, vector<32x256xbf16>
    tpu.vector_store %arg10[%c64_138, %c0_139], %195 {strides = array<i32>} : memref<288x256xbf16, #tpu.memory_space<vmem>>, vector<32x256xbf16>,
    %c0_140 = arith.constant 0 : index
    %c127_141 = arith.constant 127 : index
    %197 = vector.load %arg9[%c0_140, %c127_141] : memref<32x512xbf16, #tpu.memory_space<vmem>>, vector<32x256xbf16>
    %cst_142 = arith.constant 0.000000e+00 : bf16
    %198 = vector.broadcast %cst_142 : bf16 to vector<32x256xbf16>
    %199 = vector.shape_cast %18 : vector<1x256xi1> to vector<1x256xi1>
    %200 = vector.broadcast %199 : vector<1x256xi1> to vector<32x256xi1>
    %201 = arith.select %200, %197, %198 : vector<32x256xi1>, vector<32x256xbf16>
    %c96_143 = arith.constant 96 : index
    %c0_144 = arith.constant 0 : index
    %202 = vector.load %arg10[%c96_143, %c0_144] : memref<288x256xbf16, #tpu.memory_space<vmem>>, vector<32x256xbf16>
    tpu.vector_store %arg10[%c96_143, %c0_144], %201 {strides = array<i32>} : memref<288x256xbf16, #tpu.memory_space<vmem>>, vector<32x256xbf16>,
    %c0_145 = arith.constant 0 : index
    %c128_146 = arith.constant 128 : index
    %203 = vector.load %arg9[%c0_145, %c128_146] : memref<32x512xbf16, #tpu.memory_space<vmem>>, vector<32x256xbf16>
    %c128_147 = arith.constant 128 : index
    %c0_148 = arith.constant 0 : index
    %204 = vector.load %arg10[%c128_147, %c0_148] : memref<288x256xbf16, #tpu.memory_space<vmem>>, vector<32x256xbf16>
    tpu.vector_store %arg10[%c128_147, %c0_148], %203 {strides = array<i32>} : memref<288x256xbf16, #tpu.memory_space<vmem>>, vector<32x256xbf16>,
    %c0_149 = arith.constant 0 : index
    %c129_150 = arith.constant 129 : index
    %205 = vector.load %arg9[%c0_149, %c129_150] : memref<32x512xbf16, #tpu.memory_space<vmem>>, vector<32x256xbf16>
    %cst_151 = arith.constant 0.000000e+00 : bf16
    %206 = vector.broadcast %cst_151 : bf16 to vector<32x256xbf16>
    %207 = vector.shape_cast %20 : vector<1x256xi1> to vector<1x256xi1>
    %208 = vector.broadcast %207 : vector<1x256xi1> to vector<32x256xi1>
    %209 = arith.select %208, %205, %206 : vector<32x256xi1>, vector<32x256xbf16>
    %c160_152 = arith.constant 160 : index
    %c0_153 = arith.constant 0 : index
    %210 = vector.load %arg10[%c160_152, %c0_153] : memref<288x256xbf16, #tpu.memory_space<vmem>>, vector<32x256xbf16>
    tpu.vector_store %arg10[%c160_152, %c0_153], %209 {strides = array<i32>} : memref<288x256xbf16, #tpu.memory_space<vmem>>, vector<32x256xbf16>,
    %c0_154 = arith.constant 0 : index
    %c143_155 = arith.constant 143 : index
    %211 = vector.load %arg9[%c0_154, %c143_155] : memref<32x512xbf16, #tpu.memory_space<vmem>>, vector<32x256xbf16>
    %cst_156 = arith.constant 0.000000e+00 : bf16
    %212 = vector.broadcast %cst_156 : bf16 to vector<32x256xbf16>
    %213 = vector.shape_cast %18 : vector<1x256xi1> to vector<1x256xi1>
    %214 = vector.broadcast %213 : vector<1x256xi1> to vector<32x256xi1>
    %215 = arith.select %214, %211, %212 : vector<32x256xi1>, vector<32x256xbf16>
    %c192_157 = arith.constant 192 : index
    %c0_158 = arith.constant 0 : index
    %216 = vector.load %arg10[%c192_157, %c0_158] : memref<288x256xbf16, #tpu.memory_space<vmem>>, vector<32x256xbf16>
    tpu.vector_store %arg10[%c192_157, %c0_158], %215 {strides = array<i32>} : memref<288x256xbf16, #tpu.memory_space<vmem>>, vector<32x256xbf16>,
    %c0_159 = arith.constant 0 : index
    %c144_160 = arith.constant 144 : index
    %217 = vector.load %arg9[%c0_159, %c144_160] : memref<32x512xbf16, #tpu.memory_space<vmem>>, vector<32x256xbf16>
    %c224_161 = arith.constant 224 : index
    %c0_162 = arith.constant 0 : index
    %218 = vector.load %arg10[%c224_161, %c0_162] : memref<288x256xbf16, #tpu.memory_space<vmem>>, vector<32x256xbf16>
    tpu.vector_store %arg10[%c224_161, %c0_162], %217 {strides = array<i32>} : memref<288x256xbf16, #tpu.memory_space<vmem>>, vector<32x256xbf16>,
    %c0_163 = arith.constant 0 : index
    %c145_164 = arith.constant 145 : index
    %219 = vector.load %arg9[%c0_163, %c145_164] : memref<32x512xbf16, #tpu.memory_space<vmem>>, vector<32x256xbf16>
    %cst_165 = arith.constant 0.000000e+00 : bf16
    %220 = vector.broadcast %cst_165 : bf16 to vector<32x256xbf16>
    %221 = vector.shape_cast %20 : vector<1x256xi1> to vector<1x256xi1>
    %222 = vector.broadcast %221 : vector<1x256xi1> to vector<32x256xi1>
    %223 = arith.select %222, %219, %220 : vector<32x256xi1>, vector<32x256xbf16>
    %c256_166 = arith.constant 256 : index
    %c0_167 = arith.constant 0 : index
    %224 = vector.load %arg10[%c256_166, %c0_167] : memref<288x256xbf16, #tpu.memory_space<vmem>>, vector<32x256xbf16>
    tpu.vector_store %arg10[%c256_166, %c0_167], %223 {strides = array<i32>} : memref<288x256xbf16, #tpu.memory_space<vmem>>, vector<32x256xbf16>,
    %225 = arith.index_cast %180 : i32 to index
    %c0_168 = arith.constant 0 : index
    %c0_169 = arith.constant 0 : index
    %226 = vector.load %arg2[%225, %c0_168, %c0_169] : memref<5x32x288xbf16, #tpu.memory_space<vmem>>, vector<1x32x288xbf16>
    %227 = vector.shape_cast %226 : vector<1x32x288xbf16> to vector<32x288xbf16>
    %c0_170 = arith.constant 0 : index
    %c0_171 = arith.constant 0 : index
    %228 = vector.load %arg10[%c0_170, %c0_171] : memref<288x256xbf16, #tpu.memory_space<vmem>>, vector<288x256xbf16>
    %cst_172 = arith.constant dense<0.000000e+00> : vector<32x256xf32>
    %229 = tpu.matmul %227, %228, %cst_172 {dimension_numbers = #tpu.dot_dimension_numbers<[1], [0], [0], [1], [0, 0, 1, 1], [], []>} : vector<32x288xbf16>, vector<288x256xbf16>, vector<32x256xf32> -> vector<32x256xf32>
    %230 = arith.index_cast %180 : i32 to index
    %c0_173 = arith.constant 0 : index
    %c0_174 = arith.constant 0 : index
    %231 = vector.load %arg3[%230, %c0_173, %c0_174] : memref<5x32x1xf32, #tpu.memory_space<vmem>>, vector<1x32x1xf32>
    %232 = vector.shape_cast %231 : vector<1x32x1xf32> to vector<32x1xf32>
    %233 = vector.broadcast %232 : vector<32x1xf32> to vector<32x256xf32>
    %234 = arith.addf %229, %233 : vector<32x256xf32>
    %cst_175 = arith.constant 0.000000e+00 : f32
    %235 = vector.broadcast %cst_175 : f32 to vector<32x256xf32>
    %236 = arith.maximumf %234, %235 : vector<32x256xf32>
    %c2_i32_176 = arith.constant 2 : i32
    %237 = arith.muli %c2_i32_176, %c1_i32_120 : i32
    %c1_i32_177 = arith.constant 1 : i32
    %238 = arith.addi %237, %c1_i32_177 : i32
    %239 = arith.truncf %236 : vector<32x256xf32> to vector<32x256xbf16>
    %c0_178 = arith.constant 0 : index
    %c128_179 = arith.constant 128 : index
    %240 = vector.load %arg9[%c0_178, %c128_179] : memref<32x512xbf16, #tpu.memory_space<vmem>>, vector<32x256xbf16>
    tpu.vector_store %arg9[%c0_178, %c128_179], %239 {strides = array<i32>} : memref<32x512xbf16, #tpu.memory_space<vmem>>, vector<32x256xbf16>,
    %c0_180 = arith.constant 0 : index
    %c111_181 = arith.constant 111 : index
    %241 = vector.load %arg9[%c0_180, %c111_181] : memref<32x512xbf16, #tpu.memory_space<vmem>>, vector<32x256xbf16>
    %cst_182 = arith.constant 0.000000e+00 : bf16
    %242 = vector.broadcast %cst_182 : bf16 to vector<32x256xbf16>
    %243 = vector.shape_cast %18 : vector<1x256xi1> to vector<1x256xi1>
    %244 = vector.broadcast %243 : vector<1x256xi1> to vector<32x256xi1>
    %245 = arith.select %244, %241, %242 : vector<32x256xi1>, vector<32x256xbf16>
    %c0_183 = arith.constant 0 : index
    %c0_184 = arith.constant 0 : index
    %246 = vector.load %arg10[%c0_183, %c0_184] : memref<288x256xbf16, #tpu.memory_space<vmem>>, vector<32x256xbf16>
    tpu.vector_store %arg10[%c0_183, %c0_184], %245 {strides = array<i32>} : memref<288x256xbf16, #tpu.memory_space<vmem>>, vector<32x256xbf16>,
    %c0_185 = arith.constant 0 : index
    %c112_186 = arith.constant 112 : index
    %247 = vector.load %arg9[%c0_185, %c112_186] : memref<32x512xbf16, #tpu.memory_space<vmem>>, vector<32x256xbf16>
    %c32_187 = arith.constant 32 : index
    %c0_188 = arith.constant 0 : index
    %248 = vector.load %arg10[%c32_187, %c0_188] : memref<288x256xbf16, #tpu.memory_space<vmem>>, vector<32x256xbf16>
    tpu.vector_store %arg10[%c32_187, %c0_188], %247 {strides = array<i32>} : memref<288x256xbf16, #tpu.memory_space<vmem>>, vector<32x256xbf16>,
    %c0_189 = arith.constant 0 : index
    %c113_190 = arith.constant 113 : index
    %249 = vector.load %arg9[%c0_189, %c113_190] : memref<32x512xbf16, #tpu.memory_space<vmem>>, vector<32x256xbf16>
    %cst_191 = arith.constant 0.000000e+00 : bf16
    %250 = vector.broadcast %cst_191 : bf16 to vector<32x256xbf16>
    %251 = vector.shape_cast %20 : vector<1x256xi1> to vector<1x256xi1>
    %252 = vector.broadcast %251 : vector<1x256xi1> to vector<32x256xi1>
    %253 = arith.select %252, %249, %250 : vector<32x256xi1>, vector<32x256xbf16>
    %c64_192 = arith.constant 64 : index
    %c0_193 = arith.constant 0 : index
    %254 = vector.load %arg10[%c64_192, %c0_193] : memref<288x256xbf16, #tpu.memory_space<vmem>>, vector<32x256xbf16>
    tpu.vector_store %arg10[%c64_192, %c0_193], %253 {strides = array<i32>} : memref<288x256xbf16, #tpu.memory_space<vmem>>, vector<32x256xbf16>,
    %c0_194 = arith.constant 0 : index
    %c127_195 = arith.constant 127 : index
    %255 = vector.load %arg9[%c0_194, %c127_195] : memref<32x512xbf16, #tpu.memory_space<vmem>>, vector<32x256xbf16>
    %cst_196 = arith.constant 0.000000e+00 : bf16
    %256 = vector.broadcast %cst_196 : bf16 to vector<32x256xbf16>
    %257 = vector.shape_cast %18 : vector<1x256xi1> to vector<1x256xi1>
    %258 = vector.broadcast %257 : vector<1x256xi1> to vector<32x256xi1>
    %259 = arith.select %258, %255, %256 : vector<32x256xi1>, vector<32x256xbf16>
    %c96_197 = arith.constant 96 : index
    %c0_198 = arith.constant 0 : index
    %260 = vector.load %arg10[%c96_197, %c0_198] : memref<288x256xbf16, #tpu.memory_space<vmem>>, vector<32x256xbf16>
    tpu.vector_store %arg10[%c96_197, %c0_198], %259 {strides = array<i32>} : memref<288x256xbf16, #tpu.memory_space<vmem>>, vector<32x256xbf16>,
    %c0_199 = arith.constant 0 : index
    %c128_200 = arith.constant 128 : index
    %261 = vector.load %arg9[%c0_199, %c128_200] : memref<32x512xbf16, #tpu.memory_space<vmem>>, vector<32x256xbf16>
    %c128_201 = arith.constant 128 : index
    %c0_202 = arith.constant 0 : index
    %262 = vector.load %arg10[%c128_201, %c0_202] : memref<288x256xbf16, #tpu.memory_space<vmem>>, vector<32x256xbf16>
    tpu.vector_store %arg10[%c128_201, %c0_202], %261 {strides = array<i32>} : memref<288x256xbf16, #tpu.memory_space<vmem>>, vector<32x256xbf16>,
    %c0_203 = arith.constant 0 : index
    %c129_204 = arith.constant 129 : index
    %263 = vector.load %arg9[%c0_203, %c129_204] : memref<32x512xbf16, #tpu.memory_space<vmem>>, vector<32x256xbf16>
    %cst_205 = arith.constant 0.000000e+00 : bf16
    %264 = vector.broadcast %cst_205 : bf16 to vector<32x256xbf16>
    %265 = vector.shape_cast %20 : vector<1x256xi1> to vector<1x256xi1>
    %266 = vector.broadcast %265 : vector<1x256xi1> to vector<32x256xi1>
    %267 = arith.select %266, %263, %264 : vector<32x256xi1>, vector<32x256xbf16>
    %c160_206 = arith.constant 160 : index
    %c0_207 = arith.constant 0 : index
    %268 = vector.load %arg10[%c160_206, %c0_207] : memref<288x256xbf16, #tpu.memory_space<vmem>>, vector<32x256xbf16>
    tpu.vector_store %arg10[%c160_206, %c0_207], %267 {strides = array<i32>} : memref<288x256xbf16, #tpu.memory_space<vmem>>, vector<32x256xbf16>,
    %c0_208 = arith.constant 0 : index
    %c143_209 = arith.constant 143 : index
    %269 = vector.load %arg9[%c0_208, %c143_209] : memref<32x512xbf16, #tpu.memory_space<vmem>>, vector<32x256xbf16>
    %cst_210 = arith.constant 0.000000e+00 : bf16
    %270 = vector.broadcast %cst_210 : bf16 to vector<32x256xbf16>
    %271 = vector.shape_cast %18 : vector<1x256xi1> to vector<1x256xi1>
    %272 = vector.broadcast %271 : vector<1x256xi1> to vector<32x256xi1>
    %273 = arith.select %272, %269, %270 : vector<32x256xi1>, vector<32x256xbf16>
    %c192_211 = arith.constant 192 : index
    %c0_212 = arith.constant 0 : index
    %274 = vector.load %arg10[%c192_211, %c0_212] : memref<288x256xbf16, #tpu.memory_space<vmem>>, vector<32x256xbf16>
    tpu.vector_store %arg10[%c192_211, %c0_212], %273 {strides = array<i32>} : memref<288x256xbf16, #tpu.memory_space<vmem>>, vector<32x256xbf16>,
    %c0_213 = arith.constant 0 : index
    %c144_214 = arith.constant 144 : index
    %275 = vector.load %arg9[%c0_213, %c144_214] : memref<32x512xbf16, #tpu.memory_space<vmem>>, vector<32x256xbf16>
    %c224_215 = arith.constant 224 : index
    %c0_216 = arith.constant 0 : index
    %276 = vector.load %arg10[%c224_215, %c0_216] : memref<288x256xbf16, #tpu.memory_space<vmem>>, vector<32x256xbf16>
    tpu.vector_store %arg10[%c224_215, %c0_216], %275 {strides = array<i32>} : memref<288x256xbf16, #tpu.memory_space<vmem>>, vector<32x256xbf16>,
    %c0_217 = arith.constant 0 : index
    %c145_218 = arith.constant 145 : index
    %277 = vector.load %arg9[%c0_217, %c145_218] : memref<32x512xbf16, #tpu.memory_space<vmem>>, vector<32x256xbf16>
    %cst_219 = arith.constant 0.000000e+00 : bf16
    %278 = vector.broadcast %cst_219 : bf16 to vector<32x256xbf16>
    %279 = vector.shape_cast %20 : vector<1x256xi1> to vector<1x256xi1>
    %280 = vector.broadcast %279 : vector<1x256xi1> to vector<32x256xi1>
    %281 = arith.select %280, %277, %278 : vector<32x256xi1>, vector<32x256xbf16>
    %c256_220 = arith.constant 256 : index
    %c0_221 = arith.constant 0 : index
    %282 = vector.load %arg10[%c256_220, %c0_221] : memref<288x256xbf16, #tpu.memory_space<vmem>>, vector<32x256xbf16>
    tpu.vector_store %arg10[%c256_220, %c0_221], %281 {strides = array<i32>} : memref<288x256xbf16, #tpu.memory_space<vmem>>, vector<32x256xbf16>,
    %283 = arith.index_cast %238 : i32 to index
    %c0_222 = arith.constant 0 : index
    %c0_223 = arith.constant 0 : index
    %284 = vector.load %arg2[%283, %c0_222, %c0_223] : memref<5x32x288xbf16, #tpu.memory_space<vmem>>, vector<1x32x288xbf16>
    %285 = vector.shape_cast %284 : vector<1x32x288xbf16> to vector<32x288xbf16>
    %c0_224 = arith.constant 0 : index
    %c0_225 = arith.constant 0 : index
    %286 = vector.load %arg10[%c0_224, %c0_225] : memref<288x256xbf16, #tpu.memory_space<vmem>>, vector<288x256xbf16>
    %cst_226 = arith.constant dense<0.000000e+00> : vector<32x256xf32>
    %287 = tpu.matmul %285, %286, %cst_226 {dimension_numbers = #tpu.dot_dimension_numbers<[1], [0], [0], [1], [0, 0, 1, 1], [], []>} : vector<32x288xbf16>, vector<288x256xbf16>, vector<32x256xf32> -> vector<32x256xf32>
    %288 = arith.index_cast %238 : i32 to index
    %c0_227 = arith.constant 0 : index
    %c0_228 = arith.constant 0 : index
    %289 = vector.load %arg3[%288, %c0_227, %c0_228] : memref<5x32x1xf32, #tpu.memory_space<vmem>>, vector<1x32x1xf32>
    %290 = vector.shape_cast %289 : vector<1x32x1xf32> to vector<32x1xf32>
    %291 = vector.broadcast %290 : vector<32x1xf32> to vector<32x256xf32>
    %292 = arith.addf %287, %291 : vector<32x256xf32>
    %cst_229 = arith.constant dense<0.000000e+00> : vector<32xf32>
    %293 = vector.multi_reduction <add>, %292, %cst_229 [1] : vector<32x256xf32> to vector<32xf32>
    %294 = vector.shape_cast %293 : vector<32xf32> to vector<32x1xf32>
    %cst_230 = arith.constant 2.560000e+02 : f32
    %295 = vector.broadcast %cst_230 : f32 to vector<32x1xf32>
    %296 = arith.divf %294, %295 : vector<32x1xf32>
    %297 = arith.index_cast %c1_i32_120 : i32 to index
    %c0_231 = arith.constant 0 : index
    %c0_232 = arith.constant 0 : index
    %298 = vector.load %arg4[%297, %c0_231, %c0_232] : memref<2x32x2xf32, #tpu.memory_space<vmem>>, vector<1x32x2xf32>
    %299 = vector.shape_cast %298 : vector<1x32x2xf32> to vector<32x2xf32>
    %300 = vector.broadcast %296 : vector<32x1xf32> to vector<32x2xf32>
    %301 = arith.mulf %299, %300 : vector<32x2xf32>
    %cst_233 = arith.constant dense<0.000000e+00> : vector<2xf32>
    %302 = vector.multi_reduction <add>, %301, %cst_233 [0] : vector<32x2xf32> to vector<2xf32>
    %303 = vector.shape_cast %302 : vector<2xf32> to vector<1x2xf32>
    %304 = arith.index_cast %c1_i32_120 : i32 to index
    %c0_234 = arith.constant 0 : index
    %c0_235 = arith.constant 0 : index
    %305 = vector.load %arg5[%304, %c0_234, %c0_235] : memref<2x1x2xf32, #tpu.memory_space<vmem>>, vector<1x1x2xf32>
    %306 = vector.shape_cast %305 : vector<1x1x2xf32> to vector<1x2xf32>
    %307 = arith.addf %303, %306 : vector<1x2xf32>
    %cst_236 = arith.constant 0.000000e+00 : f32
    %308 = vector.broadcast %cst_236 : f32 to vector<1x2xf32>
    %309 = arith.maximumf %307, %308 : vector<1x2xf32>
    %310 = arith.index_cast %c1_i32_120 : i32 to index
    %c0_237 = arith.constant 0 : index
    %c0_238 = arith.constant 0 : index
    %311 = vector.load %arg6[%310, %c0_237, %c0_238] : memref<2x32x2xf32, #tpu.memory_space<vmem>>, vector<1x32x2xf32>
    %312 = vector.shape_cast %311 : vector<1x32x2xf32> to vector<32x2xf32>
    %313 = vector.broadcast %309 : vector<1x2xf32> to vector<32x2xf32>
    %314 = arith.mulf %312, %313 : vector<32x2xf32>
    %cst_239 = arith.constant dense<0.000000e+00> : vector<32xf32>
    %315 = vector.multi_reduction <add>, %314, %cst_239 [1] : vector<32x2xf32> to vector<32xf32>
    %316 = vector.shape_cast %315 : vector<32xf32> to vector<32x1xf32>
    %317 = arith.index_cast %c1_i32_120 : i32 to index
    %c0_240 = arith.constant 0 : index
    %c0_241 = arith.constant 0 : index
    %318 = vector.load %arg7[%317, %c0_240, %c0_241] : memref<2x32x1xf32, #tpu.memory_space<vmem>>, vector<1x32x1xf32>
    %319 = vector.shape_cast %318 : vector<1x32x1xf32> to vector<32x1xf32>
    %320 = arith.addf %316, %319 : vector<32x1xf32>
    %cst_242 = arith.constant 0.000000e+00 : f32
    %321 = vector.broadcast %cst_242 : f32 to vector<32x1xf32>
    %322 = arith.subf %321, %320 : vector<32x1xf32>
    %323 = math.exp %322 : vector<32x1xf32>
    %cst_243 = arith.constant 1.000000e+00 : f32
    %324 = vector.broadcast %cst_243 : f32 to vector<32x1xf32>
    %325 = arith.addf %324, %323 : vector<32x1xf32>
    %cst_244 = arith.constant 1.000000e+00 : f32
    %326 = vector.broadcast %cst_244 : f32 to vector<32x1xf32>
    %327 = arith.divf %326, %325 : vector<32x1xf32>
    %328 = vector.broadcast %327 : vector<32x1xf32> to vector<32x256xf32>
    %329 = arith.mulf %292, %328 : vector<32x256xf32>
    %330 = arith.addf %329, %179 : vector<32x256xf32>
    %c0_245 = arith.constant 0 : index
    %c0_246 = arith.constant 0 : index
    %331 = vector.load %arg11[%c0_245, %c0_246] : memref<32x256xf32, #tpu.memory_space<vmem>>, vector<32x256xf32>
    tpu.vector_store %arg11[%c0_245, %c0_246], %330 {strides = array<i32>} : memref<32x256xf32, #tpu.memory_space<vmem>>, vector<32x256xf32>,
    %c2_i32_247 = arith.constant 2 : i32
    %c0_248 = arith.constant 0 : index
    %c0_249 = arith.constant 0 : index
    %332 = vector.load %arg11[%c0_248, %c0_249] : memref<32x256xf32, #tpu.memory_space<vmem>>, vector<32x256xf32>
    %333 = arith.truncf %332 : vector<32x256xf32> to vector<32x256xbf16>
    %c0_250 = arith.constant 0 : index
    %c128_251 = arith.constant 128 : index
    %334 = vector.load %arg9[%c0_250, %c128_251] : memref<32x512xbf16, #tpu.memory_space<vmem>>, vector<32x256xbf16>
    tpu.vector_store %arg9[%c0_250, %c128_251], %333 {strides = array<i32>} : memref<32x512xbf16, #tpu.memory_space<vmem>>, vector<32x256xbf16>,
    %c0_252 = arith.constant 0 : index
    %c111_253 = arith.constant 111 : index
    %335 = vector.load %arg9[%c0_252, %c111_253] : memref<32x512xbf16, #tpu.memory_space<vmem>>, vector<32x256xbf16>
    %cst_254 = arith.constant 0.000000e+00 : bf16
    %336 = vector.broadcast %cst_254 : bf16 to vector<32x256xbf16>
    %337 = vector.shape_cast %18 : vector<1x256xi1> to vector<1x256xi1>
    %338 = vector.broadcast %337 : vector<1x256xi1> to vector<32x256xi1>
    %339 = arith.select %338, %335, %336 : vector<32x256xi1>, vector<32x256xbf16>
    %c0_255 = arith.constant 0 : index
    %c0_256 = arith.constant 0 : index
    %340 = vector.load %arg10[%c0_255, %c0_256] : memref<288x256xbf16, #tpu.memory_space<vmem>>, vector<32x256xbf16>
    tpu.vector_store %arg10[%c0_255, %c0_256], %339 {strides = array<i32>} : memref<288x256xbf16, #tpu.memory_space<vmem>>, vector<32x256xbf16>,
    %c0_257 = arith.constant 0 : index
    %c112_258 = arith.constant 112 : index
    %341 = vector.load %arg9[%c0_257, %c112_258] : memref<32x512xbf16, #tpu.memory_space<vmem>>, vector<32x256xbf16>
    %c32_259 = arith.constant 32 : index
    %c0_260 = arith.constant 0 : index
    %342 = vector.load %arg10[%c32_259, %c0_260] : memref<288x256xbf16, #tpu.memory_space<vmem>>, vector<32x256xbf16>
    tpu.vector_store %arg10[%c32_259, %c0_260], %341 {strides = array<i32>} : memref<288x256xbf16, #tpu.memory_space<vmem>>, vector<32x256xbf16>,
    %c0_261 = arith.constant 0 : index
    %c113_262 = arith.constant 113 : index
    %343 = vector.load %arg9[%c0_261, %c113_262] : memref<32x512xbf16, #tpu.memory_space<vmem>>, vector<32x256xbf16>
    %cst_263 = arith.constant 0.000000e+00 : bf16
    %344 = vector.broadcast %cst_263 : bf16 to vector<32x256xbf16>
    %345 = vector.shape_cast %20 : vector<1x256xi1> to vector<1x256xi1>
    %346 = vector.broadcast %345 : vector<1x256xi1> to vector<32x256xi1>
    %347 = arith.select %346, %343, %344 : vector<32x256xi1>, vector<32x256xbf16>
    %c64_264 = arith.constant 64 : index
    %c0_265 = arith.constant 0 : index
    %348 = vector.load %arg10[%c64_264, %c0_265] : memref<288x256xbf16, #tpu.memory_space<vmem>>, vector<32x256xbf16>
    tpu.vector_store %arg10[%c64_264, %c0_265], %347 {strides = array<i32>} : memref<288x256xbf16, #tpu.memory_space<vmem>>, vector<32x256xbf16>,
    %c0_266 = arith.constant 0 : index
    %c127_267 = arith.constant 127 : index
    %349 = vector.load %arg9[%c0_266, %c127_267] : memref<32x512xbf16, #tpu.memory_space<vmem>>, vector<32x256xbf16>
    %cst_268 = arith.constant 0.000000e+00 : bf16
    %350 = vector.broadcast %cst_268 : bf16 to vector<32x256xbf16>
    %351 = vector.shape_cast %18 : vector<1x256xi1> to vector<1x256xi1>
    %352 = vector.broadcast %351 : vector<1x256xi1> to vector<32x256xi1>
    %353 = arith.select %352, %349, %350 : vector<32x256xi1>, vector<32x256xbf16>
    %c96_269 = arith.constant 96 : index
    %c0_270 = arith.constant 0 : index
    %354 = vector.load %arg10[%c96_269, %c0_270] : memref<288x256xbf16, #tpu.memory_space<vmem>>, vector<32x256xbf16>
    tpu.vector_store %arg10[%c96_269, %c0_270], %353 {strides = array<i32>} : memref<288x256xbf16, #tpu.memory_space<vmem>>, vector<32x256xbf16>,
    %c0_271 = arith.constant 0 : index
    %c128_272 = arith.constant 128 : index
    %355 = vector.load %arg9[%c0_271, %c128_272] : memref<32x512xbf16, #tpu.memory_space<vmem>>, vector<32x256xbf16>
    %c128_273 = arith.constant 128 : index
    %c0_274 = arith.constant 0 : index
    %356 = vector.load %arg10[%c128_273, %c0_274] : memref<288x256xbf16, #tpu.memory_space<vmem>>, vector<32x256xbf16>
    tpu.vector_store %arg10[%c128_273, %c0_274], %355 {strides = array<i32>} : memref<288x256xbf16, #tpu.memory_space<vmem>>, vector<32x256xbf16>,
    %c0_275 = arith.constant 0 : index
    %c129_276 = arith.constant 129 : index
    %357 = vector.load %arg9[%c0_275, %c129_276] : memref<32x512xbf16, #tpu.memory_space<vmem>>, vector<32x256xbf16>
    %cst_277 = arith.constant 0.000000e+00 : bf16
    %358 = vector.broadcast %cst_277 : bf16 to vector<32x256xbf16>
    %359 = vector.shape_cast %20 : vector<1x256xi1> to vector<1x256xi1>
    %360 = vector.broadcast %359 : vector<1x256xi1> to vector<32x256xi1>
    %361 = arith.select %360, %357, %358 : vector<32x256xi1>, vector<32x256xbf16>
    %c160_278 = arith.constant 160 : index
    %c0_279 = arith.constant 0 : index
    %362 = vector.load %arg10[%c160_278, %c0_279] : memref<288x256xbf16, #tpu.memory_space<vmem>>, vector<32x256xbf16>
    tpu.vector_store %arg10[%c160_278, %c0_279], %361 {strides = array<i32>} : memref<288x256xbf16, #tpu.memory_space<vmem>>, vector<32x256xbf16>,
    %c0_280 = arith.constant 0 : index
    %c143_281 = arith.constant 143 : index
    %363 = vector.load %arg9[%c0_280, %c143_281] : memref<32x512xbf16, #tpu.memory_space<vmem>>, vector<32x256xbf16>
    %cst_282 = arith.constant 0.000000e+00 : bf16
    %364 = vector.broadcast %cst_282 : bf16 to vector<32x256xbf16>
    %365 = vector.shape_cast %18 : vector<1x256xi1> to vector<1x256xi1>
    %366 = vector.broadcast %365 : vector<1x256xi1> to vector<32x256xi1>
    %367 = arith.select %366, %363, %364 : vector<32x256xi1>, vector<32x256xbf16>
    %c192_283 = arith.constant 192 : index
    %c0_284 = arith.constant 0 : index
    %368 = vector.load %arg10[%c192_283, %c0_284] : memref<288x256xbf16, #tpu.memory_space<vmem>>, vector<32x256xbf16>
    tpu.vector_store %arg10[%c192_283, %c0_284], %367 {strides = array<i32>} : memref<288x256xbf16, #tpu.memory_space<vmem>>, vector<32x256xbf16>,
    %c0_285 = arith.constant 0 : index
    %c144_286 = arith.constant 144 : index
    %369 = vector.load %arg9[%c0_285, %c144_286] : memref<32x512xbf16, #tpu.memory_space<vmem>>, vector<32x256xbf16>
    %c224_287 = arith.constant 224 : index
    %c0_288 = arith.constant 0 : index
    %370 = vector.load %arg10[%c224_287, %c0_288] : memref<288x256xbf16, #tpu.memory_space<vmem>>, vector<32x256xbf16>
    tpu.vector_store %arg10[%c224_287, %c0_288], %369 {strides = array<i32>} : memref<288x256xbf16, #tpu.memory_space<vmem>>, vector<32x256xbf16>,
    %c0_289 = arith.constant 0 : index
    %c145_290 = arith.constant 145 : index
    %371 = vector.load %arg9[%c0_289, %c145_290] : memref<32x512xbf16, #tpu.memory_space<vmem>>, vector<32x256xbf16>
    %cst_291 = arith.constant 0.000000e+00 : bf16
    %372 = vector.broadcast %cst_291 : bf16 to vector<32x256xbf16>
    %373 = vector.shape_cast %20 : vector<1x256xi1> to vector<1x256xi1>
    %374 = vector.broadcast %373 : vector<1x256xi1> to vector<32x256xi1>
    %375 = arith.select %374, %371, %372 : vector<32x256xi1>, vector<32x256xbf16>
    %c256_292 = arith.constant 256 : index
    %c0_293 = arith.constant 0 : index
    %376 = vector.load %arg10[%c256_292, %c0_293] : memref<288x256xbf16, #tpu.memory_space<vmem>>, vector<32x256xbf16>
    tpu.vector_store %arg10[%c256_292, %c0_293], %375 {strides = array<i32>} : memref<288x256xbf16, #tpu.memory_space<vmem>>, vector<32x256xbf16>,
    %c4 = arith.constant 4 : index
    %c0_294 = arith.constant 0 : index
    %c0_295 = arith.constant 0 : index
    %377 = vector.load %arg2[%c4, %c0_294, %c0_295] : memref<5x32x288xbf16, #tpu.memory_space<vmem>>, vector<1x32x288xbf16>
    %378 = vector.shape_cast %377 : vector<1x32x288xbf16> to vector<32x288xbf16>
    %c0_296 = arith.constant 0 : index
    %c0_297 = arith.constant 0 : index
    %379 = vector.load %arg10[%c0_296, %c0_297] : memref<288x256xbf16, #tpu.memory_space<vmem>>, vector<288x256xbf16>
    %cst_298 = arith.constant dense<0.000000e+00> : vector<32x256xf32>
    %380 = tpu.matmul %378, %379, %cst_298 {dimension_numbers = #tpu.dot_dimension_numbers<[1], [0], [0], [1], [0, 0, 1, 1], [], []>} : vector<32x288xbf16>, vector<288x256xbf16>, vector<32x256xf32> -> vector<32x256xf32>
    %c4_299 = arith.constant 4 : index
    %c0_300 = arith.constant 0 : index
    %c0_301 = arith.constant 0 : index
    %381 = vector.load %arg3[%c4_299, %c0_300, %c0_301] : memref<5x32x1xf32, #tpu.memory_space<vmem>>, vector<1x32x1xf32>
    %382 = vector.shape_cast %381 : vector<1x32x1xf32> to vector<32x1xf32>
    %383 = vector.broadcast %382 : vector<32x1xf32> to vector<32x256xf32>
    %384 = arith.addf %380, %383 : vector<32x256xf32>
    %c0_302 = arith.constant 0 : index
    %c0_303 = arith.constant 0 : index
    %c0_304 = arith.constant 0 : index
    %385 = vector.load %arg1[%c0_302, %c0_303, %c0_304] : memref<1x32x256xf32, #tpu.memory_space<vmem>>, vector<1x32x256xf32>
    %386 = vector.shape_cast %385 : vector<1x32x256xf32> to vector<32x256xf32>
    %387 = arith.addf %384, %386 : vector<32x256xf32>
    %c0_305 = arith.constant 0 : index
    %c0_306 = arith.constant 0 : index
    %c0_307 = arith.constant 0 : index
    %388 = vector.load %arg8[%c0_305, %c0_306, %c0_307] : memref<1x32x256xf32, #tpu.memory_space<vmem>>, vector<1x32x256xf32>
    %389 = vector.shape_cast %388 : vector<1x32x256xf32> to vector<32x256xf32>
    %390 = vector.shape_cast %387 : vector<32x256xf32> to vector<1x32x256xf32>
    tpu.vector_store %arg8[%c0_305, %c0_306, %c0_307], %390 {strides = array<i32>} : memref<1x32x256xf32, #tpu.memory_space<vmem>>, vector<1x32x256xf32>,
    return
  }
  func.func @transform_0(%arg0: i32) -> (i32, i32, i32) {
    %c0_i32 = arith.constant 0 : i32
    %c0_i32_0 = arith.constant 0 : i32
    %c0_i32_1 = arith.constant 0 : i32
    return %arg0, %c0_i32, %c0_i32_0 : i32, i32, i32
  }
  func.func @transform_1(%arg0: i32) -> (i32, i32, i32) {
    %c0_i32 = arith.constant 0 : i32
    %c0_i32_0 = arith.constant 0 : i32
    %c0_i32_1 = arith.constant 0 : i32
    %c0_i32_2 = arith.constant 0 : i32
    return %c0_i32, %c0_i32_0, %c0_i32_1 : i32, i32, i32
  }
  func.func @transform_2(%arg0: i32) -> (i32, i32, i32) {
    %c0_i32 = arith.constant 0 : i32
    %c0_i32_0 = arith.constant 0 : i32
    %c0_i32_1 = arith.constant 0 : i32
    %c0_i32_2 = arith.constant 0 : i32
    return %c0_i32, %c0_i32_0, %c0_i32_1 : i32, i32, i32
  }
  func.func @transform_3(%arg0: i32) -> (i32, i32, i32) {
    %c0_i32 = arith.constant 0 : i32
    %c0_i32_0 = arith.constant 0 : i32
    %c0_i32_1 = arith.constant 0 : i32
    %c0_i32_2 = arith.constant 0 : i32
    return %c0_i32, %c0_i32_0, %c0_i32_1 : i32, i32, i32
  }
  func.func @transform_4(%arg0: i32) -> (i32, i32, i32) {
    %c0_i32 = arith.constant 0 : i32
    %c0_i32_0 = arith.constant 0 : i32
    %c0_i32_1 = arith.constant 0 : i32
    %c0_i32_2 = arith.constant 0 : i32
    return %c0_i32, %c0_i32_0, %c0_i32_1 : i32, i32, i32
  }
  func.func @transform_5(%arg0: i32) -> (i32, i32, i32) {
    %c0_i32 = arith.constant 0 : i32
    %c0_i32_0 = arith.constant 0 : i32
    %c0_i32_1 = arith.constant 0 : i32
    %c0_i32_2 = arith.constant 0 : i32
    return %c0_i32, %c0_i32_0, %c0_i32_1 : i32, i32, i32
  }
  func.func @transform_6(%arg0: i32) -> (i32, i32, i32) {
    %c0_i32 = arith.constant 0 : i32
    %c0_i32_0 = arith.constant 0 : i32
    %c0_i32_1 = arith.constant 0 : i32
    %c0_i32_2 = arith.constant 0 : i32
    return %c0_i32, %c0_i32_0, %c0_i32_1 : i32, i32, i32
  }
  func.func @transform_7(%arg0: i32) -> (i32, i32, i32) {
    %c0_i32 = arith.constant 0 : i32
    %c0_i32_0 = arith.constant 0 : i32
    %c0_i32_1 = arith.constant 0 : i32
    return %arg0, %c0_i32, %c0_i32_0 : i32, i32, i32
  }
}

</mosaic_0001>

<llo_original>
// kernel: residual_group_forward.1
$region0: #{residual_group_forward.1}
  #allocation0 [shape = 'u32[]', space=smem, size = 0x4, offset = 0x4, fixed_abs, tag = 'smem constant byte address 0x4 - core index']
  #allocation1 [shape = 'u32[144,128]{1,0:T(1,128)}', space=vmem, size = 0x12000, scoped, tag = 'internal scratch']
  #allocation2 [shape = 'bf16[32,512]{1,0:T(16,128)(2,1)}', space=vmem, size = 0x8000, scoped, tag = 'scratch operand']
  #allocation3 [shape = 'bf16[288,256]{1,0:T(16,128)(2,1)}', space=vmem, size = 0x24000, scoped, tag = 'scratch operand']
  #allocation4 [shape = 'f32[32,256]{1,0:T(8,128)}', space=vmem, size = 0x8000, scoped, tag = 'scratch operand']
  %s0 = inlined_call_operand.vmem [shape: f32[2,32,256], index: 0, kind: input, shape index: {}]
  %s1 = inlined_call_operand.vmem [shape: bf16[5,32,288], index: 1, kind: input, shape index: {}]
  %s2 = inlined_call_operand.vmem [shape: f32[5,32,1], index: 2, kind: input, shape index: {}]
  %s3 = inlined_call_operand.vmem [shape: f32[2,32,2], index: 3, kind: input, shape index: {}]
  %s4 = inlined_call_operand.vmem [shape: f32[2,1,2], index: 4, kind: input, shape index: {}]
  %s5 = inlined_call_operand.vmem [shape: f32[2,32,2], index: 5, kind: input, shape index: {}]
  %s6 = inlined_call_operand.vmem [shape: f32[2,32,1], index: 6, kind: input, shape index: {}]
  %s7 = inlined_call_operand.vmem [shape: f32[2,32,256], index: 7, kind: output, shape index: {}]
  %s8 = sld [smem:[#allocation0]]
  $region61: #{residual_group_forward.1} parent=0
    _
  %s10 = ssub.s32 1, %s8
  %s11 = scalar_select 0, %s10, %s8
  loop: start=0, step=1, limit=4
  $region2: #{residual_group_forward.1} parent=0 // loop_pre_header
    _
  $region3: #{residual_group_forward.1} parent=0 // loop_header
    %s13 = sphi 0, %s17
    %p14 = scmp.ge.s32.totalorder %s13, 4
    %s23 = sphi 0, %s25
    %s26 = sphi 0, %s23
    %s27 = sphi 0, %s26
    %s43 = sphi 0, %s27
    %s47 = sphi 0, %s47
    %s49 = sphi 0, %s47
    %s50 = sphi 0, %s49
    %s64 = sphi 0, %s50
    %s68 = sphi 0, %s68
    %s70 = sphi 0, %s68
    %s71 = sphi 0, %s70
    %s85 = sphi 0, %s71
    %s89 = sphi 0, %s89
    %s91 = sphi 0, %s89
    %s92 = sphi 0, %s91
    %s106 = sphi 0, %s92
    %s110 = sphi 0, %s110
    %s112 = sphi 0, %s110
    %s113 = sphi 0, %s112
    %s127 = sphi 0, %s113
    %s131 = sphi 0, %s131
    %s133 = sphi 0, %s131
    %s134 = sphi 0, %s133
    %s148 = sphi 0, %s134
    %s152 = sphi 0, %s152
    %s154 = sphi 0, %s152
    %s155 = sphi 0, %s154
    %s169 = sphi 0, %s155
    %s175 = sphi 0, %s177
    %s178 = sphi 0, %s175
    %s179 = sphi 0, %s178
    %s195 = sphi 0, %s179
  $region4: #{residual_group_forward.1} parent=0 // loop_header_branch
    %16 = sbr.rel (%p14) target = $region8
  $region5: #{residual_group_forward.1} parent=0 // loop_body
    %s18 = ssub.s32 %s13, 1
    %s19 = ssub.s32 %s13, 2
    %s20 = sadd.s32 %s13, 1
    %s21 = ssub.s32 %s13, %s20
    %p22 = scmp.eq.s32.totalorder %s21, 0
    %s24 = sadd.s32 %s23, 1
    %s25 = scalar_select %p22, %s23, %s24
    %p28 = pneg %p22
    %p29 = scmp.eq.s32.totalorder %s13, 1
    %p30 = por %p28, %p29
    %p31 = scmp.ne.s32.totalorder %s23, %s26
    %p32 = scmp.eq.s32.totalorder %s13, 0
    %p33 = por %p31, %p32
    %p34 = scmp.ne.s32.totalorder %s23, %s26
    %p35 = scmp.eq.s32.totalorder %s18, 1
    %p36 = por %p34, %p35
    %p37 = scmp.ne.s32.totalorder %s26, %s27
    %p38 = scmp.eq.s32.totalorder %s18, 0
    %p39 = por %p37, %p38
    %p40 = scmp.ne.s32.totalorder %s26, %s27
    %p41 = scmp.eq.s32.totalorder %s19, 1
    %p42 = por %p40, %p41
    %p44 = scmp.ne.s32.totalorder %s27, %s43
    %p45 = scmp.eq.s32.totalorder %s19, 0
    %p46 = por %p44, %p45
    %s48 = sadd.s32 %s47, 1
    %p51 = scmp.eq.s32.totalorder %s13, 1
    %p52 = scmp.ne.s32.totalorder %s47, %s49
    %p53 = scmp.eq.s32.totalorder %s13, 0
    %p54 = por %p52, %p53
    %p55 = scmp.ne.s32.totalorder %s47, %s49
    %p56 = scmp.eq.s32.totalorder %s18, 1
    %p57 = por %p55, %p56
    %p58 = scmp.ne.s32.totalorder %s49, %s50
    %p59 = scmp.eq.s32.totalorder %s18, 0
    %p60 = por %p58, %p59
    %p61 = scmp.ne.s32.totalorder %s49, %s50
    %p62 = scmp.eq.s32.totalorder %s19, 1
    %p63 = por %p61, %p62
    %p65 = scmp.ne.s32.totalorder %s50, %s64
    %p66 = scmp.eq.s32.totalorder %s19, 0
    %p67 = por %p65, %p66
    %s69 = sadd.s32 %s68, 1
    %p72 = scmp.eq.s32.totalorder %s13, 1
    %p73 = scmp.ne.s32.totalorder %s68, %s70
    %p74 = scmp.eq.s32.totalorder %s13, 0
    %p75 = por %p73, %p74
    %p76 = scmp.ne.s32.totalorder %s68, %s70
    %p77 = scmp.eq.s32.totalorder %s18, 1
    %p78 = por %p76, %p77
    %p79 = scmp.ne.s32.totalorder %s70, %s71
    %p80 = scmp.eq.s32.totalorder %s18, 0
    %p81 = por %p79, %p80
    %p82 = scmp.ne.s32.totalorder %s70, %s71
    %p83 = scmp.eq.s32.totalorder %s19, 1
    %p84 = por %p82, %p83
    %p86 = scmp.ne.s32.totalorder %s71, %s85
    %p87 = scmp.eq.s32.totalorder %s19, 0
    %p88 = por %p86, %p87
    %s90 = sadd.s32 %s89, 1
    %p93 = scmp.eq.s32.totalorder %s13, 1
    %p94 = scmp.ne.s32.totalorder %s89, %s91
    %p95 = scmp.eq.s32.totalorder %s13, 0
    %p96 = por %p94, %p95
    %p97 = scmp.ne.s32.totalorder %s89, %s91
    %p98 = scmp.eq.s32.totalorder %s18, 1
    %p99 = por %p97, %p98
    %p100 = scmp.ne.s32.totalorder %s91, %s92
    %p101 = scmp.eq.s32.totalorder %s18, 0
    %p102 = por %p100, %p101
    %p103 = scmp.ne.s32.totalorder %s91, %s92
    %p104 = scmp.eq.s32.totalorder %s19, 1
    %p105 = por %p103, %p104
    %p107 = scmp.ne.s32.totalorder %s92, %s106
    %p108 = scmp.eq.s32.totalorder %s19, 0
    %p109 = por %p107, %p108
    %s111 = sadd.s32 %s110, 1
    %p114 = scmp.eq.s32.totalorder %s13, 1
    %p115 = scmp.ne.s32.totalorder %s110, %s112
    %p116 = scmp.eq.s32.totalorder %s13, 0
    %p117 = por %p115, %p116
    %p118 = scmp.ne.s32.totalorder %s110, %s112
    %p119 = scmp.eq.s32.totalorder %s18, 1
    %p120 = por %p118, %p119
    %p121 = scmp.ne.s32.totalorder %s112, %s113
    %p122 = scmp.eq.s32.totalorder %s18, 0
    %p123 = por %p121, %p122
    %p124 = scmp.ne.s32.totalorder %s112, %s113
    %p125 = scmp.eq.s32.totalorder %s19, 1
    %p126 = por %p124, %p125
    %p128 = scmp.ne.s32.totalorder %s113, %s127
    %p129 = scmp.eq.s32.totalorder %s19, 0
    %p130 = por %p128, %p129
    %s132 = sadd.s32 %s131, 1
    %p135 = scmp.eq.s32.totalorder %s13, 1
    %p136 = scmp.ne.s32.totalorder %s131, %s133
    %p137 = scmp.eq.s32.totalorder %s13, 0
    %p138 = por %p136, %p137
    %p139 = scmp.ne.s32.totalorder %s131, %s133
    %p140 = scmp.eq.s32.totalorder %s18, 1
    %p141 = por %p139, %p140
    %p142 = scmp.ne.s32.totalorder %s133, %s134
    %p143 = scmp.eq.s32.totalorder %s18, 0
    %p144 = por %p142, %p143
    %p145 = scmp.ne.s32.totalorder %s133, %s134
    %p146 = scmp.eq.s32.totalorder %s19, 1
    %p147 = por %p145, %p146
    %p149 = scmp.ne.s32.totalorder %s134, %s148
    %p150 = scmp.eq.s32.totalorder %s19, 0
    %p151 = por %p149, %p150
    %s153 = sadd.s32 %s152, 1
    %p156 = scmp.eq.s32.totalorder %s13, 1
    %p157 = scmp.ne.s32.totalorder %s152, %s154
    %p158 = scmp.eq.s32.totalorder %s13, 0
    %p159 = por %p157, %p158
    %p160 = scmp.ne.s32.totalorder %s152, %s154
    %p161 = scmp.eq.s32.totalorder %s18, 1
    %p162 = por %p160, %p161
    %p163 = scmp.ne.s32.totalorder %s154, %s155
    %p164 = scmp.eq.s32.totalorder %s18, 0
    %p165 = por %p163, %p164
    %p166 = scmp.ne.s32.totalorder %s154, %s155
    %p167 = scmp.eq.s32.totalorder %s19, 1
    %p168 = por %p166, %p167
    %p170 = scmp.ne.s32.totalorder %s155, %s169
    %p171 = scmp.eq.s32.totalorder %s19, 0
    %p172 = por %p170, %p171
    %s173 = ssub.s32 %s13, %s20
    %p174 = scmp.eq.s32.totalorder %s173, 0
    %s176 = sadd.s32 %s175, 1
    %s177 = scalar_select %p174, %s175, %s176
    %p180 = pneg %p174
    %p181 = scmp.eq.s32.totalorder %s13, 1
    %p182 = por %p180, %p181
    %p183 = scmp.ne.s32.totalorder %s175, %s178
    %p184 = scmp.eq.s32.totalorder %s13, 0
    %p185 = por %p183, %p184
    %p186 = scmp.ne.s32.totalorder %s175, %s178
    %p187 = scmp.eq.s32.totalorder %s18, 1
    %p188 = por %p186, %p187
    %p189 = scmp.ne.s32.totalorder %s178, %s179
    %p190 = scmp.eq.s32.totalorder %s18, 0
    %p191 = por %p189, %p190
    %p192 = scmp.ne.s32.totalorder %s178, %s179
    %p193 = scmp.eq.s32.totalorder %s19, 1
    %p194 = por %p192, %p193
    %p196 = scmp.ne.s32.totalorder %s179, %s195
    %p197 = scmp.eq.s32.totalorder %s19, 0
    %p198 = por %p196, %p197
    %p199 = scmp.le.s32.totalorder 1, %s13
    %p200 = scmp.lt.s32.totalorder %s13, 3
    %p201 = pnand %p199, %p200
    %p202 = pneg %p201
    // Predicated region
    $region9: #{residual_group_forward.1} parent=5 // pred_check
      _
    $region10: #{residual_group_forward.1} parent=5 // pred_check_branch
      %204 = sbr.rel (%p201) target = $region12
    $region11: #{residual_group_forward.1} parent=5 // pred_region
      %s205 = ssub.s32 %s13, 1
      // Predicated region
      $region13: #{residual_group_forward.1} parent=11 // pred_check
        %p206 = pneg %p60
      $region14: #{residual_group_forward.1} parent=11 // pred_check_branch
        %208 = sbr.rel (%p206) target = $region16
      $region15: #{residual_group_forward.1} parent=11 // pred_region
        _
      $region16: #{residual_group_forward.1} parent=11 // pred_fallthru
        _
      // Predicated region
      $region17: #{residual_group_forward.1} parent=11 // pred_check
        %p209 = pneg %p81
      $region18: #{residual_group_forward.1} parent=11 // pred_check_branch
        %211 = sbr.rel (%p209) target = $region20
      $region19: #{residual_group_forward.1} parent=11 // pred_region
        _
      $region20: #{residual_group_forward.1} parent=11 // pred_fallthru
        _
      // Predicated region
      $region21: #{residual_group_forward.1} parent=11 // pred_check
        %p212 = pneg %p102
      $region22: #{residual_group_forward.1} parent=11 // pred_check_branch
        %214 = sbr.rel (%p212) target = $region24
      $region23: #{residual_group_forward.1} parent=11 // pred_region
        _
      $region24: #{residual_group_forward.1} parent=11 // pred_fallthru
        _
      // Predicated region
      $region25: #{residual_group_forward.1} parent=11 // pred_check
        %p215 = pneg %p123
      $region26: #{residual_group_forward.1} parent=11 // pred_check_branch
        %217 = sbr.rel (%p215) target = $region28
      $region27: #{residual_group_forward.1} parent=11 // pred_region
        _
      $region28: #{residual_group_forward.1} parent=11 // pred_fallthru
        _
      // Predicated region
      $region29: #{residual_group_forward.1} parent=11 // pred_check
        %p218 = pneg %p144
      $region30: #{residual_group_forward.1} parent=11 // pred_check_branch
        %220 = sbr.rel (%p218) target = $region32
      $region31: #{residual_group_forward.1} parent=11 // pred_region
        _
      $region32: #{residual_group_forward.1} parent=11 // pred_fallthru
        _
      // Predicated region
      $region33: #{residual_group_forward.1} parent=11 // pred_check
        %p221 = pneg %p165
      $region34: #{residual_group_forward.1} parent=11 // pred_check_branch
        %223 = sbr.rel (%p221) target = $region36
      $region35: #{residual_group_forward.1} parent=11 // pred_region
        _
      $region36: #{residual_group_forward.1} parent=11 // pred_fallthru
        _
    $region12: #{residual_group_forward.1} parent=5 // pred_fallthru
      _
    %p224 = scmp.lt.s32.totalorder %s13, 2
    // Predicated region
    $region37: #{residual_group_forward.1} parent=5 // pred_check
      %p225 = pneg %p224
    $region38: #{residual_group_forward.1} parent=5 // pred_check_branch
      %227 = sbr.rel (%p225) target = $region40
    $region39: #{residual_group_forward.1} parent=5 // pred_region
      // Predicated region
      $region41: #{residual_group_forward.1} parent=39 // pred_check
        %p228 = pneg %p33
      $region42: #{residual_group_forward.1} parent=39 // pred_check_branch
        %230 = sbr.rel (%p228) target = $region44
      $region43: #{residual_group_forward.1} parent=39 // pred_region
        %p231 = scmp.lt.s32.totalorder %s13, 1
        %s232 = scalar_select %p231, %s13, 1
        %s233 = smul.addr %s232, 8
        %s234 = smul.addr %s233, 8
        %s235 = scalar_lea.vmem %s0, %s234
      $region44: #{residual_group_forward.1} parent=39 // pred_fallthru
        _
    $region40: #{residual_group_forward.1} parent=5 // pred_fallthru
      _
    %p236 = scmp.le.s32.totalorder 1, %s13
    %p237 = scmp.lt.s32.totalorder %s13, 3
    %p238 = pnand %p236, %p237
    %p239 = pneg %p238
    // Predicated region
    $region45: #{residual_group_forward.1} parent=5 // pred_check
      _
    $region46: #{residual_group_forward.1} parent=5 // pred_check_branch
      %241 = sbr.rel (%p238) target = $region48
    $region47: #{residual_group_forward.1} parent=5 // pred_region
      %s242 = ssub.s32 %s13, 1
      %p243 = scmp.lt.s32.totalorder %s18, 1
      %s244 = scalar_select %p243, %s18, 1
      %s245 = smul.addr %s244, 8
      %s246 = smul.addr %s245, 8
      %s247 = scalar_lea.vmem %s0, %s246
      %p248 = pneg %p39
      %p249 = pneg %p36
      %p250 = pneg %p60
      %p251 = pneg %p57
      %p252 = pneg %p81
      %p253 = pneg %p78
      %p254 = pneg %p102
      %p255 = pneg %p99
      %p256 = pneg %p123
      %p257 = pneg %p120
      %p258 = pneg %p144
      %p259 = pneg %p141
      %p260 = pneg %p165
      %p261 = pneg %p162
      %p262 = pneg %p191
      %p263 = pneg %p188
      %p264 = scmp.lt.s32.totalorder %s18, 1
      %s265 = scalar_select %p264, %s18, 1
      %s266 = smul.addr %s265, 8
      %s267 = smul.addr %s266, 8
      %s268 = scalar_lea.vmem %s7, %s267
      %p269 = scmp.lt.s32.totalorder %s18, 1
      %s270 = scalar_select %p269, %s18, 1
      %s271 = smul.addr %s270, 8
      %s272 = smul.addr %s271, 8
      %s273 = scalar_lea.vmem %s0, %s272
      %p274 = scmp.lt.s32.totalorder %s18, 1
      %s275 = scalar_select %p274, %s18, 1
      %s276 = smul.addr %s275, 8
      %s277 = smul.addr %s276, 8
      %s278 = scalar_lea.vmem %s7, %s277
      %v282 = vlaneseq
      %v283 = vand.u32 %v282, 127
      %v284 = vadd.s32 %v283, 128
      %vm285 = vcmp.lt.s32.totalorder %v283, 0
      %v286 = vsub.s32 0, %v283
      %v287 = vsel %vm285, %v286, %v283
      %v288 = vshrl.u32 %v287, 4
      %v289 = vand.u32 %v287, 15
      %v290 = vsub.s32 0, %v289
      %v291 = vsel %vm285, %v290, %v289
      %vm292 = vcmp.lt.s32.totalorder %v284, 0
      %v293 = vsub.s32 0, %v284
      %v294 = vsel %vm292, %v293, %v284
      %v295 = vshrl.u32 %v294, 4
      %v296 = vand.u32 %v294, 15
      %v297 = vsub.s32 0, %v296
      %v298 = vsel %vm292, %v297, %v296
      %vm299 = vcmp.ne.s32.totalorder %v291, 0
      %vm300 = vcmp.ne.s32.totalorder %v298, 0
      %vm301 = vcmp.lt.s32.totalorder %v291, 0
      %vm302 = vcmp.lt.s32.totalorder %v298, 0
      %vm303 = vmand %vm301, %vm299
      %vm304 = vmand %vm302, %vm300
      %v305 = vadd.s32 %v291, 16
      %v306 = vadd.s32 %v298, 16
      %v307 = vsel %vm303, %v305, %v291
      %v308 = vsel %vm304, %v306, %v298
      %vm309 = vcmp.ge.s32.totalorder %v307, 1
      %vm310 = vcmp.ge.s32.totalorder %v308, 1
      %vm311 = vcmp.le.s32.totalorder %v307, 14
      %vm312 = vcmp.le.s32.totalorder %v308, 14
      %313 = vst [vmem:[#allocation2] sm:$0xff] 0
      %314 = vst [vmem:[#allocation2 + $0x8] sm:$0xff] 0
      %315 = vst [vmem:[#allocation2 + $0x10] sm:$0xff] 0
      %316 = vst [vmem:[#allocation2 + $0x18] sm:$0xff] 0
      %317 = vst [vmem:[#allocation2 + $0x20] sm:$0xff] 0
      %318 = vst [vmem:[#allocation2 + $0x28] sm:$0xff] 0
      %319 = vst [vmem:[#allocation2 + $0x30] sm:$0xff] 0
      %320 = vst [vmem:[#allocation2 + $0x38] sm:$0xff] 0
      %v321 = vld [vmem:[%s273] sm:$0xff]
      %v322 = vld [vmem:[%s273 + $0x8] sm:$0xff]
      %v323 = vld [vmem:[%s273 + $0x10] sm:$0xff]
      %v324 = vld [vmem:[%s273 + $0x18] sm:$0xff]
      %v325 = vld [vmem:[%s273 + $0x20] sm:$0xff]
      %v326 = vld [vmem:[%s273 + $0x28] sm:$0xff]
      %v327 = vld [vmem:[%s273 + $0x30] sm:$0xff]
      %v328 = vld [vmem:[%s273 + $0x38] sm:$0xff]
      %329 = vst [vmem:[#allocation4] sm:$0xff] %v321
      %330 = vst [vmem:[#allocation4 + $0x8] sm:$0xff] %v322
      %331 = vst [vmem:[#allocation4 + $0x10] sm:$0xff] %v323
      %332 = vst [vmem:[#allocation4 + $0x18] sm:$0xff] %v324
      %333 = vst [vmem:[#allocation4 + $0x20] sm:$0xff] %v325
      %334 = vst [vmem:[#allocation4 + $0x28] sm:$0xff] %v326
      %335 = vst [vmem:[#allocation4 + $0x30] sm:$0xff] %v327
      %336 = vst [vmem:[#allocation4 + $0x38] sm:$0xff] %v328
      %v337 = vld [vmem:[#allocation4] sm:$0xff]
      %v338 = vld [vmem:[#allocation4 + $0x8] sm:$0xff]
      %v339 = vld [vmem:[#allocation4 + $0x10] sm:$0xff]
      %v340 = vld [vmem:[#allocation4 + $0x18] sm:$0xff]
      %v341 = vld [vmem:[#allocation4 + $0x20] sm:$0xff]
      %v342 = vld [vmem:[#allocation4 + $0x28] sm:$0xff]
      %v343 = vld [vmem:[#allocation4 + $0x30] sm:$0xff]
      %v344 = vld [vmem:[#allocation4 + $0x38] sm:$0xff]
      %v345 = vpack.c.bf16 %v339, %v337
      %v346 = vpack.c.bf16 %v340, %v338
      %v347 = vpack.c.bf16 %v343, %v341
      %v348 = vpack.c.bf16 %v344, %v342
      %349 = vst [vmem:[#allocation2 + $0x8] sm:$0xff] %v345
      %350 = vst [vmem:[#allocation2 + $0x10] sm:$0xff] %v346
      %351 = vst [vmem:[#allocation2 + $0x28] sm:$0xff] %v347
      %352 = vst [vmem:[#allocation2 + $0x30] sm:$0xff] %v348
      %v353 = vld [vmem:[#allocation2] sm:$0xff]
      %v354 = vld [vmem:[#allocation2 + $0x8] sm:$0xff]
      %v355 = vld [vmem:[#allocation2 + $0x10] sm:$0xff]
      %v356 = vld [vmem:[#allocation2 + $0x20] sm:$0xff]
      %v357 = vld [vmem:[#allocation2 + $0x28] sm:$0xff]
      %v358 = vld [vmem:[#allocation2 + $0x30] sm:$0xff]
      %v359 = vsel %vm309, 1, 0
      %v360 = vsel %vm310, 1, 0
      %vm361 = vcmp.eq.s32.totalorder %v359, 1
      %vm362 = vcmp.eq.s32.totalorder %v360, 1
      %vm363 = vmpackc.low %vm362, %vm361
      %v364 = vsel %vm363, 65537, 0
      %v365 = vlaneseq
      %v366 = vshrl.u32 %v365, 7
      %v367 = vsub.s32 0, %v366
      %v368 = vrot.slane %v364, %v367
      %v369 = vlaneseq
      %v370 = vshrl.u32 %v369, 7
      %v371 = vsub.s32 4, %v370
      %v372 = vrot.slane %v364, %v371
      %373 = vrot.lane.b32.xlu0 %v368, 111
      %v374 = vpop.permute.xlu0 %373
      %375 = vrot.lane.b32.xlu0 %v372, 111
      %v376 = vpop.permute.xlu0 %375
      %vm377 = vcmask 908288
      %v378 = vsel %vm377, %v374, %v376
      %vm379 = vcmp.ne.s16.totalorder %v374, 0
      %vm380 = vcmp.ne.s16.totalorder %v378, 0
      %vm381 = vcmp.ne.s16.totalorder %v376, 0
      %v382 = vsel %vm379, %v353, 0
      %v383 = vsel %vm380, %v354, 0
      %v384 = vsel %vm381, %v355, 0
      %v385 = vsel %vm379, %v356, 0
      %v386 = vsel %vm380, %v357, 0
      %v387 = vsel %vm381, %v358, 0
      %394 = vrot.lane.b32.xlu0 %v382, 17
      %v395 = vpop.permute.xlu0 %394
      %396 = vrot.lane.b32.xlu0 %v383, 17
      %v397 = vpop.permute.xlu0 %396
      %398 = vrot.lane.b32.xlu0 %v384, 17
      %v399 = vpop.permute.xlu0 %398
      %400 = vrot.lane.b32.xlu0 %v385, 17
      %v401 = vpop.permute.xlu0 %400
      %402 = vrot.lane.b32.xlu0 %v386, 17
      %v403 = vpop.permute.xlu0 %402
      %404 = vrot.lane.b32.xlu0 %v387, 17
      %v405 = vpop.permute.xlu0 %404
      %vm406 = vcmask 138240
      %v407 = vsel %vm406, %v395, %v397
      %v408 = vsel %vm406, %v397, %v399
      %v409 = vsel %vm406, %v401, %v403
      %v410 = vsel %vm406, %v403, %v405
      %415 = vst [vmem:[#allocation3] sm:$0xff] %v407
      %416 = vst [vmem:[#allocation3 + $0x8] sm:$0xff] %v408
      %417 = vst [vmem:[#allocation3 + $0x10] sm:$0xff] %v409
      %418 = vst [vmem:[#allocation3 + $0x18] sm:$0xff] %v410
      %v419 = vld [vmem:[#allocation2] sm:$0xff]
      %v420 = vld [vmem:[#allocation2 + $0x8] sm:$0xff]
      %v421 = vld [vmem:[#allocation2 + $0x10] sm:$0xff]
      %v422 = vld [vmem:[#allocation2 + $0x20] sm:$0xff]
      %v423 = vld [vmem:[#allocation2 + $0x28] sm:$0xff]
      %v424 = vld [vmem:[#allocation2 + $0x30] sm:$0xff]
      %431 = vrot.lane.b32.xlu0 %v419, 16
      %v432 = vpop.permute.xlu0 %431
      %433 = vrot.lane.b32.xlu0 %v420, 16
      %v434 = vpop.permute.xlu0 %433
      %435 = vrot.lane.b32.xlu0 %v421, 16
      %v436 = vpop.permute.xlu0 %435
      %437 = vrot.lane.b32.xlu0 %v422, 16
      %v438 = vpop.permute.xlu0 %437
      %439 = vrot.lane.b32.xlu0 %v423, 16
      %v440 = vpop.permute.xlu0 %439
      %441 = vrot.lane.b32.xlu0 %v424, 16
      %v442 = vpop.permute.xlu0 %441
      %vm443 = vcmask 130048
      %v444 = vsel %vm443, %v432, %v434
      %v445 = vsel %vm443, %v434, %v436
      %v446 = vsel %vm443, %v438, %v440
      %v447 = vsel %vm443, %v440, %v442
      %452 = vst [vmem:[#allocation3 + $0x20] sm:$0xff] %v444
      %453 = vst [vmem:[#allocation3 + $0x28] sm:$0xff] %v445
      %454 = vst [vmem:[#allocation3 + $0x30] sm:$0xff] %v446
      %455 = vst [vmem:[#allocation3 + $0x38] sm:$0xff] %v447
      %v456 = vld [vmem:[#allocation2] sm:$0xff]
      %v457 = vld [vmem:[#allocation2 + $0x8] sm:$0xff]
      %v458 = vld [vmem:[#allocation2 + $0x10] sm:$0xff]
      %v459 = vld [vmem:[#allocation2 + $0x20] sm:$0xff]
      %v460 = vld [vmem:[#allocation2 + $0x28] sm:$0xff]
      %v461 = vld [vmem:[#allocation2 + $0x30] sm:$0xff]
      %v462 = vsel %vm311, 1, 0
      %v463 = vsel %vm312, 1, 0
      %vm464 = vcmp.eq.s32.totalorder %v462, 1
      %vm465 = vcmp.eq.s32.totalorder %v463, 1
      %vm466 = vmpackc.low %vm465, %vm464
      %v467 = vsel %vm466, 65537, 0
      %v468 = vlaneseq
      %v469 = vshrl.u32 %v468, 7
      %v470 = vsub.s32 0, %v469
      %v471 = vrot.slane %v467, %v470
      %v472 = vlaneseq
      %v473 = vshrl.u32 %v472, 7
      %v474 = vsub.s32 4, %v473
      %v475 = vrot.slane %v467, %v474
      %476 = vrot.lane.b32.xlu0 %v471, 113
      %v477 = vpop.permute.xlu0 %476
      %478 = vrot.lane.b32.xlu0 %v475, 113
      %v479 = vpop.permute.xlu0 %478
      %vm480 = vcmask 924672
      %v481 = vsel %vm480, %v477, %v479
      %vm482 = vcmp.ne.s16.totalorder %v477, 0
      %vm483 = vcmp.ne.s16.totalorder %v481, 0
      %vm484 = vcmp.ne.s16.totalorder %v479, 0
      %v485 = vsel %vm482, %v456, 0
      %v486 = vsel %vm483, %v457, 0
      %v487 = vsel %vm484, %v458, 0
      %v488 = vsel %vm482, %v459, 0
      %v489 = vsel %vm483, %v460, 0
      %v490 = vsel %vm484, %v461, 0
      %497 = vrot.lane.b32.xlu0 %v485, 15
      %v498 = vpop.permute.xlu0 %497
      %499 = vrot.lane.b32.xlu0 %v486, 15
      %v500 = vpop.permute.xlu0 %499
      %501 = vrot.lane.b32.xlu0 %v487, 15
      %v502 = vpop.permute.xlu0 %501
      %503 = vrot.lane.b32.xlu0 %v488, 15
      %v504 = vpop.permute.xlu0 %503
      %505 = vrot.lane.b32.xlu0 %v489, 15
      %v506 = vpop.permute.xlu0 %505
      %507 = vrot.lane.b32.xlu0 %v490, 15
      %v508 = vpop.permute.xlu0 %507
      %vm509 = vcmask 121856
      %v510 = vsel %vm509, %v498, %v500
      %v511 = vsel %vm509, %v500, %v502
      %v512 = vsel %vm509, %v504, %v506
      %v513 = vsel %vm509, %v506, %v508
      %518 = vst [vmem:[#allocation3 + $0x40] sm:$0xff] %v510
      %519 = vst [vmem:[#allocation3 + $0x48] sm:$0xff] %v511
      %520 = vst [vmem:[#allocation3 + $0x50] sm:$0xff] %v512
      %521 = vst [vmem:[#allocation3 + $0x58] sm:$0xff] %v513
      %v522 = vld [vmem:[#allocation2] sm:$0xff]
      %v523 = vld [vmem:[#allocation2 + $0x8] sm:$0xff]
      %v524 = vld [vmem:[#allocation2 + $0x10] sm:$0xff]
      %v525 = vld [vmem:[#allocation2 + $0x20] sm:$0xff]
      %v526 = vld [vmem:[#allocation2 + $0x28] sm:$0xff]
      %v527 = vld [vmem:[#allocation2 + $0x30] sm:$0xff]
      %528 = vrot.lane.b32.xlu0 %v368, 127
      %v529 = vpop.permute.xlu0 %528
      %530 = vrot.lane.b32.xlu0 %v372, 127
      %v531 = vpop.permute.xlu0 %530
      %vm532 = vcmask 1039360
      %v533 = vsel %vm532, %v529, %v531
      %vm534 = vcmp.ne.s16.totalorder %v529, 0
      %vm535 = vcmp.ne.s16.totalorder %v533, 0
      %vm536 = vcmp.ne.s16.totalorder %v531, 0
      %v537 = vsel %vm534, %v522, 0
      %v538 = vsel %vm535, %v523, 0
      %v539 = vsel %vm536, %v524, 0
      %v540 = vsel %vm534, %v525, 0
      %v541 = vsel %vm535, %v526, 0
      %v542 = vsel %vm536, %v527, 0
      %549 = vrot.lane.b32.xlu0 %v537, 1
      %v550 = vpop.permute.xlu0 %549
      %551 = vrot.lane.b32.xlu0 %v538, 1
      %v552 = vpop.permute.xlu0 %551
      %553 = vrot.lane.b32.xlu0 %v539, 1
      %v554 = vpop.permute.xlu0 %553
      %555 = vrot.lane.b32.xlu0 %v540, 1
      %v556 = vpop.permute.xlu0 %555
      %557 = vrot.lane.b32.xlu0 %v541, 1
      %v558 = vpop.permute.xlu0 %557
      %559 = vrot.lane.b32.xlu0 %v542, 1
      %v560 = vpop.permute.xlu0 %559
      %vm561 = vcmask 7168
      %v562 = vsel %vm561, %v550, %v552
      %v563 = vsel %vm561, %v552, %v554
      %v564 = vsel %vm561, %v556, %v558
      %v565 = vsel %vm561, %v558, %v560
      %570 = vst [vmem:[#allocation3 + $0x60] sm:$0xff] %v562
      %571 = vst [vmem:[#allocation3 + $0x68] sm:$0xff] %v563
      %572 = vst [vmem:[#allocation3 + $0x70] sm:$0xff] %v564
      %573 = vst [vmem:[#allocation3 + $0x78] sm:$0xff] %v565
      %v574 = vld [vmem:[#allocation2 + $0x8] sm:$0xff]
      %v575 = vld [vmem:[#allocation2 + $0x10] sm:$0xff]
      %v576 = vld [vmem:[#allocation2 + $0x28] sm:$0xff]
      %v577 = vld [vmem:[#allocation2 + $0x30] sm:$0xff]
      %578 = vst [vmem:[#allocation3 + $0x80] sm:$0xff] %v574
      %579 = vst [vmem:[#allocation3 + $0x88] sm:$0xff] %v575
      %580 = vst [vmem:[#allocation3 + $0x90] sm:$0xff] %v576
      %581 = vst [vmem:[#allocation3 + $0x98] sm:$0xff] %v577
      %v582 = vld [vmem:[#allocation2 + $0x8] sm:$0xff]
      %v583 = vld [vmem:[#allocation2 + $0x10] sm:$0xff]
      %v584 = vld [vmem:[#allocation2 + $0x18] sm:$0xff]
      %v585 = vld [vmem:[#allocation2 + $0x28] sm:$0xff]
      %v586 = vld [vmem:[#allocation2 + $0x30] sm:$0xff]
      %v587 = vld [vmem:[#allocation2 + $0x38] sm:$0xff]
      %588 = vrot.lane.b32.xlu0 %v471, 1
      %v589 = vpop.permute.xlu0 %588
      %590 = vrot.lane.b32.xlu0 %v475, 1
      %v591 = vpop.permute.xlu0 %590
      %v592 = vsel %vm561, %v589, %v591
      %vm593 = vcmp.ne.s16.totalorder %v589, 0
      %vm594 = vcmp.ne.s16.totalorder %v592, 0
      %vm595 = vcmp.ne.s16.totalorder %v591, 0
      %v596 = vsel %vm593, %v582, 0
      %v597 = vsel %vm594, %v583, 0
      %v598 = vsel %vm595, %v584, 0
      %v599 = vsel %vm593, %v585, 0
      %v600 = vsel %vm594, %v586, 0
      %v601 = vsel %vm595, %v587, 0
      %608 = vrot.lane.b32.xlu0 %v596, 127
      %v609 = vpop.permute.xlu0 %608
      %610 = vrot.lane.b32.xlu0 %v597, 127
      %v611 = vpop.permute.xlu0 %610
      %612 = vrot.lane.b32.xlu0 %v598, 127
      %v613 = vpop.permute.xlu0 %612
      %614 = vrot.lane.b32.xlu0 %v599, 127
      %v615 = vpop.permute.xlu0 %614
      %616 = vrot.lane.b32.xlu0 %v600, 127
      %v617 = vpop.permute.xlu0 %616
      %618 = vrot.lane.b32.xlu0 %v601, 127
      %v619 = vpop.permute.xlu0 %618
      %v620 = vsel %vm532, %v609, %v611
      %v621 = vsel %vm532, %v611, %v613
      %v622 = vsel %vm532, %v615, %v617
      %v623 = vsel %vm532, %v617, %v619
      %628 = vst [vmem:[#allocation3 + $0xa0] sm:$0xff] %v620
      %629 = vst [vmem:[#allocation3 + $0xa8] sm:$0xff] %v621
      %630 = vst [vmem:[#allocation3 + $0xb0] sm:$0xff] %v622
      %631 = vst [vmem:[#allocation3 + $0xb8] sm:$0xff] %v623
      %v632 = vld [vmem:[#allocation2 + $0x8] sm:$0xff]
      %v633 = vld [vmem:[#allocation2 + $0x10] sm:$0xff]
      %v634 = vld [vmem:[#allocation2 + $0x18] sm:$0xff]
      %v635 = vld [vmem:[#allocation2 + $0x28] sm:$0xff]
      %v636 = vld [vmem:[#allocation2 + $0x30] sm:$0xff]
      %v637 = vld [vmem:[#allocation2 + $0x38] sm:$0xff]
      %638 = vrot.lane.b32.xlu0 %v368, 15
      %v639 = vpop.permute.xlu0 %638
      %640 = vrot.lane.b32.xlu0 %v372, 15
      %v641 = vpop.permute.xlu0 %640
      %v642 = vsel %vm509, %v639, %v641
      %vm643 = vcmp.ne.s16.totalorder %v639, 0
      %vm644 = vcmp.ne.s16.totalorder %v642, 0
      %vm645 = vcmp.ne.s16.totalorder %v641, 0
      %v646 = vsel %vm643, %v632, 0
      %v647 = vsel %vm644, %v633, 0
      %v648 = vsel %vm645, %v634, 0
      %v649 = vsel %vm643, %v635, 0
      %v650 = vsel %vm644, %v636, 0
      %v651 = vsel %vm645, %v637, 0
      %658 = vrot.lane.b32.xlu0 %v646, 113
      %v659 = vpop.permute.xlu0 %658
      %660 = vrot.lane.b32.xlu0 %v647, 113
      %v661 = vpop.permute.xlu0 %660
      %662 = vrot.lane.b32.xlu0 %v648, 113
      %v663 = vpop.permute.xlu0 %662
      %664 = vrot.lane.b32.xlu0 %v649, 113
      %v665 = vpop.permute.xlu0 %664
      %666 = vrot.lane.b32.xlu0 %v650, 113
      %v667 = vpop.permute.xlu0 %666
      %668 = vrot.lane.b32.xlu0 %v651, 113
      %v669 = vpop.permute.xlu0 %668
      %v670 = vsel %vm480, %v659, %v661
      %v671 = vsel %vm480, %v661, %v663
      %v672 = vsel %vm480, %v665, %v667
      %v673 = vsel %vm480, %v667, %v669
      %678 = vst [vmem:[#allocation3 + $0xc0] sm:$0xff] %v670
      %679 = vst [vmem:[#allocation3 + $0xc8] sm:$0xff] %v671
      %680 = vst [vmem:[#allocation3 + $0xd0] sm:$0xff] %v672
      %681 = vst [vmem:[#allocation3 + $0xd8] sm:$0xff] %v673
      %v682 = vld [vmem:[#allocation2 + $0x8] sm:$0xff]
      %v683 = vld [vmem:[#allocation2 + $0x10] sm:$0xff]
      %v684 = vld [vmem:[#allocation2 + $0x18] sm:$0xff]
      %v685 = vld [vmem:[#allocation2 + $0x28] sm:$0xff]
      %v686 = vld [vmem:[#allocation2 + $0x30] sm:$0xff]
      %v687 = vld [vmem:[#allocation2 + $0x38] sm:$0xff]
      %694 = vrot.lane.b32.xlu0 %v682, 112
      %v695 = vpop.permute.xlu0 %694
      %696 = vrot.lane.b32.xlu0 %v683, 112
      %v697 = vpop.permute.xlu0 %696
      %698 = vrot.lane.b32.xlu0 %v684, 112
      %v699 = vpop.permute.xlu0 %698
      %700 = vrot.lane.b32.xlu0 %v685, 112
      %v701 = vpop.permute.xlu0 %700
      %702 = vrot.lane.b32.xlu0 %v686, 112
      %v703 = vpop.permute.xlu0 %702
      %704 = vrot.lane.b32.xlu0 %v687, 112
      %v705 = vpop.permute.xlu0 %704
      %vm706 = vcmask 916480
      %v707 = vsel %vm706, %v695, %v697
      %v708 = vsel %vm706, %v697, %v699
      %v709 = vsel %vm706, %v701, %v703
      %v710 = vsel %vm706, %v703, %v705
      %715 = vst [vmem:[#allocation3 + $0xe0] sm:$0xff] %v707
      %716 = vst [vmem:[#allocation3 + $0xe8] sm:$0xff] %v708
      %717 = vst [vmem:[#allocation3 + $0xf0] sm:$0xff] %v709
      %718 = vst [vmem:[#allocation3 + $0xf8] sm:$0xff] %v710
      %v719 = vld [vmem:[#allocation2 + $0x8] sm:$0xff]
      %v720 = vld [vmem:[#allocation2 + $0x10] sm:$0xff]
      %v721 = vld [vmem:[#allocation2 + $0x18] sm:$0xff]
      %v722 = vld [vmem:[#allocation2 + $0x28] sm:$0xff]
      %v723 = vld [vmem:[#allocation2 + $0x30] sm:$0xff]
      %v724 = vld [vmem:[#allocation2 + $0x38] sm:$0xff]
      %725 = vrot.lane.b32.xlu0 %v471, 17
      %v726 = vpop.permute.xlu0 %725
      %727 = vrot.lane.b32.xlu0 %v475, 17
      %v728 = vpop.permute.xlu0 %727
      %v729 = vsel %vm406, %v726, %v728
      %vm730 = vcmp.ne.s16.totalorder %v726, 0
      %vm731 = vcmp.ne.s16.totalorder %v729, 0
      %vm732 = vcmp.ne.s16.totalorder %v728, 0
      %v733 = vsel %vm730, %v719, 0
      %v734 = vsel %vm731, %v720, 0
      %v735 = vsel %vm732, %v721, 0
      %v736 = vsel %vm730, %v722, 0
      %v737 = vsel %vm731, %v723, 0
      %v738 = vsel %vm732, %v724, 0
      %745 = vrot.lane.b32.xlu0 %v733, 111
      %v746 = vpop.permute.xlu0 %745
      %747 = vrot.lane.b32.xlu0 %v734, 111
      %v748 = vpop.permute.xlu0 %747
      %749 = vrot.lane.b32.xlu0 %v735, 111
      %v750 = vpop.permute.xlu0 %749
      %751 = vrot.lane.b32.xlu0 %v736, 111
      %v752 = vpop.permute.xlu0 %751
      %753 = vrot.lane.b32.xlu0 %v737, 111
      %v754 = vpop.permute.xlu0 %753
      %755 = vrot.lane.b32.xlu0 %v738, 111
      %v756 = vpop.permute.xlu0 %755
      %v757 = vsel %vm377, %v746, %v748
      %v758 = vsel %vm377, %v748, %v750
      %v759 = vsel %vm377, %v752, %v754
      %v760 = vsel %vm377, %v754, %v756
      %765 = vst [vmem:[#allocation3 + $0x100] sm:$0xff] %v757
      %766 = vst [vmem:[#allocation3 + $0x108] sm:$0xff] %v758
      %767 = vst [vmem:[#allocation3 + $0x110] sm:$0xff] %v759
      %768 = vst [vmem:[#allocation3 + $0x118] sm:$0xff] %v760
      %v769 = vld [vmem:[%s1] sm:$0xff]
      %v770 = vld [vmem:[%s1 + $0x8] sm:$0xf]
      %v771 = vld [vmem:[%s1 + $0xc] sm:$0xff]
      %v772 = vld [vmem:[%s1 + $0x14] sm:$0xf]
      %v773 = vld [vmem:[%s1 + $0x18] sm:$0xff]
      %v774 = vld [vmem:[%s1 + $0x20] sm:$0xf]
      %v775 = vld [vmem:[%s1 + $0x24] sm:$0xff]
      %v776 = vld [vmem:[%s1 + $0x2c] sm:$0xf]
      %v777 = vld [vmem:[#allocation3] sm:$0xff]
      %v778 = vld [vmem:[#allocation3 + $0x8] sm:$0xff]
      %v779 = vld [vmem:[#allocation3 + $0x10] sm:$0xff]
      %v780 = vld [vmem:[#allocation3 + $0x18] sm:$0xff]
      %v781 = vld [vmem:[#allocation3 + $0x20] sm:$0xff]
      %v782 = vld [vmem:[#allocation3 + $0x28] sm:$0xff]
      %v783 = vld [vmem:[#allocation3 + $0x30] sm:$0xff]
      %v784 = vld [vmem:[#allocation3 + $0x38] sm:$0xff]
      %v785 = vld [vmem:[#allocation3 + $0x40] sm:$0xff]
      %v786 = vld [vmem:[#allocation3 + $0x48] sm:$0xff]
      %v787 = vld [vmem:[#allocation3 + $0x50] sm:$0xff]
      %v788 = vld [vmem:[#allocation3 + $0x58] sm:$0xff]
      %v789 = vld [vmem:[#allocation3 + $0x60] sm:$0xff]
      %v790 = vld [vmem:[#allocation3 + $0x68] sm:$0xff]
      %v791 = vld [vmem:[#allocation3 + $0x70] sm:$0xff]
      %v792 = vld [vmem:[#allocation3 + $0x78] sm:$0xff]
      %v793 = vld [vmem:[#allocation3 + $0x80] sm:$0xff]
      %v794 = vld [vmem:[#allocation3 + $0x88] sm:$0xff]
      %v795 = vld [vmem:[#allocation3 + $0x90] sm:$0xff]
      %v796 = vld [vmem:[#allocation3 + $0x98] sm:$0xff]
      %v797 = vld [vmem:[#allocation3 + $0xa0] sm:$0xff]
      %v798 = vld [vmem:[#allocation3 + $0xa8] sm:$0xff]
      %v799 = vld [vmem:[#allocation3 + $0xb0] sm:$0xff]
      %v800 = vld [vmem:[#allocation3 + $0xb8] sm:$0xff]
      %v801 = vld [vmem:[#allocation3 + $0xc0] sm:$0xff]
      %v802 = vld [vmem:[#allocation3 + $0xc8] sm:$0xff]
      %v803 = vld [vmem:[#allocation3 + $0xd0] sm:$0xff]
      %v804 = vld [vmem:[#allocation3 + $0xd8] sm:$0xff]
      %v805 = vld [vmem:[#allocation3 + $0xe0] sm:$0xff]
      %v806 = vld [vmem:[#allocation3 + $0xe8] sm:$0xff]
      %v807 = vld [vmem:[#allocation3 + $0xf0] sm:$0xff]
      %v808 = vld [vmem:[#allocation3 + $0xf8] sm:$0xff]
      %v809 = vld [vmem:[#allocation3 + $0x100] sm:$0xff]
      %v810 = vld [vmem:[#allocation3 + $0x108] sm:$0xff]
      %v811 = vld [vmem:[#allocation3 + $0x110] sm:$0xff]
      %v812 = vld [vmem:[#allocation3 + $0x118] sm:$0xff]
      %v813 = vld [vmem:[%s2] sm:$0xff]
      %v814 = vld [vmem:[%s2 + $0x8] sm:$0xff]
      %v815 = vld [vmem:[%s2 + $0x10] sm:$0xff]
      %v816 = vld [vmem:[%s2 + $0x18] sm:$0xff]
      %818 = vset.pattern.permute.xlu0 0
      %819 = vperm.xlu0 %818, %v813
      %v820 = vpop.permute.xlu0 %819
      %823 = vset.pattern.permute.xlu0 0
      %824 = vperm.xlu0 %823, %v814
      %v825 = vpop.permute.xlu0 %824
      %828 = vset.pattern.permute.xlu0 0
      %829 = vperm.xlu0 %828, %v815
      %v830 = vpop.permute.xlu0 %829
      %833 = vset.pattern.permute.xlu0 0
      %834 = vperm.xlu0 %833, %v816
      %v835 = vpop.permute.xlu0 %834
      %v845 = vunpack.c.l.b16 %v769
      %v846 = vunpack.c.h.b16 %v769
      %v847 = vunpack.c.l.b16 %v770
      %v848 = vunpack.c.l.b16 %v771
      %v849 = vunpack.c.h.b16 %v771
      %v850 = vunpack.c.l.b16 %v772
      %v851 = vunpack.c.l.b16 %v773
      %v852 = vunpack.c.h.b16 %v773
      %v853 = vunpack.c.l.b16 %v774
      %v854 = vunpack.c.l.b16 %v775
      %v855 = vunpack.c.h.b16 %v775
      %v856 = vunpack.c.l.b16 %v776
      %v857 = vpack.c.b16 %v848, %v845
      %v858 = vpack.c.b16 %v849, %v846
      %v859 = vpack.c.b16 %v850, %v847
      %v860 = vpack.c.b16 %v854, %v851
      %v861 = vpack.c.b16 %v855, %v852
      %v862 = vpack.c.b16 %v856, %v853
      %vm867 = vcmask 261120
      %v869 = vsel %vm867, %v859, 0
      %v872 = vsel %vm867, %v862, 0
      %874 = vmatprep.subr.bf16.mxu0 %v778
      %875 = vmatpush1.bf16.msra.mxu0 %v777
      %876 = vmatprep.subr.bf16.mxu0 %v780
      %877 = vmatpush1.bf16.msra.mxu0 %v779
      %878 = vmatprep.subr.bf16.mxu0 %v782
      %879 = vmatpush1.bf16.msra.mxu0 %v781
      %880 = vmatprep.subr.bf16.mxu0 %v784
      %881 = vmatpush1.bf16.msra.mxu0 %v783
      %882 = vmatprep.subr.bf16.mxu0 %v786
      %883 = vmatpush1.bf16.msra.mxu0 %v785
      %884 = vmatprep.subr.bf16.mxu0 %v788
      %885 = vmatpush1.bf16.msra.mxu0 %v787
      %886 = vmatprep.subr.bf16.mxu0 %v790
      %887 = vmatpush1.bf16.msra.mxu0 %v789
      %888 = vmatprep.subr.bf16.mxu0 %v792
      %889 = vmatpush1.bf16.msra.mxu0 %v791
      %890 = vmatprep.subr.bf16.mxu0 %v794
      %891 = vmatpush1.bf16.msra.mxu0 %v793
      %892 = vmatprep.subr.bf16.mxu0 %v796
      %893 = vmatpush1.bf16.msra.mxu0 %v795
      %894 = vmatprep.subr.bf16.mxu0 %v798
      %895 = vmatpush1.bf16.msra.mxu0 %v797
      %896 = vmatprep.subr.bf16.mxu0 %v800
      %897 = vmatpush1.bf16.msra.mxu0 %v799
      %898 = vmatprep.subr.bf16.mxu0 %v802
      %899 = vmatpush1.bf16.msra.mxu0 %v801
      %900 = vmatprep.subr.bf16.mxu0 %v804
      %901 = vmatpush1.bf16.msra.mxu0 %v803
      %902 = vmatprep.subr.bf16.mxu0 %v806
      %903 = vmatpush1.bf16.msra.mxu0 %v805
      %904 = vmatprep.subr.bf16.mxu0 %v808
      %905 = vmatpush1.bf16.msra.mxu0 %v807
      %906 = vmatprep.mubr.bf16.mxu0 %v858
      %907 = vmatmul.mubr.bf16.gmra.mrb[0].mxu0 %v857
      %v908 = vpop.f32.mrb[0].mxu0
      %v909 = vadd.f32 %v820, %v908
      %v910 = vpop.f32.mrb[0].mxu0
      %v911 = vadd.f32 %v820, %v910
      %v912 = vpop.f32.mrb[0].mxu0
      %v913 = vadd.f32 %v825, %v912
      %v914 = vpop.f32.mrb[0].mxu0
      %v915 = vadd.f32 %v825, %v914
      %916 = vmatprep.mubr.bf16.mxu0 %v861
      %917 = vmatmul.mubr.bf16.gmra.mrb[0].mxu0 %v860
      %v918 = vpop.f32.mrb[0].mxu0
      %v919 = vadd.f32 %v830, %v918
      %v920 = vpop.f32.mrb[0].mxu0
      %v921 = vadd.f32 %v830, %v920
      %v922 = vpop.f32.mrb[0].mxu0
      %v923 = vadd.f32 %v835, %v922
      %v924 = vpop.f32.mrb[0].mxu0
      %v925 = vadd.f32 %v835, %v924
      %926 = vdwg.mxu0
      %927 = vmatprep.subr.bf16.mxu0 %v810
      %928 = vmatpush1.bf16.msra.mxu0 %v809
      %929 = vmatprep.subr.bf16.mxu0 %v812
      %930 = vmatpush1.bf16.msra.mxu0 %v811
      %931 = vmatprep.subr.bf16.mxu0 0
      %932 = vmatpush1.bf16.msra.mxu0 0
      %933 = vmatprep.subr.bf16.mxu0 0
      %934 = vmatpush1.bf16.msra.mxu0 0
      %935 = vmatprep.subr.bf16.mxu0 0
      %936 = vmatpush1.bf16.msra.mxu0 0
      %937 = vmatprep.subr.bf16.mxu0 0
      %938 = vmatpush1.bf16.msra.mxu0 0
      %939 = vmatprep.subr.bf16.mxu0 0
      %940 = vmatpush1.bf16.msra.mxu0 0
      %941 = vmatprep.subr.bf16.mxu0 0
      %942 = vmatpush1.bf16.msra.mxu0 0
      %943 = vmatprep.subr.bf16.mxu0 0
      %944 = vmatpush1.bf16.msra.mxu0 0
      %945 = vmatprep.subr.bf16.mxu0 0
      %946 = vmatpush1.bf16.msra.mxu0 0
      %947 = vmatprep.subr.bf16.mxu0 0
      %948 = vmatpush1.bf16.msra.mxu0 0
      %949 = vmatprep.subr.bf16.mxu0 0
      %950 = vmatpush1.bf16.msra.mxu0 0
      %951 = vmatprep.subr.bf16.mxu0 0
      %952 = vmatpush1.bf16.msra.mxu0 0
      %953 = vmatprep.subr.bf16.mxu0 0
      %954 = vmatpush1.bf16.msra.mxu0 0
      %955 = vmatprep.subr.bf16.mxu0 0
      %956 = vmatpush1.bf16.msra.mxu0 0
      %957 = vmatprep.subr.bf16.mxu0 0
      %958 = vmatpush1.bf16.msra.mxu0 0
      %959 = vmatprep.mubr.bf16.mxu0 0
      %960 = vmatmul.mubr.bf16.gmra.mrb[0].mxu0 %v869
      %v961 = vpop.f32.mrb[0].mxu0
      %v962 = vadd.f32 %v909, %v961
      %v963 = vpop.f32.mrb[0].mxu0
      %v964 = vadd.f32 %v911, %v963
      %v965 = vpop.f32.mrb[0].mxu0
      %v966 = vadd.f32 %v913, %v965
      %v967 = vpop.f32.mrb[0].mxu0
      %v968 = vadd.f32 %v915, %v967
      %969 = vmatprep.mubr.bf16.mxu0 0
      %970 = vmatmul.mubr.bf16.gmra.mrb[0].mxu0 %v872
      %v971 = vpop.f32.mrb[0].mxu0
      %v972 = vadd.f32 %v919, %v971
      %v973 = vpop.f32.mrb[0].mxu0
      %v974 = vadd.f32 %v921, %v973
      %v975 = vpop.f32.mrb[0].mxu0
      %v976 = vadd.f32 %v923, %v975
      %v977 = vpop.f32.mrb[0].mxu0
      %v978 = vadd.f32 %v925, %v977
      %979 = vdwg.mxu0
      %v980 = vmax.f32 %v962, 0.0
      %v981 = vmax.f32 %v964, 0.0
      %v982 = vmax.f32 %v966, 0.0
      %v983 = vmax.f32 %v968, 0.0
      %v984 = vmax.f32 %v972, 0.0
      %v985 = vmax.f32 %v974, 0.0
      %v986 = vmax.f32 %v976, 0.0
      %v987 = vmax.f32 %v978, 0.0
      %v988 = vpack.c.bf16 %v982, %v980
      %v989 = vpack.c.bf16 %v983, %v981
      %v990 = vpack.c.bf16 %v986, %v984
      %v991 = vpack.c.bf16 %v987, %v985
      %992 = vst [vmem:[#allocation2 + $0x8] sm:$0xff] %v988
      %993 = vst [vmem:[#allocation2 + $0x10] sm:$0xff] %v989
      %994 = vst [vmem:[#allocation2 + $0x28] sm:$0xff] %v990
      %995 = vst [vmem:[#allocation2 + $0x30] sm:$0xff] %v991
      %v996 = vld [vmem:[#allocation2] sm:$0xff]
      %v997 = vld [vmem:[#allocation2 + $0x8] sm:$0xff]
      %v998 = vld [vmem:[#allocation2 + $0x10] sm:$0xff]
      %v999 = vld [vmem:[#allocation2 + $0x20] sm:$0xff]
      %v1000 = vld [vmem:[#allocation2 + $0x28] sm:$0xff]
      %v1001 = vld [vmem:[#allocation2 + $0x30] sm:$0xff]
      %v1002 = vsel %vm379, %v996, 0
      %v1003 = vsel %vm380, %v997, 0
      %v1004 = vsel %vm381, %v998, 0
      %v1005 = vsel %vm379, %v999, 0
      %v1006 = vsel %vm380, %v1000, 0
      %v1007 = vsel %vm381, %v1001, 0
      %1014 = vrot.lane.b32.xlu0 %v1002, 17
      %v1015 = vpop.permute.xlu0 %1014
      %1016 = vrot.lane.b32.xlu0 %v1003, 17
      %v1017 = vpop.permute.xlu0 %1016
      %1018 = vrot.lane.b32.xlu0 %v1004, 17
      %v1019 = vpop.permute.xlu0 %1018
      %1020 = vrot.lane.b32.xlu0 %v1005, 17
      %v1021 = vpop.permute.xlu0 %1020
      %1022 = vrot.lane.b32.xlu0 %v1006, 17
      %v1023 = vpop.permute.xlu0 %1022
      %1024 = vrot.lane.b32.xlu0 %v1007, 17
      %v1025 = vpop.permute.xlu0 %1024
      %v1026 = vsel %vm406, %v1015, %v1017
      %v1027 = vsel %vm406, %v1017, %v1019
      %v1028 = vsel %vm406, %v1021, %v1023
      %v1029 = vsel %vm406, %v1023, %v1025
      %1034 = vst [vmem:[#allocation3] sm:$0xff] %v1026
      %1035 = vst [vmem:[#allocation3 + $0x8] sm:$0xff] %v1027
      %1036 = vst [vmem:[#allocation3 + $0x10] sm:$0xff] %v1028
      %1037 = vst [vmem:[#allocation3 + $0x18] sm:$0xff] %v1029
      %v1038 = vld [vmem:[#allocation2] sm:$0xff]
      %v1039 = vld [vmem:[#allocation2 + $0x8] sm:$0xff]
      %v1040 = vld [vmem:[#allocation2 + $0x10] sm:$0xff]
      %v1041 = vld [vmem:[#allocation2 + $0x20] sm:$0xff]
      %v1042 = vld [vmem:[#allocation2 + $0x28] sm:$0xff]
      %v1043 = vld [vmem:[#allocation2 + $0x30] sm:$0xff]
      %1050 = vrot.lane.b32.xlu0 %v1038, 16
      %v1051 = vpop.permute.xlu0 %1050
      %1052 = vrot.lane.b32.xlu0 %v1039, 16
      %v1053 = vpop.permute.xlu0 %1052
      %1054 = vrot.lane.b32.xlu0 %v1040, 16
      %v1055 = vpop.permute.xlu0 %1054
      %1056 = vrot.lane.b32.xlu0 %v1041, 16
      %v1057 = vpop.permute.xlu0 %1056
      %1058 = vrot.lane.b32.xlu0 %v1042, 16
      %v1059 = vpop.permute.xlu0 %1058
      %1060 = vrot.lane.b32.xlu0 %v1043, 16
      %v1061 = vpop.permute.xlu0 %1060
      %v1062 = vsel %vm443, %v1051, %v1053
      %v1063 = vsel %vm443, %v1053, %v1055
      %v1064 = vsel %vm443, %v1057, %v1059
      %v1065 = vsel %vm443, %v1059, %v1061
      %1070 = vst [vmem:[#allocation3 + $0x20] sm:$0xff] %v1062
      %1071 = vst [vmem:[#allocation3 + $0x28] sm:$0xff] %v1063
      %1072 = vst [vmem:[#allocation3 + $0x30] sm:$0xff] %v1064
      %1073 = vst [vmem:[#allocation3 + $0x38] sm:$0xff] %v1065
      %v1074 = vld [vmem:[#allocation2] sm:$0xff]
      %v1075 = vld [vmem:[#allocation2 + $0x8] sm:$0xff]
      %v1076 = vld [vmem:[#allocation2 + $0x10] sm:$0xff]
      %v1077 = vld [vmem:[#allocation2 + $0x20] sm:$0xff]
      %v1078 = vld [vmem:[#allocation2 + $0x28] sm:$0xff]
      %v1079 = vld [vmem:[#allocation2 + $0x30] sm:$0xff]
      %v1080 = vsel %vm482, %v1074, 0
      %v1081 = vsel %vm483, %v1075, 0
      %v1082 = vsel %vm484, %v1076, 0
      %v1083 = vsel %vm482, %v1077, 0
      %v1084 = vsel %vm483, %v1078, 0
      %v1085 = vsel %vm484, %v1079, 0
      %1092 = vrot.lane.b32.xlu0 %v1080, 15
      %v1093 = vpop.permute.xlu0 %1092
      %1094 = vrot.lane.b32.xlu0 %v1081, 15
      %v1095 = vpop.permute.xlu0 %1094
      %1096 = vrot.lane.b32.xlu0 %v1082, 15
      %v1097 = vpop.permute.xlu0 %1096
      %1098 = vrot.lane.b32.xlu0 %v1083, 15
      %v1099 = vpop.permute.xlu0 %1098
      %1100 = vrot.lane.b32.xlu0 %v1084, 15
      %v1101 = vpop.permute.xlu0 %1100
      %1102 = vrot.lane.b32.xlu0 %v1085, 15
      %v1103 = vpop.permute.xlu0 %1102
      %v1104 = vsel %vm509, %v1093, %v1095
      %v1105 = vsel %vm509, %v1095, %v1097
      %v1106 = vsel %vm509, %v1099, %v1101
      %v1107 = vsel %vm509, %v1101, %v1103
      %1112 = vst [vmem:[#allocation3 + $0x40] sm:$0xff] %v1104
      %1113 = vst [vmem:[#allocation3 + $0x48] sm:$0xff] %v1105
      %1114 = vst [vmem:[#allocation3 + $0x50] sm:$0xff] %v1106
      %1115 = vst [vmem:[#allocation3 + $0x58] sm:$0xff] %v1107
      %v1116 = vld [vmem:[#allocation2] sm:$0xff]
      %v1117 = vld [vmem:[#allocation2 + $0x8] sm:$0xff]
      %v1118 = vld [vmem:[#allocation2 + $0x10] sm:$0xff]
      %v1119 = vld [vmem:[#allocation2 + $0x20] sm:$0xff]
      %v1120 = vld [vmem:[#allocation2 + $0x28] sm:$0xff]
      %v1121 = vld [vmem:[#allocation2 + $0x30] sm:$0xff]
      %v1122 = vsel %vm534, %v1116, 0
      %v1123 = vsel %vm535, %v1117, 0
      %v1124 = vsel %vm536, %v1118, 0
      %v1125 = vsel %vm534, %v1119, 0
      %v1126 = vsel %vm535, %v1120, 0
      %v1127 = vsel %vm536, %v1121, 0
      %1134 = vrot.lane.b32.xlu0 %v1122, 1
      %v1135 = vpop.permute.xlu0 %1134
      %1136 = vrot.lane.b32.xlu0 %v1123, 1
      %v1137 = vpop.permute.xlu0 %1136
      %1138 = vrot.lane.b32.xlu0 %v1124, 1
      %v1139 = vpop.permute.xlu0 %1138
      %1140 = vrot.lane.b32.xlu0 %v1125, 1
      %v1141 = vpop.permute.xlu0 %1140
      %1142 = vrot.lane.b32.xlu0 %v1126, 1
      %v1143 = vpop.permute.xlu0 %1142
      %1144 = vrot.lane.b32.xlu0 %v1127, 1
      %v1145 = vpop.permute.xlu0 %1144
      %v1146 = vsel %vm561, %v1135, %v1137
      %v1147 = vsel %vm561, %v1137, %v1139
      %v1148 = vsel %vm561, %v1141, %v1143
      %v1149 = vsel %vm561, %v1143, %v1145
      %1154 = vst [vmem:[#allocation3 + $0x60] sm:$0xff] %v1146
      %1155 = vst [vmem:[#allocation3 + $0x68] sm:$0xff] %v1147
      %1156 = vst [vmem:[#allocation3 + $0x70] sm:$0xff] %v1148
      %1157 = vst [vmem:[#allocation3 + $0x78] sm:$0xff] %v1149
      %v1158 = vld [vmem:[#allocation2 + $0x8] sm:$0xff]
      %v1159 = vld [vmem:[#allocation2 + $0x10] sm:$0xff]
      %v1160 = vld [vmem:[#allocation2 + $0x28] sm:$0xff]
      %v1161 = vld [vmem:[#allocation2 + $0x30] sm:$0xff]
      %1162 = vst [vmem:[#allocation3 + $0x80] sm:$0xff] %v1158
      %1163 = vst [vmem:[#allocation3 + $0x88] sm:$0xff] %v1159
      %1164 = vst [vmem:[#allocation3 + $0x90] sm:$0xff] %v1160
      %1165 = vst [vmem:[#allocation3 + $0x98] sm:$0xff] %v1161
      %v1166 = vld [vmem:[#allocation2 + $0x8] sm:$0xff]
      %v1167 = vld [vmem:[#allocation2 + $0x10] sm:$0xff]
      %v1168 = vld [vmem:[#allocation2 + $0x18] sm:$0xff]
      %v1169 = vld [vmem:[#allocation2 + $0x28] sm:$0xff]
      %v1170 = vld [vmem:[#allocation2 + $0x30] sm:$0xff]
      %v1171 = vld [vmem:[#allocation2 + $0x38] sm:$0xff]
      %v1172 = vsel %vm593, %v1166, 0
      %v1173 = vsel %vm594, %v1167, 0
      %v1174 = vsel %vm595, %v1168, 0
      %v1175 = vsel %vm593, %v1169, 0
      %v1176 = vsel %vm594, %v1170, 0
      %v1177 = vsel %vm595, %v1171, 0
      %1184 = vrot.lane.b32.xlu0 %v1172, 127
      %v1185 = vpop.permute.xlu0 %1184
      %1186 = vrot.lane.b32.xlu0 %v1173, 127
      %v1187 = vpop.permute.xlu0 %1186
      %1188 = vrot.lane.b32.xlu0 %v1174, 127
      %v1189 = vpop.permute.xlu0 %1188
      %1190 = vrot.lane.b32.xlu0 %v1175, 127
      %v1191 = vpop.permute.xlu0 %1190
      %1192 = vrot.lane.b32.xlu0 %v1176, 127
      %v1193 = vpop.permute.xlu0 %1192
      %1194 = vrot.lane.b32.xlu0 %v1177, 127
      %v1195 = vpop.permute.xlu0 %1194
      %v1196 = vsel %vm532, %v1185, %v1187
      %v1197 = vsel %vm532, %v1187, %v1189
      %v1198 = vsel %vm532, %v1191, %v1193
      %v1199 = vsel %vm532, %v1193, %v1195
      %1204 = vst [vmem:[#allocation3 + $0xa0] sm:$0xff] %v1196
      %1205 = vst [vmem:[#allocation3 + $0xa8] sm:$0xff] %v1197
      %1206 = vst [vmem:[#allocation3 + $0xb0] sm:$0xff] %v1198
      %1207 = vst [vmem:[#allocation3 + $0xb8] sm:$0xff] %v1199
      %v1208 = vld [vmem:[#allocation2 + $0x8] sm:$0xff]
      %v1209 = vld [vmem:[#allocation2 + $0x10] sm:$0xff]
      %v1210 = vld [vmem:[#allocation2 + $0x18] sm:$0xff]
      %v1211 = vld [vmem:[#allocation2 + $0x28] sm:$0xff]
      %v1212 = vld [vmem:[#allocation2 + $0x30] sm:$0xff]
      %v1213 = vld [vmem:[#allocation2 + $0x38] sm:$0xff]
      %v1214 = vsel %vm643, %v1208, 0
      %v1215 = vsel %vm644, %v1209, 0
      %v1216 = vsel %vm645, %v1210, 0
      %v1217 = vsel %vm643, %v1211, 0
      %v1218 = vsel %vm644, %v1212, 0
      %v1219 = vsel %vm645, %v1213, 0
      %1226 = vrot.lane.b32.xlu0 %v1214, 113
      %v1227 = vpop.permute.xlu0 %1226
      %1228 = vrot.lane.b32.xlu0 %v1215, 113
      %v1229 = vpop.permute.xlu0 %1228
      %1230 = vrot.lane.b32.xlu0 %v1216, 113
      %v1231 = vpop.permute.xlu0 %1230
      %1232 = vrot.lane.b32.xlu0 %v1217, 113
      %v1233 = vpop.permute.xlu0 %1232
      %1234 = vrot.lane.b32.xlu0 %v1218, 113
      %v1235 = vpop.permute.xlu0 %1234
      %1236 = vrot.lane.b32.xlu0 %v1219, 113
      %v1237 = vpop.permute.xlu0 %1236
      %v1238 = vsel %vm480, %v1227, %v1229
      %v1239 = vsel %vm480, %v1229, %v1231
      %v1240 = vsel %vm480, %v1233, %v1235
      %v1241 = vsel %vm480, %v1235, %v1237
      %1246 = vst [vmem:[#allocation3 + $0xc0] sm:$0xff] %v1238
      %1247 = vst [vmem:[#allocation3 + $0xc8] sm:$0xff] %v1239
      %1248 = vst [vmem:[#allocation3 + $0xd0] sm:$0xff] %v1240
      %1249 = vst [vmem:[#allocation3 + $0xd8] sm:$0xff] %v1241
      %v1250 = vld [vmem:[#allocation2 + $0x8] sm:$0xff]
      %v1251 = vld [vmem:[#allocation2 + $0x10] sm:$0xff]
      %v1252 = vld [vmem:[#allocation2 + $0x18] sm:$0xff]
      %v1253 = vld [vmem:[#allocation2 + $0x28] sm:$0xff]
      %v1254 = vld [vmem:[#allocation2 + $0x30] sm:$0xff]
      %v1255 = vld [vmem:[#allocation2 + $0x38] sm:$0xff]
      %1262 = vrot.lane.b32.xlu0 %v1250, 112
      %v1263 = vpop.permute.xlu0 %1262
      %1264 = vrot.lane.b32.xlu0 %v1251, 112
      %v1265 = vpop.permute.xlu0 %1264
      %1266 = vrot.lane.b32.xlu0 %v1252, 112
      %v1267 = vpop.permute.xlu0 %1266
      %1268 = vrot.lane.b32.xlu0 %v1253, 112
      %v1269 = vpop.permute.xlu0 %1268
      %1270 = vrot.lane.b32.xlu0 %v1254, 112
      %v1271 = vpop.permute.xlu0 %1270
      %1272 = vrot.lane.b32.xlu0 %v1255, 112
      %v1273 = vpop.permute.xlu0 %1272
      %v1274 = vsel %vm706, %v1263, %v1265
      %v1275 = vsel %vm706, %v1265, %v1267
      %v1276 = vsel %vm706, %v1269, %v1271
      %v1277 = vsel %vm706, %v1271, %v1273
      %1282 = vst [vmem:[#allocation3 + $0xe0] sm:$0xff] %v1274
      %1283 = vst [vmem:[#allocation3 + $0xe8] sm:$0xff] %v1275
      %1284 = vst [vmem:[#allocation3 + $0xf0] sm:$0xff] %v1276
      %1285 = vst [vmem:[#allocation3 + $0xf8] sm:$0xff] %v1277
      %v1286 = vld [vmem:[#allocation2 + $0x8] sm:$0xff]
      %v1287 = vld [vmem:[#allocation2 + $0x10] sm:$0xff]
      %v1288 = vld [vmem:[#allocation2 + $0x18] sm:$0xff]
      %v1289 = vld [vmem:[#allocation2 + $0x28] sm:$0xff]
      %v1290 = vld [vmem:[#allocation2 + $0x30] sm:$0xff]
      %v1291 = vld [vmem:[#allocation2 + $0x38] sm:$0xff]
      %v1292 = vsel %vm730, %v1286, 0
      %v1293 = vsel %vm731, %v1287, 0
      %v1294 = vsel %vm732, %v1288, 0
      %v1295 = vsel %vm730, %v1289, 0
      %v1296 = vsel %vm731, %v1290, 0
      %v1297 = vsel %vm732, %v1291, 0
      %1304 = vrot.lane.b32.xlu0 %v1292, 111
      %v1305 = vpop.permute.xlu0 %1304
      %1306 = vrot.lane.b32.xlu0 %v1293, 111
      %v1307 = vpop.permute.xlu0 %1306
      %1308 = vrot.lane.b32.xlu0 %v1294, 111
      %v1309 = vpop.permute.xlu0 %1308
      %1310 = vrot.lane.b32.xlu0 %v1295, 111
      %v1311 = vpop.permute.xlu0 %1310
      %1312 = vrot.lane.b32.xlu0 %v1296, 111
      %v1313 = vpop.permute.xlu0 %1312
      %1314 = vrot.lane.b32.xlu0 %v1297, 111
      %v1315 = vpop.permute.xlu0 %1314
      %v1316 = vsel %vm377, %v1305, %v1307
      %v1317 = vsel %vm377, %v1307, %v1309
      %v1318 = vsel %vm377, %v1311, %v1313
      %v1319 = vsel %vm377, %v1313, %v1315
      %1324 = vst [vmem:[#allocation3 + $0x100] sm:$0xff] %v1316
      %1325 = vst [vmem:[#allocation3 + $0x108] sm:$0xff] %v1317
      %1326 = vst [vmem:[#allocation3 + $0x110] sm:$0xff] %v1318
      %1327 = vst [vmem:[#allocation3 + $0x118] sm:$0xff] %v1319
      %s1328 = scalar_lea.vmem %s1, 48
      %v1329 = vld [vmem:[%s1328] sm:$0xff]
      %v1330 = vld [vmem:[%s1328 + $0x8] sm:$0xf]
      %v1331 = vld [vmem:[%s1328 + $0xc] sm:$0xff]
      %v1332 = vld [vmem:[%s1328 + $0x14] sm:$0xf]
      %v1333 = vld [vmem:[%s1328 + $0x18] sm:$0xff]
      %v1334 = vld [vmem:[%s1328 + $0x20] sm:$0xf]
      %v1335 = vld [vmem:[%s1328 + $0x24] sm:$0xff]
      %v1336 = vld [vmem:[%s1328 + $0x2c] sm:$0xf]
      %v1337 = vld [vmem:[#allocation3] sm:$0xff]
      %v1338 = vld [vmem:[#allocation3 + $0x8] sm:$0xff]
      %v1339 = vld [vmem:[#allocation3 + $0x10] sm:$0xff]
      %v1340 = vld [vmem:[#allocation3 + $0x18] sm:$0xff]
      %v1341 = vld [vmem:[#allocation3 + $0x20] sm:$0xff]
      %v1342 = vld [vmem:[#allocation3 + $0x28] sm:$0xff]
      %v1343 = vld [vmem:[#allocation3 + $0x30] sm:$0xff]
      %v1344 = vld [vmem:[#allocation3 + $0x38] sm:$0xff]
      %v1345 = vld [vmem:[#allocation3 + $0x40] sm:$0xff]
      %v1346 = vld [vmem:[#allocation3 + $0x48] sm:$0xff]
      %v1347 = vld [vmem:[#allocation3 + $0x50] sm:$0xff]
      %v1348 = vld [vmem:[#allocation3 + $0x58] sm:$0xff]
      %v1349 = vld [vmem:[#allocation3 + $0x60] sm:$0xff]
      %v1350 = vld [vmem:[#allocation3 + $0x68] sm:$0xff]
      %v1351 = vld [vmem:[#allocation3 + $0x70] sm:$0xff]
      %v1352 = vld [vmem:[#allocation3 + $0x78] sm:$0xff]
      %v1353 = vld [vmem:[#allocation3 + $0x80] sm:$0xff]
      %v1354 = vld [vmem:[#allocation3 + $0x88] sm:$0xff]
      %v1355 = vld [vmem:[#allocation3 + $0x90] sm:$0xff]
      %v1356 = vld [vmem:[#allocation3 + $0x98] sm:$0xff]
      %v1357 = vld [vmem:[#allocation3 + $0xa0] sm:$0xff]
      %v1358 = vld [vmem:[#allocation3 + $0xa8] sm:$0xff]
      %v1359 = vld [vmem:[#allocation3 + $0xb0] sm:$0xff]
      %v1360 = vld [vmem:[#allocation3 + $0xb8] sm:$0xff]
      %v1361 = vld [vmem:[#allocation3 + $0xc0] sm:$0xff]
      %v1362 = vld [vmem:[#allocation3 + $0xc8] sm:$0xff]
      %v1363 = vld [vmem:[#allocation3 + $0xd0] sm:$0xff]
      %v1364 = vld [vmem:[#allocation3 + $0xd8] sm:$0xff]
      %v1365 = vld [vmem:[#allocation3 + $0xe0] sm:$0xff]
      %v1366 = vld [vmem:[#allocation3 + $0xe8] sm:$0xff]
      %v1367 = vld [vmem:[#allocation3 + $0xf0] sm:$0xff]
      %v1368 = vld [vmem:[#allocation3 + $0xf8] sm:$0xff]
      %v1369 = vld [vmem:[#allocation3 + $0x100] sm:$0xff]
      %v1370 = vld [vmem:[#allocation3 + $0x108] sm:$0xff]
      %v1371 = vld [vmem:[#allocation3 + $0x110] sm:$0xff]
      %v1372 = vld [vmem:[#allocation3 + $0x118] sm:$0xff]
      %s1373 = scalar_lea.vmem %s2, 32
      %v1374 = vld [vmem:[%s1373] sm:$0xff]
      %v1375 = vld [vmem:[%s1373 + $0x8] sm:$0xff]
      %v1376 = vld [vmem:[%s1373 + $0x10] sm:$0xff]
      %v1377 = vld [vmem:[%s1373 + $0x18] sm:$0xff]
      %1379 = vset.pattern.permute.xlu0 0
      %1380 = vperm.xlu0 %1379, %v1374
      %v1381 = vpop.permute.xlu0 %1380
      %1384 = vset.pattern.permute.xlu0 0
      %1385 = vperm.xlu0 %1384, %v1375
      %v1386 = vpop.permute.xlu0 %1385
      %1389 = vset.pattern.permute.xlu0 0
      %1390 = vperm.xlu0 %1389, %v1376
      %v1391 = vpop.permute.xlu0 %1390
      %1394 = vset.pattern.permute.xlu0 0
      %1395 = vperm.xlu0 %1394, %v1377
      %v1396 = vpop.permute.xlu0 %1395
      %v1406 = vunpack.c.l.b16 %v1329
      %v1407 = vunpack.c.h.b16 %v1329
      %v1408 = vunpack.c.l.b16 %v1330
      %v1409 = vunpack.c.l.b16 %v1331
      %v1410 = vunpack.c.h.b16 %v1331
      %v1411 = vunpack.c.l.b16 %v1332
      %v1412 = vunpack.c.l.b16 %v1333
      %v1413 = vunpack.c.h.b16 %v1333
      %v1414 = vunpack.c.l.b16 %v1334
      %v1415 = vunpack.c.l.b16 %v1335
      %v1416 = vunpack.c.h.b16 %v1335
      %v1417 = vunpack.c.l.b16 %v1336
      %v1418 = vpack.c.b16 %v1409, %v1406
      %v1419 = vpack.c.b16 %v1410, %v1407
      %v1420 = vpack.c.b16 %v1411, %v1408
      %v1421 = vpack.c.b16 %v1415, %v1412
      %v1422 = vpack.c.b16 %v1416, %v1413
      %v1423 = vpack.c.b16 %v1417, %v1414
      %v1429 = vsel %vm867, %v1420, 0
      %v1432 = vsel %vm867, %v1423, 0
      %1434 = vmatprep.subr.bf16.mxu0 %v1338
      %1435 = vmatpush1.bf16.msra.mxu0 %v1337
      %1436 = vmatprep.subr.bf16.mxu0 %v1340
      %1437 = vmatpush1.bf16.msra.mxu0 %v1339
      %1438 = vmatprep.subr.bf16.mxu0 %v1342
      %1439 = vmatpush1.bf16.msra.mxu0 %v1341
      %1440 = vmatprep.subr.bf16.mxu0 %v1344
      %1441 = vmatpush1.bf16.msra.mxu0 %v1343
      %1442 = vmatprep.subr.bf16.mxu0 %v1346
      %1443 = vmatpush1.bf16.msra.mxu0 %v1345
      %1444 = vmatprep.subr.bf16.mxu0 %v1348
      %1445 = vmatpush1.bf16.msra.mxu0 %v1347
      %1446 = vmatprep.subr.bf16.mxu0 %v1350
      %1447 = vmatpush1.bf16.msra.mxu0 %v1349
      %1448 = vmatprep.subr.bf16.mxu0 %v1352
      %1449 = vmatpush1.bf16.msra.mxu0 %v1351
      %1450 = vmatprep.subr.bf16.mxu0 %v1354
      %1451 = vmatpush1.bf16.msra.mxu0 %v1353
      %1452 = vmatprep.subr.bf16.mxu0 %v1356
      %1453 = vmatpush1.bf16.msra.mxu0 %v1355
      %1454 = vmatprep.subr.bf16.mxu0 %v1358
      %1455 = vmatpush1.bf16.msra.mxu0 %v1357
      %1456 = vmatprep.subr.bf16.mxu0 %v1360
      %1457 = vmatpush1.bf16.msra.mxu0 %v1359
      %1458 = vmatprep.subr.bf16.mxu0 %v1362
      %1459 = vmatpush1.bf16.msra.mxu0 %v1361
      %1460 = vmatprep.subr.bf16.mxu0 %v1364
      %1461 = vmatpush1.bf16.msra.mxu0 %v1363
      %1462 = vmatprep.subr.bf16.mxu0 %v1366
      %1463 = vmatpush1.bf16.msra.mxu0 %v1365
      %1464 = vmatprep.subr.bf16.mxu0 %v1368
      %1465 = vmatpush1.bf16.msra.mxu0 %v1367
      %1466 = vmatprep.mubr.bf16.mxu0 %v1419
      %1467 = vmatmul.mubr.bf16.gmra.mrb[0].mxu0 %v1418
      %v1468 = vpop.f32.mrb[0].mxu0
      %v1469 = vadd.f32 %v1381, %v1468
      %v1470 = vpop.f32.mrb[0].mxu0
      %v1471 = vadd.f32 %v1381, %v1470
      %v1472 = vpop.f32.mrb[0].mxu0
      %v1473 = vadd.f32 %v1386, %v1472
      %v1474 = vpop.f32.mrb[0].mxu0
      %v1475 = vadd.f32 %v1386, %v1474
      %1476 = vmatprep.mubr.bf16.mxu0 %v1422
      %1477 = vmatmul.mubr.bf16.gmra.mrb[0].mxu0 %v1421
      %v1478 = vpop.f32.mrb[0].mxu0
      %v1479 = vadd.f32 %v1391, %v1478
      %v1480 = vpop.f32.mrb[0].mxu0
      %v1481 = vadd.f32 %v1391, %v1480
      %v1482 = vpop.f32.mrb[0].mxu0
      %v1483 = vadd.f32 %v1396, %v1482
      %v1484 = vpop.f32.mrb[0].mxu0
      %v1485 = vadd.f32 %v1396, %v1484
      %1486 = vdwg.mxu0
      %1487 = vmatprep.subr.bf16.mxu0 %v1370
      %1488 = vmatpush1.bf16.msra.mxu0 %v1369
      %1489 = vmatprep.subr.bf16.mxu0 %v1372
      %1490 = vmatpush1.bf16.msra.mxu0 %v1371
      %1491 = vmatprep.subr.bf16.mxu0 0
      %1492 = vmatpush1.bf16.msra.mxu0 0
      %1493 = vmatprep.subr.bf16.mxu0 0
      %1494 = vmatpush1.bf16.msra.mxu0 0
      %1495 = vmatprep.subr.bf16.mxu0 0
      %1496 = vmatpush1.bf16.msra.mxu0 0
      %1497 = vmatprep.subr.bf16.mxu0 0
      %1498 = vmatpush1.bf16.msra.mxu0 0
      %1499 = vmatprep.subr.bf16.mxu0 0
      %1500 = vmatpush1.bf16.msra.mxu0 0
      %1501 = vmatprep.subr.bf16.mxu0 0
      %1502 = vmatpush1.bf16.msra.mxu0 0
      %1503 = vmatprep.subr.bf16.mxu0 0
      %1504 = vmatpush1.bf16.msra.mxu0 0
      %1505 = vmatprep.subr.bf16.mxu0 0
      %1506 = vmatpush1.bf16.msra.mxu0 0
      %1507 = vmatprep.subr.bf16.mxu0 0
      %1508 = vmatpush1.bf16.msra.mxu0 0
      %1509 = vmatprep.subr.bf16.mxu0 0
      %1510 = vmatpush1.bf16.msra.mxu0 0
      %1511 = vmatprep.subr.bf16.mxu0 0
      %1512 = vmatpush1.bf16.msra.mxu0 0
      %1513 = vmatprep.subr.bf16.mxu0 0
      %1514 = vmatpush1.bf16.msra.mxu0 0
      %1515 = vmatprep.subr.bf16.mxu0 0
      %1516 = vmatpush1.bf16.msra.mxu0 0
      %1517 = vmatprep.subr.bf16.mxu0 0
      %1518 = vmatpush1.bf16.msra.mxu0 0
      %1519 = vmatprep.mubr.bf16.mxu0 0
      %1520 = vmatmul.mubr.bf16.gmra.mrb[0].mxu0 %v1429
      %v1521 = vpop.f32.mrb[0].mxu0
      %v1522 = vadd.f32 %v1469, %v1521
      %v1523 = vpop.f32.mrb[0].mxu0
      %v1524 = vadd.f32 %v1471, %v1523
      %v1525 = vpop.f32.mrb[0].mxu0
      %v1526 = vadd.f32 %v1473, %v1525
      %v1527 = vpop.f32.mrb[0].mxu0
      %v1528 = vadd.f32 %v1475, %v1527
      %1529 = vmatprep.mubr.bf16.mxu0 0
      %1530 = vmatmul.mubr.bf16.gmra.mrb[0].mxu0 %v1432
      %v1531 = vpop.f32.mrb[0].mxu0
      %v1532 = vadd.f32 %v1479, %v1531
      %v1533 = vpop.f32.mrb[0].mxu0
      %v1534 = vadd.f32 %v1481, %v1533
      %v1535 = vpop.f32.mrb[0].mxu0
      %v1536 = vadd.f32 %v1483, %v1535
      %v1537 = vpop.f32.mrb[0].mxu0
      %v1538 = vadd.f32 %v1485, %v1537
      %1539 = vdwg.mxu0
      %v1540 = vadd.f32 %v1522, %v1524
      %1541 = vadd.xlane.f32.xlu0 %v1540
      %v1542 = vpop.xlane.xlu0 %1541
      %v1543 = vadd.f32 %v1526, %v1528
      %1544 = vadd.xlane.f32.xlu0 %v1543
      %v1545 = vpop.xlane.xlu0 %1544
      %v1546 = vadd.f32 %v1532, %v1534
      %1547 = vadd.xlane.f32.xlu0 %v1546
      %v1548 = vpop.xlane.xlu0 %1547
      %v1549 = vadd.f32 %v1536, %v1538
      %1550 = vadd.xlane.f32.xlu0 %v1549
      %v1551 = vpop.xlane.xlu0 %1550
      %v1552 = vrcp.pop 256.0
      %v1553 = vmul.f32 %v1542, %v1552
      %v1554 = vmul.f32 %v1545, %v1552
      %v1555 = vmul.f32 %v1548, %v1552
      %v1556 = vmul.f32 %v1551, %v1552
      %v1557 = vld [vmem:[%s3] sm:$0xff]
      %v1558 = vld [vmem:[%s3 + $0x8] sm:$0xff]
      %v1559 = vld [vmem:[%s3 + $0x10] sm:$0xff]
      %v1560 = vld [vmem:[%s3 + $0x18] sm:$0xff]
      %v1561 = vmul.f32 %v1557, %v1553
      %v1562 = vmul.f32 %v1558, %v1554
      %v1563 = vmul.f32 %v1559, %v1555
      %v1564 = vmul.f32 %v1560, %v1556
      %vm1565 = vcmask 15360
      %v1566 = vsel %vm1565, %v1561, 0.0
      %v1567 = vsel %vm1565, %v1562, 0.0
      %v1568 = vadd.f32 %v1566, %v1567
      %v1569 = vsel %vm1565, %v1563, 0.0
      %v1570 = vadd.f32 %v1568, %v1569
      %v1571 = vsel %vm1565, %v1564, 0.0
      %v1572 = vadd.f32 %v1570, %v1571
      %v1573 = vrot.slane %v1572, 4
      %v1574 = vadd.f32 %v1572, %v1573
      %v1575 = vrot.slane %v1574, 2
      %v1576 = vadd.f32 %v1574, %v1575
      %v1577 = vrot.slane %v1576, 1
      %v1578 = vadd.f32 %v1576, %v1577
      %v1579 = vld [vmem:[%s4] sm:$0x1]
      %v1580 = vadd.f32 %v1578, %v1579
      %v1581 = vmax.f32 %v1580, 0.0
      %v1582 = vld [vmem:[%s5] sm:$0xff]
      %v1583 = vld [vmem:[%s5 + $0x8] sm:$0xff]
      %v1584 = vld [vmem:[%s5 + $0x10] sm:$0xff]
      %v1585 = vld [vmem:[%s5 + $0x18] sm:$0xff]
      %v1586 = vlaneseq
      %v1587 = vshrl.u32 %v1586, 7
      %v1588 = vsub.s32 0, %v1587
      %v1589 = vrot.slane %v1581, %v1588
      %v1590 = vmul.f32 %v1582, %v1589
      %v1591 = vmul.f32 %v1583, %v1589
      %v1592 = vmul.f32 %v1584, %v1589
      %v1593 = vmul.f32 %v1585, %v1589
      %v1594 = vsel %vm1565, %v1590, 0.0
      %1595 = vadd.xlane.f32.xlu0 %v1594
      %v1596 = vpop.xlane.xlu0 %1595
      %v1597 = vsel %vm1565, %v1591, 0.0
      %1598 = vadd.xlane.f32.xlu0 %v1597
      %v1599 = vpop.xlane.xlu0 %1598
      %v1600 = vsel %vm1565, %v1592, 0.0
      %1601 = vadd.xlane.f32.xlu0 %v1600
      %v1602 = vpop.xlane.xlu0 %1601
      %v1603 = vsel %vm1565, %v1593, 0.0
      %1604 = vadd.xlane.f32.xlu0 %v1603
      %v1605 = vpop.xlane.xlu0 %1604
      %v1606 = vld [vmem:[%s6] sm:$0xff]
      %v1607 = vld [vmem:[%s6 + $0x8] sm:$0xff]
      %v1608 = vld [vmem:[%s6 + $0x10] sm:$0xff]
      %v1609 = vld [vmem:[%s6 + $0x18] sm:$0xff]
      %v1610 = vadd.f32 %v1596, %v1606
      %v1611 = vadd.f32 %v1599, %v1607
      %v1612 = vadd.f32 %v1602, %v1608
      %v1613 = vadd.f32 %v1605, %v1609
      %v1614 = vsub.f32 0.0, %v1610
      %v1615 = vsub.f32 0.0, %v1611
      %v1616 = vsub.f32 0.0, %v1612
      %v1617 = vsub.f32 0.0, %v1613
      %v1618 = vmul.f32 %v1614, 1.442695
      %v1619 = vpow.pop %v1618
      %v1620 = vmul.f32 %v1615, 1.442695
      %v1621 = vpow.pop %v1620
      %v1622 = vmul.f32 %v1616, 1.442695
      %v1623 = vpow.pop %v1622
      %v1624 = vmul.f32 %v1617, 1.442695
      %v1625 = vpow.pop %v1624
      %v1626 = vadd.f32 %v1619, 1.0
      %v1627 = vadd.f32 %v1621, 1.0
      %v1628 = vadd.f32 %v1623, 1.0
      %v1629 = vadd.f32 %v1625, 1.0
      %v1630 = vrcp.pop %v1626
      %v1631 = vmul.f32 1.0, %v1630
      %v1632 = vrcp.pop %v1627
      %v1633 = vmul.f32 1.0, %v1632
      %v1634 = vrcp.pop %v1628
      %v1635 = vmul.f32 1.0, %v1634
      %v1636 = vrcp.pop %v1629
      %v1637 = vmul.f32 1.0, %v1636
      %1639 = vset.pattern.permute.xlu0 0
      %1640 = vperm.xlu0 %1639, %v1631
      %v1641 = vpop.permute.xlu0 %1640
      %1644 = vset.pattern.permute.xlu0 0
      %1645 = vperm.xlu0 %1644, %v1633
      %v1646 = vpop.permute.xlu0 %1645
      %1649 = vset.pattern.permute.xlu0 0
      %1650 = vperm.xlu0 %1649, %v1635
      %v1651 = vpop.permute.xlu0 %1650
      %1654 = vset.pattern.permute.xlu0 0
      %1655 = vperm.xlu0 %1654, %v1637
      %v1656 = vpop.permute.xlu0 %1655
      %v1658 = vmul.f32 %v1522, %v1641
      %v1659 = vmul.f32 %v1524, %v1641
      %v1660 = vmul.f32 %v1526, %v1646
      %v1661 = vmul.f32 %v1528, %v1646
      %v1662 = vmul.f32 %v1532, %v1651
      %v1663 = vmul.f32 %v1534, %v1651
      %v1664 = vmul.f32 %v1536, %v1656
      %v1665 = vmul.f32 %v1538, %v1656
      %v1666 = vadd.f32 %v1658, %v337
      %v1667 = vadd.f32 %v1659, %v338
      %v1668 = vadd.f32 %v1660, %v339
      %v1669 = vadd.f32 %v1661, %v340
      %v1670 = vadd.f32 %v1662, %v341
      %v1671 = vadd.f32 %v1663, %v342
      %v1672 = vadd.f32 %v1664, %v343
      %v1673 = vadd.f32 %v1665, %v344
      %1674 = vst [vmem:[#allocation4] sm:$0xff] %v1666
      %1675 = vst [vmem:[#allocation4 + $0x8] sm:$0xff] %v1667
      %1676 = vst [vmem:[#allocation4 + $0x10] sm:$0xff] %v1668
      %1677 = vst [vmem:[#allocation4 + $0x18] sm:$0xff] %v1669
      %1678 = vst [vmem:[#allocation4 + $0x20] sm:$0xff] %v1670
      %1679 = vst [vmem:[#allocation4 + $0x28] sm:$0xff] %v1671
      %1680 = vst [vmem:[#allocation4 + $0x30] sm:$0xff] %v1672
      %1681 = vst [vmem:[#allocation4 + $0x38] sm:$0xff] %v1673
      %v1682 = vld [vmem:[#allocation4] sm:$0xff]
      %v1683 = vld [vmem:[#allocation4 + $0x8] sm:$0xff]
      %v1684 = vld [vmem:[#allocation4 + $0x10] sm:$0xff]
      %v1685 = vld [vmem:[#allocation4 + $0x18] sm:$0xff]
      %v1686 = vld [vmem:[#allocation4 + $0x20] sm:$0xff]
      %v1687 = vld [vmem:[#allocation4 + $0x28] sm:$0xff]
      %v1688 = vld [vmem:[#allocation4 + $0x30] sm:$0xff]
      %v1689 = vld [vmem:[#allocation4 + $0x38] sm:$0xff]
      %v1690 = vpack.c.bf16 %v1684, %v1682
      %v1691 = vpack.c.bf16 %v1685, %v1683
      %v1692 = vpack.c.bf16 %v1688, %v1686
      %v1693 = vpack.c.bf16 %v1689, %v1687
      %1694 = vst [vmem:[#allocation2 + $0x8] sm:$0xff] %v1690
      %1695 = vst [vmem:[#allocation2 + $0x10] sm:$0xff] %v1691
      %1696 = vst [vmem:[#allocation2 + $0x28] sm:$0xff] %v1692
      %1697 = vst [vmem:[#allocation2 + $0x30] sm:$0xff] %v1693
      %v1698 = vld [vmem:[#allocation2] sm:$0xff]
      %v1699 = vld [vmem:[#allocation2 + $0x8] sm:$0xff]
      %v1700 = vld [vmem:[#allocation2 + $0x10] sm:$0xff]
      %v1701 = vld [vmem:[#allocation2 + $0x20] sm:$0xff]
      %v1702 = vld [vmem:[#allocation2 + $0x28] sm:$0xff]
      %v1703 = vld [vmem:[#allocation2 + $0x30] sm:$0xff]
      %v1704 = vsel %vm379, %v1698, 0
      %v1705 = vsel %vm380, %v1699, 0
      %v1706 = vsel %vm381, %v1700, 0
      %v1707 = vsel %vm379, %v1701, 0
      %v1708 = vsel %vm380, %v1702, 0
      %v1709 = vsel %vm381, %v1703, 0
      %1716 = vrot.lane.b32.xlu0 %v1704, 17
      %v1717 = vpop.permute.xlu0 %1716
      %1718 = vrot.lane.b32.xlu0 %v1705, 17
      %v1719 = vpop.permute.xlu0 %1718
      %1720 = vrot.lane.b32.xlu0 %v1706, 17
      %v1721 = vpop.permute.xlu0 %1720
      %1722 = vrot.lane.b32.xlu0 %v1707, 17
      %v1723 = vpop.permute.xlu0 %1722
      %1724 = vrot.lane.b32.xlu0 %v1708, 17
      %v1725 = vpop.permute.xlu0 %1724
      %1726 = vrot.lane.b32.xlu0 %v1709, 17
      %v1727 = vpop.permute.xlu0 %1726
      %v1728 = vsel %vm406, %v1717, %v1719
      %v1729 = vsel %vm406, %v1719, %v1721
      %v1730 = vsel %vm406, %v1723, %v1725
      %v1731 = vsel %vm406, %v1725, %v1727
      %1736 = vst [vmem:[#allocation3] sm:$0xff] %v1728
      %1737 = vst [vmem:[#allocation3 + $0x8] sm:$0xff] %v1729
      %1738 = vst [vmem:[#allocation3 + $0x10] sm:$0xff] %v1730
      %1739 = vst [vmem:[#allocation3 + $0x18] sm:$0xff] %v1731
      %v1740 = vld [vmem:[#allocation2] sm:$0xff]
      %v1741 = vld [vmem:[#allocation2 + $0x8] sm:$0xff]
      %v1742 = vld [vmem:[#allocation2 + $0x10] sm:$0xff]
      %v1743 = vld [vmem:[#allocation2 + $0x20] sm:$0xff]
      %v1744 = vld [vmem:[#allocation2 + $0x28] sm:$0xff]
      %v1745 = vld [vmem:[#allocation2 + $0x30] sm:$0xff]
      %1752 = vrot.lane.b32.xlu0 %v1740, 16
      %v1753 = vpop.permute.xlu0 %1752
      %1754 = vrot.lane.b32.xlu0 %v1741, 16
      %v1755 = vpop.permute.xlu0 %1754
      %1756 = vrot.lane.b32.xlu0 %v1742, 16
      %v1757 = vpop.permute.xlu0 %1756
      %1758 = vrot.lane.b32.xlu0 %v1743, 16
      %v1759 = vpop.permute.xlu0 %1758
      %1760 = vrot.lane.b32.xlu0 %v1744, 16
      %v1761 = vpop.permute.xlu0 %1760
      %1762 = vrot.lane.b32.xlu0 %v1745, 16
      %v1763 = vpop.permute.xlu0 %1762
      %v1764 = vsel %vm443, %v1753, %v1755
      %v1765 = vsel %vm443, %v1755, %v1757
      %v1766 = vsel %vm443, %v1759, %v1761
      %v1767 = vsel %vm443, %v1761, %v1763
      %1772 = vst [vmem:[#allocation3 + $0x20] sm:$0xff] %v1764
      %1773 = vst [vmem:[#allocation3 + $0x28] sm:$0xff] %v1765
      %1774 = vst [vmem:[#allocation3 + $0x30] sm:$0xff] %v1766
      %1775 = vst [vmem:[#allocation3 + $0x38] sm:$0xff] %v1767
      %v1776 = vld [vmem:[#allocation2] sm:$0xff]
      %v1777 = vld [vmem:[#allocation2 + $0x8] sm:$0xff]
      %v1778 = vld [vmem:[#allocation2 + $0x10] sm:$0xff]
      %v1779 = vld [vmem:[#allocation2 + $0x20] sm:$0xff]
      %v1780 = vld [vmem:[#allocation2 + $0x28] sm:$0xff]
      %v1781 = vld [vmem:[#allocation2 + $0x30] sm:$0xff]
      %v1782 = vsel %vm482, %v1776, 0
      %v1783 = vsel %vm483, %v1777, 0
      %v1784 = vsel %vm484, %v1778, 0
      %v1785 = vsel %vm482, %v1779, 0
      %v1786 = vsel %vm483, %v1780, 0
      %v1787 = vsel %vm484, %v1781, 0
      %1794 = vrot.lane.b32.xlu0 %v1782, 15
      %v1795 = vpop.permute.xlu0 %1794
      %1796 = vrot.lane.b32.xlu0 %v1783, 15
      %v1797 = vpop.permute.xlu0 %1796
      %1798 = vrot.lane.b32.xlu0 %v1784, 15
      %v1799 = vpop.permute.xlu0 %1798
      %1800 = vrot.lane.b32.xlu0 %v1785, 15
      %v1801 = vpop.permute.xlu0 %1800
      %1802 = vrot.lane.b32.xlu0 %v1786, 15
      %v1803 = vpop.permute.xlu0 %1802
      %1804 = vrot.lane.b32.xlu0 %v1787, 15
      %v1805 = vpop.permute.xlu0 %1804
      %v1806 = vsel %vm509, %v1795, %v1797
      %v1807 = vsel %vm509, %v1797, %v1799
      %v1808 = vsel %vm509, %v1801, %v1803
      %v1809 = vsel %vm509, %v1803, %v1805
      %1814 = vst [vmem:[#allocation3 + $0x40] sm:$0xff] %v1806
      %1815 = vst [vmem:[#allocation3 + $0x48] sm:$0xff] %v1807
      %1816 = vst [vmem:[#allocation3 + $0x50] sm:$0xff] %v1808
      %1817 = vst [vmem:[#allocation3 + $0x58] sm:$0xff] %v1809
      %v1818 = vld [vmem:[#allocation2] sm:$0xff]
      %v1819 = vld [vmem:[#allocation2 + $0x8] sm:$0xff]
      %v1820 = vld [vmem:[#allocation2 + $0x10] sm:$0xff]
      %v1821 = vld [vmem:[#allocation2 + $0x20] sm:$0xff]
      %v1822 = vld [vmem:[#allocation2 + $0x28] sm:$0xff]
      %v1823 = vld [vmem:[#allocation2 + $0x30] sm:$0xff]
      %v1824 = vsel %vm534, %v1818, 0
      %v1825 = vsel %vm535, %v1819, 0
      %v1826 = vsel %vm536, %v1820, 0
      %v1827 = vsel %vm534, %v1821, 0
      %v1828 = vsel %vm535, %v1822, 0
      %v1829 = vsel %vm536, %v1823, 0
      %1836 = vrot.lane.b32.xlu0 %v1824, 1
      %v1837 = vpop.permute.xlu0 %1836
      %1838 = vrot.lane.b32.xlu0 %v1825, 1
      %v1839 = vpop.permute.xlu0 %1838
      %1840 = vrot.lane.b32.xlu0 %v1826, 1
      %v1841 = vpop.permute.xlu0 %1840
      %1842 = vrot.lane.b32.xlu0 %v1827, 1
      %v1843 = vpop.permute.xlu0 %1842
      %1844 = vrot.lane.b32.xlu0 %v1828, 1
      %v1845 = vpop.permute.xlu0 %1844
      %1846 = vrot.lane.b32.xlu0 %v1829, 1
      %v1847 = vpop.permute.xlu0 %1846
      %v1848 = vsel %vm561, %v1837, %v1839
      %v1849 = vsel %vm561, %v1839, %v1841
      %v1850 = vsel %vm561, %v1843, %v1845
      %v1851 = vsel %vm561, %v1845, %v1847
      %1856 = vst [vmem:[#allocation3 + $0x60] sm:$0xff] %v1848
      %1857 = vst [vmem:[#allocation3 + $0x68] sm:$0xff] %v1849
      %1858 = vst [vmem:[#allocation3 + $0x70] sm:$0xff] %v1850
      %1859 = vst [vmem:[#allocation3 + $0x78] sm:$0xff] %v1851
      %v1860 = vld [vmem:[#allocation2 + $0x8] sm:$0xff]
      %v1861 = vld [vmem:[#allocation2 + $0x10] sm:$0xff]
      %v1862 = vld [vmem:[#allocation2 + $0x28] sm:$0xff]
      %v1863 = vld [vmem:[#allocation2 + $0x30] sm:$0xff]
      %1864 = vst [vmem:[#allocation3 + $0x80] sm:$0xff] %v1860
      %1865 = vst [vmem:[#allocation3 + $0x88] sm:$0xff] %v1861
      %1866 = vst [vmem:[#allocation3 + $0x90] sm:$0xff] %v1862
      %1867 = vst [vmem:[#allocation3 + $0x98] sm:$0xff] %v1863
      %v1868 = vld [vmem:[#allocation2 + $0x8] sm:$0xff]
      %v1869 = vld [vmem:[#allocation2 + $0x10] sm:$0xff]
      %v1870 = vld [vmem:[#allocation2 + $0x18] sm:$0xff]
      %v1871 = vld [vmem:[#allocation2 + $0x28] sm:$0xff]
      %v1872 = vld [vmem:[#allocation2 + $0x30] sm:$0xff]
      %v1873 = vld [vmem:[#allocation2 + $0x38] sm:$0xff]
      %v1874 = vsel %vm593, %v1868, 0
      %v1875 = vsel %vm594, %v1869, 0
      %v1876 = vsel %vm595, %v1870, 0
      %v1877 = vsel %vm593, %v1871, 0
      %v1878 = vsel %vm594, %v1872, 0
      %v1879 = vsel %vm595, %v1873, 0
      %1886 = vrot.lane.b32.xlu0 %v1874, 127
      %v1887 = vpop.permute.xlu0 %1886
      %1888 = vrot.lane.b32.xlu0 %v1875, 127
      %v1889 = vpop.permute.xlu0 %1888
      %1890 = vrot.lane.b32.xlu0 %v1876, 127
      %v1891 = vpop.permute.xlu0 %1890
      %1892 = vrot.lane.b32.xlu0 %v1877, 127
      %v1893 = vpop.permute.xlu0 %1892
      %1894 = vrot.lane.b32.xlu0 %v1878, 127
      %v1895 = vpop.permute.xlu0 %1894
      %1896 = vrot.lane.b32.xlu0 %v1879, 127
      %v1897 = vpop.permute.xlu0 %1896
      %v1898 = vsel %vm532, %v1887, %v1889
      %v1899 = vsel %vm532, %v1889, %v1891
      %v1900 = vsel %vm532, %v1893, %v1895
      %v1901 = vsel %vm532, %v1895, %v1897
      %1906 = vst [vmem:[#allocation3 + $0xa0] sm:$0xff] %v1898
      %1907 = vst [vmem:[#allocation3 + $0xa8] sm:$0xff] %v1899
      %1908 = vst [vmem:[#allocation3 + $0xb0] sm:$0xff] %v1900
      %1909 = vst [vmem:[#allocation3 + $0xb8] sm:$0xff] %v1901
      %v1910 = vld [vmem:[#allocation2 + $0x8] sm:$0xff]
      %v1911 = vld [vmem:[#allocation2 + $0x10] sm:$0xff]
      %v1912 = vld [vmem:[#allocation2 + $0x18] sm:$0xff]
      %v1913 = vld [vmem:[#allocation2 + $0x28] sm:$0xff]
      %v1914 = vld [vmem:[#allocation2 + $0x30] sm:$0xff]
      %v1915 = vld [vmem:[#allocation2 + $0x38] sm:$0xff]
      %v1916 = vsel %vm643, %v1910, 0
      %v1917 = vsel %vm644, %v1911, 0
      %v1918 = vsel %vm645, %v1912, 0
      %v1919 = vsel %vm643, %v1913, 0
      %v1920 = vsel %vm644, %v1914, 0
      %v1921 = vsel %vm645, %v1915, 0
      %1928 = vrot.lane.b32.xlu0 %v1916, 113
      %v1929 = vpop.permute.xlu0 %1928
      %1930 = vrot.lane.b32.xlu0 %v1917, 113
      %v1931 = vpop.permute.xlu0 %1930
      %1932 = vrot.lane.b32.xlu0 %v1918, 113
      %v1933 = vpop.permute.xlu0 %1932
      %1934 = vrot.lane.b32.xlu0 %v1919, 113
      %v1935 = vpop.permute.xlu0 %1934
      %1936 = vrot.lane.b32.xlu0 %v1920, 113
      %v1937 = vpop.permute.xlu0 %1936
      %1938 = vrot.lane.b32.xlu0 %v1921, 113
      %v1939 = vpop.permute.xlu0 %1938
      %v1940 = vsel %vm480, %v1929, %v1931
      %v1941 = vsel %vm480, %v1931, %v1933
      %v1942 = vsel %vm480, %v1935, %v1937
      %v1943 = vsel %vm480, %v1937, %v1939
      %1948 = vst [vmem:[#allocation3 + $0xc0] sm:$0xff] %v1940
      %1949 = vst [vmem:[#allocation3 + $0xc8] sm:$0xff] %v1941
      %1950 = vst [vmem:[#allocation3 + $0xd0] sm:$0xff] %v1942
      %1951 = vst [vmem:[#allocation3 + $0xd8] sm:$0xff] %v1943
      %v1952 = vld [vmem:[#allocation2 + $0x8] sm:$0xff]
      %v1953 = vld [vmem:[#allocation2 + $0x10] sm:$0xff]
      %v1954 = vld [vmem:[#allocation2 + $0x18] sm:$0xff]
      %v1955 = vld [vmem:[#allocation2 + $0x28] sm:$0xff]
      %v1956 = vld [vmem:[#allocation2 + $0x30] sm:$0xff]
      %v1957 = vld [vmem:[#allocation2 + $0x38] sm:$0xff]
      %1964 = vrot.lane.b32.xlu0 %v1952, 112
      %v1965 = vpop.permute.xlu0 %1964
      %1966 = vrot.lane.b32.xlu0 %v1953, 112
      %v1967 = vpop.permute.xlu0 %1966
      %1968 = vrot.lane.b32.xlu0 %v1954, 112
      %v1969 = vpop.permute.xlu0 %1968
      %1970 = vrot.lane.b32.xlu0 %v1955, 112
      %v1971 = vpop.permute.xlu0 %1970
      %1972 = vrot.lane.b32.xlu0 %v1956, 112
      %v1973 = vpop.permute.xlu0 %1972
      %1974 = vrot.lane.b32.xlu0 %v1957, 112
      %v1975 = vpop.permute.xlu0 %1974
      %v1976 = vsel %vm706, %v1965, %v1967
      %v1977 = vsel %vm706, %v1967, %v1969
      %v1978 = vsel %vm706, %v1971, %v1973
      %v1979 = vsel %vm706, %v1973, %v1975
      %1984 = vst [vmem:[#allocation3 + $0xe0] sm:$0xff] %v1976
      %1985 = vst [vmem:[#allocation3 + $0xe8] sm:$0xff] %v1977
      %1986 = vst [vmem:[#allocation3 + $0xf0] sm:$0xff] %v1978
      %1987 = vst [vmem:[#allocation3 + $0xf8] sm:$0xff] %v1979
      %v1988 = vld [vmem:[#allocation2 + $0x8] sm:$0xff]
      %v1989 = vld [vmem:[#allocation2 + $0x10] sm:$0xff]
      %v1990 = vld [vmem:[#allocation2 + $0x18] sm:$0xff]
      %v1991 = vld [vmem:[#allocation2 + $0x28] sm:$0xff]
      %v1992 = vld [vmem:[#allocation2 + $0x30] sm:$0xff]
      %v1993 = vld [vmem:[#allocation2 + $0x38] sm:$0xff]
      %v1994 = vsel %vm730, %v1988, 0
      %v1995 = vsel %vm731, %v1989, 0
      %v1996 = vsel %vm732, %v1990, 0
      %v1997 = vsel %vm730, %v1991, 0
      %v1998 = vsel %vm731, %v1992, 0
      %v1999 = vsel %vm732, %v1993, 0
      %2006 = vrot.lane.b32.xlu0 %v1994, 111
      %v2007 = vpop.permute.xlu0 %2006
      %2008 = vrot.lane.b32.xlu0 %v1995, 111
      %v2009 = vpop.permute.xlu0 %2008
      %2010 = vrot.lane.b32.xlu0 %v1996, 111
      %v2011 = vpop.permute.xlu0 %2010
      %2012 = vrot.lane.b32.xlu0 %v1997, 111
      %v2013 = vpop.permute.xlu0 %2012
      %2014 = vrot.lane.b32.xlu0 %v1998, 111
      %v2015 = vpop.permute.xlu0 %2014
      %2016 = vrot.lane.b32.xlu0 %v1999, 111
      %v2017 = vpop.permute.xlu0 %2016
      %v2018 = vsel %vm377, %v2007, %v2009
      %v2019 = vsel %vm377, %v2009, %v2011
      %v2020 = vsel %vm377, %v2013, %v2015
      %v2021 = vsel %vm377, %v2015, %v2017
      %2026 = vst [vmem:[#allocation3 + $0x100] sm:$0xff] %v2018
      %2027 = vst [vmem:[#allocation3 + $0x108] sm:$0xff] %v2019
      %2028 = vst [vmem:[#allocation3 + $0x110] sm:$0xff] %v2020
      %2029 = vst [vmem:[#allocation3 + $0x118] sm:$0xff] %v2021
      %s2030 = scalar_lea.vmem %s1, 96
      %v2031 = vld [vmem:[%s2030] sm:$0xff]
      %v2032 = vld [vmem:[%s2030 + $0x8] sm:$0xf]
      %v2033 = vld [vmem:[%s2030 + $0xc] sm:$0xff]
      %v2034 = vld [vmem:[%s2030 + $0x14] sm:$0xf]
      %v2035 = vld [vmem:[%s2030 + $0x18] sm:$0xff]
      %v2036 = vld [vmem:[%s2030 + $0x20] sm:$0xf]
      %v2037 = vld [vmem:[%s2030 + $0x24] sm:$0xff]
      %v2038 = vld [vmem:[%s2030 + $0x2c] sm:$0xf]
      %v2039 = vld [vmem:[#allocation3] sm:$0xff]
      %v2040 = vld [vmem:[#allocation3 + $0x8] sm:$0xff]
      %v2041 = vld [vmem:[#allocation3 + $0x10] sm:$0xff]
      %v2042 = vld [vmem:[#allocation3 + $0x18] sm:$0xff]
      %v2043 = vld [vmem:[#allocation3 + $0x20] sm:$0xff]
      %v2044 = vld [vmem:[#allocation3 + $0x28] sm:$0xff]
      %v2045 = vld [vmem:[#allocation3 + $0x30] sm:$0xff]
      %v2046 = vld [vmem:[#allocation3 + $0x38] sm:$0xff]
      %v2047 = vld [vmem:[#allocation3 + $0x40] sm:$0xff]
      %v2048 = vld [vmem:[#allocation3 + $0x48] sm:$0xff]
      %v2049 = vld [vmem:[#allocation3 + $0x50] sm:$0xff]
      %v2050 = vld [vmem:[#allocation3 + $0x58] sm:$0xff]
      %v2051 = vld [vmem:[#allocation3 + $0x60] sm:$0xff]
      %v2052 = vld [vmem:[#allocation3 + $0x68] sm:$0xff]
      %v2053 = vld [vmem:[#allocation3 + $0x70] sm:$0xff]
      %v2054 = vld [vmem:[#allocation3 + $0x78] sm:$0xff]
      %v2055 = vld [vmem:[#allocation3 + $0x80] sm:$0xff]
      %v2056 = vld [vmem:[#allocation3 + $0x88] sm:$0xff]
      %v2057 = vld [vmem:[#allocation3 + $0x90] sm:$0xff]
      %v2058 = vld [vmem:[#allocation3 + $0x98] sm:$0xff]
      %v2059 = vld [vmem:[#allocation3 + $0xa0] sm:$0xff]
      %v2060 = vld [vmem:[#allocation3 + $0xa8] sm:$0xff]
      %v2061 = vld [vmem:[#allocation3 + $0xb0] sm:$0xff]
      %v2062 = vld [vmem:[#allocation3 + $0xb8] sm:$0xff]
      %v2063 = vld [vmem:[#allocation3 + $0xc0] sm:$0xff]
      %v2064 = vld [vmem:[#allocation3 + $0xc8] sm:$0xff]
      %v2065 = vld [vmem:[#allocation3 + $0xd0] sm:$0xff]
      %v2066 = vld [vmem:[#allocation3 + $0xd8] sm:$0xff]
      %v2067 = vld [vmem:[#allocation3 + $0xe0] sm:$0xff]
      %v2068 = vld [vmem:[#allocation3 + $0xe8] sm:$0xff]
      %v2069 = vld [vmem:[#allocation3 + $0xf0] sm:$0xff]
      %v2070 = vld [vmem:[#allocation3 + $0xf8] sm:$0xff]
      %v2071 = vld [vmem:[#allocation3 + $0x100] sm:$0xff]
      %v2072 = vld [vmem:[#allocation3 + $0x108] sm:$0xff]
      %v2073 = vld [vmem:[#allocation3 + $0x110] sm:$0xff]
      %v2074 = vld [vmem:[#allocation3 + $0x118] sm:$0xff]
      %s2075 = scalar_lea.vmem %s2, 64
      %v2076 = vld [vmem:[%s2075] sm:$0xff]
      %v2077 = vld [vmem:[%s2075 + $0x8] sm:$0xff]
      %v2078 = vld [vmem:[%s2075 + $0x10] sm:$0xff]
      %v2079 = vld [vmem:[%s2075 + $0x18] sm:$0xff]
      %2081 = vset.pattern.permute.xlu0 0
      %2082 = vperm.xlu0 %2081, %v2076
      %v2083 = vpop.permute.xlu0 %2082
      %2086 = vset.pattern.permute.xlu0 0
      %2087 = vperm.xlu0 %2086, %v2077
      %v2088 = vpop.permute.xlu0 %2087
      %2091 = vset.pattern.permute.xlu0 0
      %2092 = vperm.xlu0 %2091, %v2078
      %v2093 = vpop.permute.xlu0 %2092
      %2096 = vset.pattern.permute.xlu0 0
      %2097 = vperm.xlu0 %2096, %v2079
      %v2098 = vpop.permute.xlu0 %2097
      %v2108 = vunpack.c.l.b16 %v2031
      %v2109 = vunpack.c.h.b16 %v2031
      %v2110 = vunpack.c.l.b16 %v2032
      %v2111 = vunpack.c.l.b16 %v2033
      %v2112 = vunpack.c.h.b16 %v2033
      %v2113 = vunpack.c.l.b16 %v2034
      %v2114 = vunpack.c.l.b16 %v2035
      %v2115 = vunpack.c.h.b16 %v2035
      %v2116 = vunpack.c.l.b16 %v2036
      %v2117 = vunpack.c.l.b16 %v2037
      %v2118 = vunpack.c.h.b16 %v2037
      %v2119 = vunpack.c.l.b16 %v2038
      %v2120 = vpack.c.b16 %v2111, %v2108
      %v2121 = vpack.c.b16 %v2112, %v2109
      %v2122 = vpack.c.b16 %v2113, %v2110
      %v2123 = vpack.c.b16 %v2117, %v2114
      %v2124 = vpack.c.b16 %v2118, %v2115
      %v2125 = vpack.c.b16 %v2119, %v2116
      %v2131 = vsel %vm867, %v2122, 0
      %v2134 = vsel %vm867, %v2125, 0
      %2136 = vmatprep.subr.bf16.mxu0 %v2040
      %2137 = vmatpush1.bf16.msra.mxu0 %v2039
      %2138 = vmatprep.subr.bf16.mxu0 %v2042
      %2139 = vmatpush1.bf16.msra.mxu0 %v2041
      %2140 = vmatprep.subr.bf16.mxu0 %v2044
      %2141 = vmatpush1.bf16.msra.mxu0 %v2043
      %2142 = vmatprep.subr.bf16.mxu0 %v2046
      %2143 = vmatpush1.bf16.msra.mxu0 %v2045
      %2144 = vmatprep.subr.bf16.mxu0 %v2048
      %2145 = vmatpush1.bf16.msra.mxu0 %v2047
      %2146 = vmatprep.subr.bf16.mxu0 %v2050
      %2147 = vmatpush1.bf16.msra.mxu0 %v2049
      %2148 = vmatprep.subr.bf16.mxu0 %v2052
      %2149 = vmatpush1.bf16.msra.mxu0 %v2051
      %2150 = vmatprep.subr.bf16.mxu0 %v2054
      %2151 = vmatpush1.bf16.msra.mxu0 %v2053
      %2152 = vmatprep.subr.bf16.mxu0 %v2056
      %2153 = vmatpush1.bf16.msra.mxu0 %v2055
      %2154 = vmatprep.subr.bf16.mxu0 %v2058
      %2155 = vmatpush1.bf16.msra.mxu0 %v2057
      %2156 = vmatprep.subr.bf16.mxu0 %v2060
      %2157 = vmatpush1.bf16.msra.mxu0 %v2059
      %2158 = vmatprep.subr.bf16.mxu0 %v2062
      %2159 = vmatpush1.bf16.msra.mxu0 %v2061
      %2160 = vmatprep.subr.bf16.mxu0 %v2064
      %2161 = vmatpush1.bf16.msra.mxu0 %v2063
      %2162 = vmatprep.subr.bf16.mxu0 %v2066
      %2163 = vmatpush1.bf16.msra.mxu0 %v2065
      %2164 = vmatprep.subr.bf16.mxu0 %v2068
      %2165 = vmatpush1.bf16.msra.mxu0 %v2067
      %2166 = vmatprep.subr.bf16.mxu0 %v2070
      %2167 = vmatpush1.bf16.msra.mxu0 %v2069
      %2168 = vmatprep.mubr.bf16.mxu0 %v2121
      %2169 = vmatmul.mubr.bf16.gmra.mrb[0].mxu0 %v2120
      %v2170 = vpop.f32.mrb[0].mxu0
      %v2171 = vadd.f32 %v2083, %v2170
      %v2172 = vpop.f32.mrb[0].mxu0
      %v2173 = vadd.f32 %v2083, %v2172
      %v2174 = vpop.f32.mrb[0].mxu0
      %v2175 = vadd.f32 %v2088, %v2174
      %v2176 = vpop.f32.mrb[0].mxu0
      %v2177 = vadd.f32 %v2088, %v2176
      %2178 = vmatprep.mubr.bf16.mxu0 %v2124
      %2179 = vmatmul.mubr.bf16.gmra.mrb[0].mxu0 %v2123
      %v2180 = vpop.f32.mrb[0].mxu0
      %v2181 = vadd.f32 %v2093, %v2180
      %v2182 = vpop.f32.mrb[0].mxu0
      %v2183 = vadd.f32 %v2093, %v2182
      %v2184 = vpop.f32.mrb[0].mxu0
      %v2185 = vadd.f32 %v2098, %v2184
      %v2186 = vpop.f32.mrb[0].mxu0
      %v2187 = vadd.f32 %v2098, %v2186
      %2188 = vdwg.mxu0
      %2189 = vmatprep.subr.bf16.mxu0 %v2072
      %2190 = vmatpush1.bf16.msra.mxu0 %v2071
      %2191 = vmatprep.subr.bf16.mxu0 %v2074
      %2192 = vmatpush1.bf16.msra.mxu0 %v2073
      %2193 = vmatprep.subr.bf16.mxu0 0
      %2194 = vmatpush1.bf16.msra.mxu0 0
      %2195 = vmatprep.subr.bf16.mxu0 0
      %2196 = vmatpush1.bf16.msra.mxu0 0
      %2197 = vmatprep.subr.bf16.mxu0 0
      %2198 = vmatpush1.bf16.msra.mxu0 0
      %2199 = vmatprep.subr.bf16.mxu0 0
      %2200 = vmatpush1.bf16.msra.mxu0 0
      %2201 = vmatprep.subr.bf16.mxu0 0
      %2202 = vmatpush1.bf16.msra.mxu0 0
      %2203 = vmatprep.subr.bf16.mxu0 0
      %2204 = vmatpush1.bf16.msra.mxu0 0
      %2205 = vmatprep.subr.bf16.mxu0 0
      %2206 = vmatpush1.bf16.msra.mxu0 0
      %2207 = vmatprep.subr.bf16.mxu0 0
      %2208 = vmatpush1.bf16.msra.mxu0 0
      %2209 = vmatprep.subr.bf16.mxu0 0
      %2210 = vmatpush1.bf16.msra.mxu0 0
      %2211 = vmatprep.subr.bf16.mxu0 0
      %2212 = vmatpush1.bf16.msra.mxu0 0
      %2213 = vmatprep.subr.bf16.mxu0 0
      %2214 = vmatpush1.bf16.msra.mxu0 0
      %2215 = vmatprep.subr.bf16.mxu0 0
      %2216 = vmatpush1.bf16.msra.mxu0 0
      %2217 = vmatprep.subr.bf16.mxu0 0
      %2218 = vmatpush1.bf16.msra.mxu0 0
      %2219 = vmatprep.subr.bf16.mxu0 0
      %2220 = vmatpush1.bf16.msra.mxu0 0
      %2221 = vmatprep.mubr.bf16.mxu0 0
      %2222 = vmatmul.mubr.bf16.gmra.mrb[0].mxu0 %v2131
      %v2223 = vpop.f32.mrb[0].mxu0
      %v2224 = vadd.f32 %v2171, %v2223
      %v2225 = vpop.f32.mrb[0].mxu0
      %v2226 = vadd.f32 %v2173, %v2225
      %v2227 = vpop.f32.mrb[0].mxu0
      %v2228 = vadd.f32 %v2175, %v2227
      %v2229 = vpop.f32.mrb[0].mxu0
      %v2230 = vadd.f32 %v2177, %v2229
      %2231 = vmatprep.mubr.bf16.mxu0 0
      %2232 = vmatmul.mubr.bf16.gmra.mrb[0].mxu0 %v2134
      %v2233 = vpop.f32.mrb[0].mxu0
      %v2234 = vadd.f32 %v2181, %v2233
      %v2235 = vpop.f32.mrb[0].mxu0
      %v2236 = vadd.f32 %v2183, %v2235
      %v2237 = vpop.f32.mrb[0].mxu0
      %v2238 = vadd.f32 %v2185, %v2237
      %v2239 = vpop.f32.mrb[0].mxu0
      %v2240 = vadd.f32 %v2187, %v2239
      %2241 = vdwg.mxu0
      %v2242 = vmax.f32 %v2224, 0.0
      %v2243 = vmax.f32 %v2226, 0.0
      %v2244 = vmax.f32 %v2228, 0.0
      %v2245 = vmax.f32 %v2230, 0.0
      %v2246 = vmax.f32 %v2234, 0.0
      %v2247 = vmax.f32 %v2236, 0.0
      %v2248 = vmax.f32 %v2238, 0.0
      %v2249 = vmax.f32 %v2240, 0.0
      %v2250 = vpack.c.bf16 %v2244, %v2242
      %v2251 = vpack.c.bf16 %v2245, %v2243
      %v2252 = vpack.c.bf16 %v2248, %v2246
      %v2253 = vpack.c.bf16 %v2249, %v2247
      %2254 = vst [vmem:[#allocation2 + $0x8] sm:$0xff] %v2250
      %2255 = vst [vmem:[#allocation2 + $0x10] sm:$0xff] %v2251
      %2256 = vst [vmem:[#allocation2 + $0x28] sm:$0xff] %v2252
      %2257 = vst [vmem:[#allocation2 + $0x30] sm:$0xff] %v2253
      %v2258 = vld [vmem:[#allocation2] sm:$0xff]
      %v2259 = vld [vmem:[#allocation2 + $0x8] sm:$0xff]
      %v2260 = vld [vmem:[#allocation2 + $0x10] sm:$0xff]
      %v2261 = vld [vmem:[#allocation2 + $0x20] sm:$0xff]
      %v2262 = vld [vmem:[#allocation2 + $0x28] sm:$0xff]
      %v2263 = vld [vmem:[#allocation2 + $0x30] sm:$0xff]
      %v2264 = vsel %vm379, %v2258, 0
      %v2265 = vsel %vm380, %v2259, 0
      %v2266 = vsel %vm381, %v2260, 0
      %v2267 = vsel %vm379, %v2261, 0
      %v2268 = vsel %vm380, %v2262, 0
      %v2269 = vsel %vm381, %v2263, 0
      %2276 = vrot.lane.b32.xlu0 %v2264, 17
      %v2277 = vpop.permute.xlu0 %2276
      %2278 = vrot.lane.b32.xlu0 %v2265, 17
      %v2279 = vpop.permute.xlu0 %2278
      %2280 = vrot.lane.b32.xlu0 %v2266, 17
      %v2281 = vpop.permute.xlu0 %2280
      %2282 = vrot.lane.b32.xlu0 %v2267, 17
      %v2283 = vpop.permute.xlu0 %2282
      %2284 = vrot.lane.b32.xlu0 %v2268, 17
      %v2285 = vpop.permute.xlu0 %2284
      %2286 = vrot.lane.b32.xlu0 %v2269, 17
      %v2287 = vpop.permute.xlu0 %2286
      %v2288 = vsel %vm406, %v2277, %v2279
      %v2289 = vsel %vm406, %v2279, %v2281
      %v2290 = vsel %vm406, %v2283, %v2285
      %v2291 = vsel %vm406, %v2285, %v2287
      %2296 = vst [vmem:[#allocation3] sm:$0xff] %v2288
      %2297 = vst [vmem:[#allocation3 + $0x8] sm:$0xff] %v2289
      %2298 = vst [vmem:[#allocation3 + $0x10] sm:$0xff] %v2290
      %2299 = vst [vmem:[#allocation3 + $0x18] sm:$0xff] %v2291
      %v2300 = vld [vmem:[#allocation2] sm:$0xff]
      %v2301 = vld [vmem:[#allocation2 + $0x8] sm:$0xff]
      %v2302 = vld [vmem:[#allocation2 + $0x10] sm:$0xff]
      %v2303 = vld [vmem:[#allocation2 + $0x20] sm:$0xff]
      %v2304 = vld [vmem:[#allocation2 + $0x28] sm:$0xff]
      %v2305 = vld [vmem:[#allocation2 + $0x30] sm:$0xff]
      %2312 = vrot.lane.b32.xlu0 %v2300, 16
      %v2313 = vpop.permute.xlu0 %2312
      %2314 = vrot.lane.b32.xlu0 %v2301, 16
      %v2315 = vpop.permute.xlu0 %2314
      %2316 = vrot.lane.b32.xlu0 %v2302, 16
      %v2317 = vpop.permute.xlu0 %2316
      %2318 = vrot.lane.b32.xlu0 %v2303, 16
      %v2319 = vpop.permute.xlu0 %2318
      %2320 = vrot.lane.b32.xlu0 %v2304, 16
      %v2321 = vpop.permute.xlu0 %2320
      %2322 = vrot.lane.b32.xlu0 %v2305, 16
      %v2323 = vpop.permute.xlu0 %2322
      %v2324 = vsel %vm443, %v2313, %v2315
      %v2325 = vsel %vm443, %v2315, %v2317
      %v2326 = vsel %vm443, %v2319, %v2321
      %v2327 = vsel %vm443, %v2321, %v2323
      %2332 = vst [vmem:[#allocation3 + $0x20] sm:$0xff] %v2324
      %2333 = vst [vmem:[#allocation3 + $0x28] sm:$0xff] %v2325
      %2334 = vst [vmem:[#allocation3 + $0x30] sm:$0xff] %v2326
      %2335 = vst [vmem:[#allocation3 + $0x38] sm:$0xff] %v2327
      %v2336 = vld [vmem:[#allocation2] sm:$0xff]
      %v2337 = vld [vmem:[#allocation2 + $0x8] sm:$0xff]
      %v2338 = vld [vmem:[#allocation2 + $0x10] sm:$0xff]
      %v2339 = vld [vmem:[#allocation2 + $0x20] sm:$0xff]
      %v2340 = vld [vmem:[#allocation2 + $0x28] sm:$0xff]
      %v2341 = vld [vmem:[#allocation2 + $0x30] sm:$0xff]
      %v2342 = vsel %vm482, %v2336, 0
      %v2343 = vsel %vm483, %v2337, 0
      %v2344 = vsel %vm484, %v2338, 0
      %v2345 = vsel %vm482, %v2339, 0
      %v2346 = vsel %vm483, %v2340, 0
      %v2347 = vsel %vm484, %v2341, 0
      %2354 = vrot.lane.b32.xlu0 %v2342, 15
      %v2355 = vpop.permute.xlu0 %2354
      %2356 = vrot.lane.b32.xlu0 %v2343, 15
      %v2357 = vpop.permute.xlu0 %2356
      %2358 = vrot.lane.b32.xlu0 %v2344, 15
      %v2359 = vpop.permute.xlu0 %2358
      %2360 = vrot.lane.b32.xlu0 %v2345, 15
      %v2361 = vpop.permute.xlu0 %2360
      %2362 = vrot.lane.b32.xlu0 %v2346, 15
      %v2363 = vpop.permute.xlu0 %2362
      %2364 = vrot.lane.b32.xlu0 %v2347, 15
      %v2365 = vpop.permute.xlu0 %2364
      %v2366 = vsel %vm509, %v2355, %v2357
      %v2367 = vsel %vm509, %v2357, %v2359
      %v2368 = vsel %vm509, %v2361, %v2363
      %v2369 = vsel %vm509, %v2363, %v2365
      %2374 = vst [vmem:[#allocation3 + $0x40] sm:$0xff] %v2366
      %2375 = vst [vmem:[#allocation3 + $0x48] sm:$0xff] %v2367
      %2376 = vst [vmem:[#allocation3 + $0x50] sm:$0xff] %v2368
      %2377 = vst [vmem:[#allocation3 + $0x58] sm:$0xff] %v2369
      %v2378 = vld [vmem:[#allocation2] sm:$0xff]
      %v2379 = vld [vmem:[#allocation2 + $0x8] sm:$0xff]
      %v2380 = vld [vmem:[#allocation2 + $0x10] sm:$0xff]
      %v2381 = vld [vmem:[#allocation2 + $0x20] sm:$0xff]
      %v2382 = vld [vmem:[#allocation2 + $0x28] sm:$0xff]
      %v2383 = vld [vmem:[#allocation2 + $0x30] sm:$0xff]
      %v2384 = vsel %vm534, %v2378, 0
      %v2385 = vsel %vm535, %v2379, 0
      %v2386 = vsel %vm536, %v2380, 0
      %v2387 = vsel %vm534, %v2381, 0
      %v2388 = vsel %vm535, %v2382, 0
      %v2389 = vsel %vm536, %v2383, 0
      %2396 = vrot.lane.b32.xlu0 %v2384, 1
      %v2397 = vpop.permute.xlu0 %2396
      %2398 = vrot.lane.b32.xlu0 %v2385, 1
      %v2399 = vpop.permute.xlu0 %2398
      %2400 = vrot.lane.b32.xlu0 %v2386, 1
      %v2401 = vpop.permute.xlu0 %2400
      %2402 = vrot.lane.b32.xlu0 %v2387, 1
      %v2403 = vpop.permute.xlu0 %2402
      %2404 = vrot.lane.b32.xlu0 %v2388, 1
      %v2405 = vpop.permute.xlu0 %2404
      %2406 = vrot.lane.b32.xlu0 %v2389, 1
      %v2407 = vpop.permute.xlu0 %2406
      %v2408 = vsel %vm561, %v2397, %v2399
      %v2409 = vsel %vm561, %v2399, %v2401
      %v2410 = vsel %vm561, %v2403, %v2405
      %v2411 = vsel %vm561, %v2405, %v2407
      %2416 = vst [vmem:[#allocation3 + $0x60] sm:$0xff] %v2408
      %2417 = vst [vmem:[#allocation3 + $0x68] sm:$0xff] %v2409
      %2418 = vst [vmem:[#allocation3 + $0x70] sm:$0xff] %v2410
      %2419 = vst [vmem:[#allocation3 + $0x78] sm:$0xff] %v2411
      %v2420 = vld [vmem:[#allocation2 + $0x8] sm:$0xff]
      %v2421 = vld [vmem:[#allocation2 + $0x10] sm:$0xff]
      %v2422 = vld [vmem:[#allocation2 + $0x28] sm:$0xff]
      %v2423 = vld [vmem:[#allocation2 + $0x30] sm:$0xff]
      %2424 = vst [vmem:[#allocation3 + $0x80] sm:$0xff] %v2420
      %2425 = vst [vmem:[#allocation3 + $0x88] sm:$0xff] %v2421
      %2426 = vst [vmem:[#allocation3 + $0x90] sm:$0xff] %v2422
      %2427 = vst [vmem:[#allocation3 + $0x98] sm:$0xff] %v2423
      %v2428 = vld [vmem:[#allocation2 + $0x8] sm:$0xff]
      %v2429 = vld [vmem:[#allocation2 + $0x10] sm:$0xff]
      %v2430 = vld [vmem:[#allocation2 + $0x18] sm:$0xff]
      %v2431 = vld [vmem:[#allocation2 + $0x28] sm:$0xff]
      %v2432 = vld [vmem:[#allocation2 + $0x30] sm:$0xff]
      %v2433 = vld [vmem:[#allocation2 + $0x38] sm:$0xff]
      %v2434 = vsel %vm593, %v2428, 0
      %v2435 = vsel %vm594, %v2429, 0
      %v2436 = vsel %vm595, %v2430, 0
      %v2437 = vsel %vm593, %v2431, 0
      %v2438 = vsel %vm594, %v2432, 0
      %v2439 = vsel %vm595, %v2433, 0
      %2446 = vrot.lane.b32.xlu0 %v2434, 127
      %v2447 = vpop.permute.xlu0 %2446
      %2448 = vrot.lane.b32.xlu0 %v2435, 127
      %v2449 = vpop.permute.xlu0 %2448
      %2450 = vrot.lane.b32.xlu0 %v2436, 127
      %v2451 = vpop.permute.xlu0 %2450
      %2452 = vrot.lane.b32.xlu0 %v2437, 127
      %v2453 = vpop.permute.xlu0 %2452
      %2454 = vrot.lane.b32.xlu0 %v2438, 127
      %v2455 = vpop.permute.xlu0 %2454
      %2456 = vrot.lane.b32.xlu0 %v2439, 127
      %v2457 = vpop.permute.xlu0 %2456
      %v2458 = vsel %vm532, %v2447, %v2449
      %v2459 = vsel %vm532, %v2449, %v2451
      %v2460 = vsel %vm532, %v2453, %v2455
      %v2461 = vsel %vm532, %v2455, %v2457
      %2466 = vst [vmem:[#allocation3 + $0xa0] sm:$0xff] %v2458
      %2467 = vst [vmem:[#allocation3 + $0xa8] sm:$0xff] %v2459
      %2468 = vst [vmem:[#allocation3 + $0xb0] sm:$0xff] %v2460
      %2469 = vst [vmem:[#allocation3 + $0xb8] sm:$0xff] %v2461
      %v2470 = vld [vmem:[#allocation2 + $0x8] sm:$0xff]
      %v2471 = vld [vmem:[#allocation2 + $0x10] sm:$0xff]
      %v2472 = vld [vmem:[#allocation2 + $0x18] sm:$0xff]
      %v2473 = vld [vmem:[#allocation2 + $0x28] sm:$0xff]
      %v2474 = vld [vmem:[#allocation2 + $0x30] sm:$0xff]
      %v2475 = vld [vmem:[#allocation2 + $0x38] sm:$0xff]
      %v2476 = vsel %vm643, %v2470, 0
      %v2477 = vsel %vm644, %v2471, 0
      %v2478 = vsel %vm645, %v2472, 0
      %v2479 = vsel %vm643, %v2473, 0
      %v2480 = vsel %vm644, %v2474, 0
      %v2481 = vsel %vm645, %v2475, 0
      %2488 = vrot.lane.b32.xlu0 %v2476, 113
      %v2489 = vpop.permute.xlu0 %2488
      %2490 = vrot.lane.b32.xlu0 %v2477, 113
      %v2491 = vpop.permute.xlu0 %2490
      %2492 = vrot.lane.b32.xlu0 %v2478, 113
      %v2493 = vpop.permute.xlu0 %2492
      %2494 = vrot.lane.b32.xlu0 %v2479, 113
      %v2495 = vpop.permute.xlu0 %2494
      %2496 = vrot.lane.b32.xlu0 %v2480, 113
      %v2497 = vpop.permute.xlu0 %2496
      %2498 = vrot.lane.b32.xlu0 %v2481, 113
      %v2499 = vpop.permute.xlu0 %2498
      %v2500 = vsel %vm480, %v2489, %v2491
      %v2501 = vsel %vm480, %v2491, %v2493
      %v2502 = vsel %vm480, %v2495, %v2497
      %v2503 = vsel %vm480, %v2497, %v2499
      %2508 = vst [vmem:[#allocation3 + $0xc0] sm:$0xff] %v2500
      %2509 = vst [vmem:[#allocation3 + $0xc8] sm:$0xff] %v2501
      %2510 = vst [vmem:[#allocation3 + $0xd0] sm:$0xff] %v2502
      %2511 = vst [vmem:[#allocation3 + $0xd8] sm:$0xff] %v2503
      %v2512 = vld [vmem:[#allocation2 + $0x8] sm:$0xff]
      %v2513 = vld [vmem:[#allocation2 + $0x10] sm:$0xff]
      %v2514 = vld [vmem:[#allocation2 + $0x18] sm:$0xff]
      %v2515 = vld [vmem:[#allocation2 + $0x28] sm:$0xff]
      %v2516 = vld [vmem:[#allocation2 + $0x30] sm:$0xff]
      %v2517 = vld [vmem:[#allocation2 + $0x38] sm:$0xff]
      %2524 = vrot.lane.b32.xlu0 %v2512, 112
      %v2525 = vpop.permute.xlu0 %2524
      %2526 = vrot.lane.b32.xlu0 %v2513, 112
      %v2527 = vpop.permute.xlu0 %2526
      %2528 = vrot.lane.b32.xlu0 %v2514, 112
      %v2529 = vpop.permute.xlu0 %2528
      %2530 = vrot.lane.b32.xlu0 %v2515, 112
      %v2531 = vpop.permute.xlu0 %2530
      %2532 = vrot.lane.b32.xlu0 %v2516, 112
      %v2533 = vpop.permute.xlu0 %2532
      %2534 = vrot.lane.b32.xlu0 %v2517, 112
      %v2535 = vpop.permute.xlu0 %2534
      %v2536 = vsel %vm706, %v2525, %v2527
      %v2537 = vsel %vm706, %v2527, %v2529
      %v2538 = vsel %vm706, %v2531, %v2533
      %v2539 = vsel %vm706, %v2533, %v2535
      %2544 = vst [vmem:[#allocation3 + $0xe0] sm:$0xff] %v2536
      %2545 = vst [vmem:[#allocation3 + $0xe8] sm:$0xff] %v2537
      %2546 = vst [vmem:[#allocation3 + $0xf0] sm:$0xff] %v2538
      %2547 = vst [vmem:[#allocation3 + $0xf8] sm:$0xff] %v2539
      %v2548 = vld [vmem:[#allocation2 + $0x8] sm:$0xff]
      %v2549 = vld [vmem:[#allocation2 + $0x10] sm:$0xff]
      %v2550 = vld [vmem:[#allocation2 + $0x18] sm:$0xff]
      %v2551 = vld [vmem:[#allocation2 + $0x28] sm:$0xff]
      %v2552 = vld [vmem:[#allocation2 + $0x30] sm:$0xff]
      %v2553 = vld [vmem:[#allocation2 + $0x38] sm:$0xff]
      %v2554 = vsel %vm730, %v2548, 0
      %v2555 = vsel %vm731, %v2549, 0
      %v2556 = vsel %vm732, %v2550, 0
      %v2557 = vsel %vm730, %v2551, 0
      %v2558 = vsel %vm731, %v2552, 0
      %v2559 = vsel %vm732, %v2553, 0
      %2566 = vrot.lane.b32.xlu0 %v2554, 111
      %v2567 = vpop.permute.xlu0 %2566
      %2568 = vrot.lane.b32.xlu0 %v2555, 111
      %v2569 = vpop.permute.xlu0 %2568
      %2570 = vrot.lane.b32.xlu0 %v2556, 111
      %v2571 = vpop.permute.xlu0 %2570
      %2572 = vrot.lane.b32.xlu0 %v2557, 111
      %v2573 = vpop.permute.xlu0 %2572
      %2574 = vrot.lane.b32.xlu0 %v2558, 111
      %v2575 = vpop.permute.xlu0 %2574
      %2576 = vrot.lane.b32.xlu0 %v2559, 111
      %v2577 = vpop.permute.xlu0 %2576
      %v2578 = vsel %vm377, %v2567, %v2569
      %v2579 = vsel %vm377, %v2569, %v2571
      %v2580 = vsel %vm377, %v2573, %v2575
      %v2581 = vsel %vm377, %v2575, %v2577
      %2586 = vst [vmem:[#allocation3 + $0x100] sm:$0xff] %v2578
      %2587 = vst [vmem:[#allocation3 + $0x108] sm:$0xff] %v2579
      %2588 = vst [vmem:[#allocation3 + $0x110] sm:$0xff] %v2580
      %2589 = vst [vmem:[#allocation3 + $0x118] sm:$0xff] %v2581
      %s2590 = scalar_lea.vmem %s1, 144
      %v2591 = vld [vmem:[%s2590] sm:$0xff]
      %v2592 = vld [vmem:[%s2590 + $0x8] sm:$0xf]
      %v2593 = vld [vmem:[%s2590 + $0xc] sm:$0xff]
      %v2594 = vld [vmem:[%s2590 + $0x14] sm:$0xf]
      %v2595 = vld [vmem:[%s2590 + $0x18] sm:$0xff]
      %v2596 = vld [vmem:[%s2590 + $0x20] sm:$0xf]
      %v2597 = vld [vmem:[%s2590 + $0x24] sm:$0xff]
      %v2598 = vld [vmem:[%s2590 + $0x2c] sm:$0xf]
      %v2599 = vld [vmem:[#allocation3] sm:$0xff]
      %v2600 = vld [vmem:[#allocation3 + $0x8] sm:$0xff]
      %v2601 = vld [vmem:[#allocation3 + $0x10] sm:$0xff]
      %v2602 = vld [vmem:[#allocation3 + $0x18] sm:$0xff]
      %v2603 = vld [vmem:[#allocation3 + $0x20] sm:$0xff]
      %v2604 = vld [vmem:[#allocation3 + $0x28] sm:$0xff]
      %v2605 = vld [vmem:[#allocation3 + $0x30] sm:$0xff]
      %v2606 = vld [vmem:[#allocation3 + $0x38] sm:$0xff]
      %v2607 = vld [vmem:[#allocation3 + $0x40] sm:$0xff]
      %v2608 = vld [vmem:[#allocation3 + $0x48] sm:$0xff]
      %v2609 = vld [vmem:[#allocation3 + $0x50] sm:$0xff]
      %v2610 = vld [vmem:[#allocation3 + $0x58] sm:$0xff]
      %v2611 = vld [vmem:[#allocation3 + $0x60] sm:$0xff]
      %v2612 = vld [vmem:[#allocation3 + $0x68] sm:$0xff]
      %v2613 = vld [vmem:[#allocation3 + $0x70] sm:$0xff]
      %v2614 = vld [vmem:[#allocation3 + $0x78] sm:$0xff]
      %v2615 = vld [vmem:[#allocation3 + $0x80] sm:$0xff]
      %v2616 = vld [vmem:[#allocation3 + $0x88] sm:$0xff]
      %v2617 = vld [vmem:[#allocation3 + $0x90] sm:$0xff]
      %v2618 = vld [vmem:[#allocation3 + $0x98] sm:$0xff]
      %v2619 = vld [vmem:[#allocation3 + $0xa0] sm:$0xff]
      %v2620 = vld [vmem:[#allocation3 + $0xa8] sm:$0xff]
      %v2621 = vld [vmem:[#allocation3 + $0xb0] sm:$0xff]
      %v2622 = vld [vmem:[#allocation3 + $0xb8] sm:$0xff]
      %v2623 = vld [vmem:[#allocation3 + $0xc0] sm:$0xff]
      %v2624 = vld [vmem:[#allocation3 + $0xc8] sm:$0xff]
      %v2625 = vld [vmem:[#allocation3 + $0xd0] sm:$0xff]
      %v2626 = vld [vmem:[#allocation3 + $0xd8] sm:$0xff]
      %v2627 = vld [vmem:[#allocation3 + $0xe0] sm:$0xff]
      %v2628 = vld [vmem:[#allocation3 + $0xe8] sm:$0xff]
      %v2629 = vld [vmem:[#allocation3 + $0xf0] sm:$0xff]
      %v2630 = vld [vmem:[#allocation3 + $0xf8] sm:$0xff]
      %v2631 = vld [vmem:[#allocation3 + $0x100] sm:$0xff]
      %v2632 = vld [vmem:[#allocation3 + $0x108] sm:$0xff]
      %v2633 = vld [vmem:[#allocation3 + $0x110] sm:$0xff]
      %v2634 = vld [vmem:[#allocation3 + $0x118] sm:$0xff]
      %s2635 = scalar_lea.vmem %s2, 96
      %v2636 = vld [vmem:[%s2635] sm:$0xff]
      %v2637 = vld [vmem:[%s2635 + $0x8] sm:$0xff]
      %v2638 = vld [vmem:[%s2635 + $0x10] sm:$0xff]
      %v2639 = vld [vmem:[%s2635 + $0x18] sm:$0xff]
      %2641 = vset.pattern.permute.xlu0 0
      %2642 = vperm.xlu0 %2641, %v2636
      %v2643 = vpop.permute.xlu0 %2642
      %2646 = vset.pattern.permute.xlu0 0
      %2647 = vperm.xlu0 %2646, %v2637
      %v2648 = vpop.permute.xlu0 %2647
      %2651 = vset.pattern.permute.xlu0 0
      %2652 = vperm.xlu0 %2651, %v2638
      %v2653 = vpop.permute.xlu0 %2652
      %2656 = vset.pattern.permute.xlu0 0
      %2657 = vperm.xlu0 %2656, %v2639
      %v2658 = vpop.permute.xlu0 %2657
      %v2668 = vunpack.c.l.b16 %v2591
      %v2669 = vunpack.c.h.b16 %v2591
      %v2670 = vunpack.c.l.b16 %v2592
      %v2671 = vunpack.c.l.b16 %v2593
      %v2672 = vunpack.c.h.b16 %v2593
      %v2673 = vunpack.c.l.b16 %v2594
      %v2674 = vunpack.c.l.b16 %v2595
      %v2675 = vunpack.c.h.b16 %v2595
      %v2676 = vunpack.c.l.b16 %v2596
      %v2677 = vunpack.c.l.b16 %v2597
      %v2678 = vunpack.c.h.b16 %v2597
      %v2679 = vunpack.c.l.b16 %v2598
      %v2680 = vpack.c.b16 %v2671, %v2668
      %v2681 = vpack.c.b16 %v2672, %v2669
      %v2682 = vpack.c.b16 %v2673, %v2670
      %v2683 = vpack.c.b16 %v2677, %v2674
      %v2684 = vpack.c.b16 %v2678, %v2675
      %v2685 = vpack.c.b16 %v2679, %v2676
      %v2691 = vsel %vm867, %v2682, 0
      %v2694 = vsel %vm867, %v2685, 0
      %2696 = vmatprep.subr.bf16.mxu0 %v2600
      %2697 = vmatpush1.bf16.msra.mxu0 %v2599
      %2698 = vmatprep.subr.bf16.mxu0 %v2602
      %2699 = vmatpush1.bf16.msra.mxu0 %v2601
      %2700 = vmatprep.subr.bf16.mxu0 %v2604
      %2701 = vmatpush1.bf16.msra.mxu0 %v2603
      %2702 = vmatprep.subr.bf16.mxu0 %v2606
      %2703 = vmatpush1.bf16.msra.mxu0 %v2605
      %2704 = vmatprep.subr.bf16.mxu0 %v2608
      %2705 = vmatpush1.bf16.msra.mxu0 %v2607
      %2706 = vmatprep.subr.bf16.mxu0 %v2610
      %2707 = vmatpush1.bf16.msra.mxu0 %v2609
      %2708 = vmatprep.subr.bf16.mxu0 %v2612
      %2709 = vmatpush1.bf16.msra.mxu0 %v2611
      %2710 = vmatprep.subr.bf16.mxu0 %v2614
      %2711 = vmatpush1.bf16.msra.mxu0 %v2613
      %2712 = vmatprep.subr.bf16.mxu0 %v2616
      %2713 = vmatpush1.bf16.msra.mxu0 %v2615
      %2714 = vmatprep.subr.bf16.mxu0 %v2618
      %2715 = vmatpush1.bf16.msra.mxu0 %v2617
      %2716 = vmatprep.subr.bf16.mxu0 %v2620
      %2717 = vmatpush1.bf16.msra.mxu0 %v2619
      %2718 = vmatprep.subr.bf16.mxu0 %v2622
      %2719 = vmatpush1.bf16.msra.mxu0 %v2621
      %2720 = vmatprep.subr.bf16.mxu0 %v2624
      %2721 = vmatpush1.bf16.msra.mxu0 %v2623
      %2722 = vmatprep.subr.bf16.mxu0 %v2626
      %2723 = vmatpush1.bf16.msra.mxu0 %v2625
      %2724 = vmatprep.subr.bf16.mxu0 %v2628
      %2725 = vmatpush1.bf16.msra.mxu0 %v2627
      %2726 = vmatprep.subr.bf16.mxu0 %v2630
      %2727 = vmatpush1.bf16.msra.mxu0 %v2629
      %2728 = vmatprep.mubr.bf16.mxu0 %v2681
      %2729 = vmatmul.mubr.bf16.gmra.mrb[0].mxu0 %v2680
      %v2730 = vpop.f32.mrb[0].mxu0
      %v2731 = vadd.f32 %v2643, %v2730
      %v2732 = vpop.f32.mrb[0].mxu0
      %v2733 = vadd.f32 %v2643, %v2732
      %v2734 = vpop.f32.mrb[0].mxu0
      %v2735 = vadd.f32 %v2648, %v2734
      %v2736 = vpop.f32.mrb[0].mxu0
      %v2737 = vadd.f32 %v2648, %v2736
      %2738 = vmatprep.mubr.bf16.mxu0 %v2684
      %2739 = vmatmul.mubr.bf16.gmra.mrb[0].mxu0 %v2683
      %v2740 = vpop.f32.mrb[0].mxu0
      %v2741 = vadd.f32 %v2653, %v2740
      %v2742 = vpop.f32.mrb[0].mxu0
      %v2743 = vadd.f32 %v2653, %v2742
      %v2744 = vpop.f32.mrb[0].mxu0
      %v2745 = vadd.f32 %v2658, %v2744
      %v2746 = vpop.f32.mrb[0].mxu0
      %v2747 = vadd.f32 %v2658, %v2746
      %2748 = vdwg.mxu0
      %2749 = vmatprep.subr.bf16.mxu0 %v2632
      %2750 = vmatpush1.bf16.msra.mxu0 %v2631
      %2751 = vmatprep.subr.bf16.mxu0 %v2634
      %2752 = vmatpush1.bf16.msra.mxu0 %v2633
      %2753 = vmatprep.subr.bf16.mxu0 0
      %2754 = vmatpush1.bf16.msra.mxu0 0
      %2755 = vmatprep.subr.bf16.mxu0 0
      %2756 = vmatpush1.bf16.msra.mxu0 0
      %2757 = vmatprep.subr.bf16.mxu0 0
      %2758 = vmatpush1.bf16.msra.mxu0 0
      %2759 = vmatprep.subr.bf16.mxu0 0
      %2760 = vmatpush1.bf16.msra.mxu0 0
      %2761 = vmatprep.subr.bf16.mxu0 0
      %2762 = vmatpush1.bf16.msra.mxu0 0
      %2763 = vmatprep.subr.bf16.mxu0 0
      %2764 = vmatpush1.bf16.msra.mxu0 0
      %2765 = vmatprep.subr.bf16.mxu0 0
      %2766 = vmatpush1.bf16.msra.mxu0 0
      %2767 = vmatprep.subr.bf16.mxu0 0
      %2768 = vmatpush1.bf16.msra.mxu0 0
      %2769 = vmatprep.subr.bf16.mxu0 0
      %2770 = vmatpush1.bf16.msra.mxu0 0
      %2771 = vmatprep.subr.bf16.mxu0 0
      %2772 = vmatpush1.bf16.msra.mxu0 0
      %2773 = vmatprep.subr.bf16.mxu0 0
      %2774 = vmatpush1.bf16.msra.mxu0 0
      %2775 = vmatprep.subr.bf16.mxu0 0
      %2776 = vmatpush1.bf16.msra.mxu0 0
      %2777 = vmatprep.subr.bf16.mxu0 0
      %2778 = vmatpush1.bf16.msra.mxu0 0
      %2779 = vmatprep.subr.bf16.mxu0 0
      %2780 = vmatpush1.bf16.msra.mxu0 0
      %2781 = vmatprep.mubr.bf16.mxu0 0
      %2782 = vmatmul.mubr.bf16.gmra.mrb[0].mxu0 %v2691
      %v2783 = vpop.f32.mrb[0].mxu0
      %v2784 = vadd.f32 %v2731, %v2783
      %v2785 = vpop.f32.mrb[0].mxu0
      %v2786 = vadd.f32 %v2733, %v2785
      %v2787 = vpop.f32.mrb[0].mxu0
      %v2788 = vadd.f32 %v2735, %v2787
      %v2789 = vpop.f32.mrb[0].mxu0
      %v2790 = vadd.f32 %v2737, %v2789
      %2791 = vmatprep.mubr.bf16.mxu0 0
      %2792 = vmatmul.mubr.bf16.gmra.mrb[0].mxu0 %v2694
      %v2793 = vpop.f32.mrb[0].mxu0
      %v2794 = vadd.f32 %v2741, %v2793
      %v2795 = vpop.f32.mrb[0].mxu0
      %v2796 = vadd.f32 %v2743, %v2795
      %v2797 = vpop.f32.mrb[0].mxu0
      %v2798 = vadd.f32 %v2745, %v2797
      %v2799 = vpop.f32.mrb[0].mxu0
      %v2800 = vadd.f32 %v2747, %v2799
      %2801 = vdwg.mxu0
      %v2802 = vadd.f32 %v2784, %v2786
      %2803 = vadd.xlane.f32.xlu0 %v2802
      %v2804 = vpop.xlane.xlu0 %2803
      %v2805 = vadd.f32 %v2788, %v2790
      %2806 = vadd.xlane.f32.xlu0 %v2805
      %v2807 = vpop.xlane.xlu0 %2806
      %v2808 = vadd.f32 %v2794, %v2796
      %2809 = vadd.xlane.f32.xlu0 %v2808
      %v2810 = vpop.xlane.xlu0 %2809
      %v2811 = vadd.f32 %v2798, %v2800
      %2812 = vadd.xlane.f32.xlu0 %v2811
      %v2813 = vpop.xlane.xlu0 %2812
      %v2814 = vmul.f32 %v2804, %v1552
      %v2815 = vmul.f32 %v2807, %v1552
      %v2816 = vmul.f32 %v2810, %v1552
      %v2817 = vmul.f32 %v2813, %v1552
      %s2818 = scalar_lea.vmem %s3, 32
      %v2819 = vld [vmem:[%s2818] sm:$0xff]
      %v2820 = vld [vmem:[%s2818 + $0x8] sm:$0xff]
      %v2821 = vld [vmem:[%s2818 + $0x10] sm:$0xff]
      %v2822 = vld [vmem:[%s2818 + $0x18] sm:$0xff]
      %v2823 = vmul.f32 %v2819, %v2814
      %v2824 = vmul.f32 %v2820, %v2815
      %v2825 = vmul.f32 %v2821, %v2816
      %v2826 = vmul.f32 %v2822, %v2817
      %v2827 = vsel %vm1565, %v2823, 0.0
      %v2828 = vsel %vm1565, %v2824, 0.0
      %v2829 = vadd.f32 %v2827, %v2828
      %v2830 = vsel %vm1565, %v2825, 0.0
      %v2831 = vadd.f32 %v2829, %v2830
      %v2832 = vsel %vm1565, %v2826, 0.0
      %v2833 = vadd.f32 %v2831, %v2832
      %v2834 = vrot.slane %v2833, 4
      %v2835 = vadd.f32 %v2833, %v2834
      %v2836 = vrot.slane %v2835, 2
      %v2837 = vadd.f32 %v2835, %v2836
      %v2838 = vrot.slane %v2837, 1
      %v2839 = vadd.f32 %v2837, %v2838
      %s2840 = scalar_lea.vmem %s4, 1
      %v2841 = vld [vmem:[%s2840] sm:$0x1]
      %v2842 = vadd.f32 %v2839, %v2841
      %v2843 = vmax.f32 %v2842, 0.0
      %s2844 = scalar_lea.vmem %s5, 32
      %v2845 = vld [vmem:[%s2844] sm:$0xff]
      %v2846 = vld [vmem:[%s2844 + $0x8] sm:$0xff]
      %v2847 = vld [vmem:[%s2844 + $0x10] sm:$0xff]
      %v2848 = vld [vmem:[%s2844 + $0x18] sm:$0xff]
      %v2849 = vlaneseq
      %v2850 = vshrl.u32 %v2849, 7
      %v2851 = vsub.s32 0, %v2850
      %v2852 = vrot.slane %v2843, %v2851
      %v2853 = vmul.f32 %v2845, %v2852
      %v2854 = vmul.f32 %v2846, %v2852
      %v2855 = vmul.f32 %v2847, %v2852
      %v2856 = vmul.f32 %v2848, %v2852
      %v2857 = vsel %vm1565, %v2853, 0.0
      %2858 = vadd.xlane.f32.xlu0 %v2857
      %v2859 = vpop.xlane.xlu0 %2858
      %v2860 = vsel %vm1565, %v2854, 0.0
      %2861 = vadd.xlane.f32.xlu0 %v2860
      %v2862 = vpop.xlane.xlu0 %2861
      %v2863 = vsel %vm1565, %v2855, 0.0
      %2864 = vadd.xlane.f32.xlu0 %v2863
      %v2865 = vpop.xlane.xlu0 %2864
      %v2866 = vsel %vm1565, %v2856, 0.0
      %2867 = vadd.xlane.f32.xlu0 %v2866
      %v2868 = vpop.xlane.xlu0 %2867
      %s2869 = scalar_lea.vmem %s6, 32
      %v2870 = vld [vmem:[%s2869] sm:$0xff]
      %v2871 = vld [vmem:[%s2869 + $0x8] sm:$0xff]
      %v2872 = vld [vmem:[%s2869 + $0x10] sm:$0xff]
      %v2873 = vld [vmem:[%s2869 + $0x18] sm:$0xff]
      %v2874 = vadd.f32 %v2859, %v2870
      %v2875 = vadd.f32 %v2862, %v2871
      %v2876 = vadd.f32 %v2865, %v2872
      %v2877 = vadd.f32 %v2868, %v2873
      %v2878 = vsub.f32 0.0, %v2874
      %v2879 = vsub.f32 0.0, %v2875
      %v2880 = vsub.f32 0.0, %v2876
      %v2881 = vsub.f32 0.0, %v2877
      %v2882 = vmul.f32 %v2878, 1.442695
      %v2883 = vpow.pop %v2882
      %v2884 = vmul.f32 %v2879, 1.442695
      %v2885 = vpow.pop %v2884
      %v2886 = vmul.f32 %v2880, 1.442695
      %v2887 = vpow.pop %v2886
      %v2888 = vmul.f32 %v2881, 1.442695
      %v2889 = vpow.pop %v2888
      %v2890 = vadd.f32 %v2883, 1.0
      %v2891 = vadd.f32 %v2885, 1.0
      %v2892 = vadd.f32 %v2887, 1.0
      %v2893 = vadd.f32 %v2889, 1.0
      %v2894 = vrcp.pop %v2890
      %v2895 = vmul.f32 1.0, %v2894
      %v2896 = vrcp.pop %v2891
      %v2897 = vmul.f32 1.0, %v2896
      %v2898 = vrcp.pop %v2892
      %v2899 = vmul.f32 1.0, %v2898
      %v2900 = vrcp.pop %v2893
      %v2901 = vmul.f32 1.0, %v2900
      %2903 = vset.pattern.permute.xlu0 0
      %2904 = vperm.xlu0 %2903, %v2895
      %v2905 = vpop.permute.xlu0 %2904
      %2908 = vset.pattern.permute.xlu0 0
      %2909 = vperm.xlu0 %2908, %v2897
      %v2910 = vpop.permute.xlu0 %2909
      %2913 = vset.pattern.permute.xlu0 0
      %2914 = vperm.xlu0 %2913, %v2899
      %v2915 = vpop.permute.xlu0 %2914
      %2918 = vset.pattern.permute.xlu0 0
      %2919 = vperm.xlu0 %2918, %v2901
      %v2920 = vpop.permute.xlu0 %2919
      %v2922 = vmul.f32 %v2784, %v2905
      %v2923 = vmul.f32 %v2786, %v2905
      %v2924 = vmul.f32 %v2788, %v2910
      %v2925 = vmul.f32 %v2790, %v2910
      %v2926 = vmul.f32 %v2794, %v2915
      %v2927 = vmul.f32 %v2796, %v2915
      %v2928 = vmul.f32 %v2798, %v2920
      %v2929 = vmul.f32 %v2800, %v2920
      %v2930 = vadd.f32 %v2922, %v1682
      %v2931 = vadd.f32 %v2923, %v1683
      %v2932 = vadd.f32 %v2924, %v1684
      %v2933 = vadd.f32 %v2925, %v1685
      %v2934 = vadd.f32 %v2926, %v1686
      %v2935 = vadd.f32 %v2927, %v1687
      %v2936 = vadd.f32 %v2928, %v1688
      %v2937 = vadd.f32 %v2929, %v1689
      %2938 = vst [vmem:[#allocation4] sm:$0xff] %v2930
      %2939 = vst [vmem:[#allocation4 + $0x8] sm:$0xff] %v2931
      %2940 = vst [vmem:[#allocation4 + $0x10] sm:$0xff] %v2932
      %2941 = vst [vmem:[#allocation4 + $0x18] sm:$0xff] %v2933
      %2942 = vst [vmem:[#allocation4 + $0x20] sm:$0xff] %v2934
      %2943 = vst [vmem:[#allocation4 + $0x28] sm:$0xff] %v2935
      %2944 = vst [vmem:[#allocation4 + $0x30] sm:$0xff] %v2936
      %2945 = vst [vmem:[#allocation4 + $0x38] sm:$0xff] %v2937
      %v2946 = vld [vmem:[#allocation4] sm:$0xff]
      %v2947 = vld [vmem:[#allocation4 + $0x8] sm:$0xff]
      %v2948 = vld [vmem:[#allocation4 + $0x10] sm:$0xff]
      %v2949 = vld [vmem:[#allocation4 + $0x18] sm:$0xff]
      %v2950 = vld [vmem:[#allocation4 + $0x20] sm:$0xff]
      %v2951 = vld [vmem:[#allocation4 + $0x28] sm:$0xff]
      %v2952 = vld [vmem:[#allocation4 + $0x30] sm:$0xff]
      %v2953 = vld [vmem:[#allocation4 + $0x38] sm:$0xff]
      %v2954 = vpack.c.bf16 %v2948, %v2946
      %v2955 = vpack.c.bf16 %v2949, %v2947
      %v2956 = vpack.c.bf16 %v2952, %v2950
      %v2957 = vpack.c.bf16 %v2953, %v2951
      %2958 = vst [vmem:[#allocation2 + $0x8] sm:$0xff] %v2954
      %2959 = vst [vmem:[#allocation2 + $0x10] sm:$0xff] %v2955
      %2960 = vst [vmem:[#allocation2 + $0x28] sm:$0xff] %v2956
      %2961 = vst [vmem:[#allocation2 + $0x30] sm:$0xff] %v2957
      %v2962 = vld [vmem:[#allocation2] sm:$0xff]
      %v2963 = vld [vmem:[#allocation2 + $0x8] sm:$0xff]
      %v2964 = vld [vmem:[#allocation2 + $0x10] sm:$0xff]
      %v2965 = vld [vmem:[#allocation2 + $0x20] sm:$0xff]
      %v2966 = vld [vmem:[#allocation2 + $0x28] sm:$0xff]
      %v2967 = vld [vmem:[#allocation2 + $0x30] sm:$0xff]
      %v2968 = vsel %vm379, %v2962, 0
      %v2969 = vsel %vm380, %v2963, 0
      %v2970 = vsel %vm381, %v2964, 0
      %v2971 = vsel %vm379, %v2965, 0
      %v2972 = vsel %vm380, %v2966, 0
      %v2973 = vsel %vm381, %v2967, 0
      %2980 = vrot.lane.b32.xlu0 %v2968, 17
      %v2981 = vpop.permute.xlu0 %2980
      %2982 = vrot.lane.b32.xlu0 %v2969, 17
      %v2983 = vpop.permute.xlu0 %2982
      %2984 = vrot.lane.b32.xlu0 %v2970, 17
      %v2985 = vpop.permute.xlu0 %2984
      %2986 = vrot.lane.b32.xlu0 %v2971, 17
      %v2987 = vpop.permute.xlu0 %2986
      %2988 = vrot.lane.b32.xlu0 %v2972, 17
      %v2989 = vpop.permute.xlu0 %2988
      %2990 = vrot.lane.b32.xlu0 %v2973, 17
      %v2991 = vpop.permute.xlu0 %2990
      %v2992 = vsel %vm406, %v2981, %v2983
      %v2993 = vsel %vm406, %v2983, %v2985
      %v2994 = vsel %vm406, %v2987, %v2989
      %v2995 = vsel %vm406, %v2989, %v2991
      %3000 = vst [vmem:[#allocation3] sm:$0xff] %v2992
      %3001 = vst [vmem:[#allocation3 + $0x8] sm:$0xff] %v2993
      %3002 = vst [vmem:[#allocation3 + $0x10] sm:$0xff] %v2994
      %3003 = vst [vmem:[#allocation3 + $0x18] sm:$0xff] %v2995
      %v3004 = vld [vmem:[#allocation2] sm:$0xff]
      %v3005 = vld [vmem:[#allocation2 + $0x8] sm:$0xff]
      %v3006 = vld [vmem:[#allocation2 + $0x10] sm:$0xff]
      %v3007 = vld [vmem:[#allocation2 + $0x20] sm:$0xff]
      %v3008 = vld [vmem:[#allocation2 + $0x28] sm:$0xff]
      %v3009 = vld [vmem:[#allocation2 + $0x30] sm:$0xff]
      %3016 = vrot.lane.b32.xlu0 %v3004, 16
      %v3017 = vpop.permute.xlu0 %3016
      %3018 = vrot.lane.b32.xlu0 %v3005, 16
      %v3019 = vpop.permute.xlu0 %3018
      %3020 = vrot.lane.b32.xlu0 %v3006, 16
      %v3021 = vpop.permute.xlu0 %3020
      %3022 = vrot.lane.b32.xlu0 %v3007, 16
      %v3023 = vpop.permute.xlu0 %3022
      %3024 = vrot.lane.b32.xlu0 %v3008, 16
      %v3025 = vpop.permute.xlu0 %3024
      %3026 = vrot.lane.b32.xlu0 %v3009, 16
      %v3027 = vpop.permute.xlu0 %3026
      %v3028 = vsel %vm443, %v3017, %v3019
      %v3029 = vsel %vm443, %v3019, %v3021
      %v3030 = vsel %vm443, %v3023, %v3025
      %v3031 = vsel %vm443, %v3025, %v3027
      %3036 = vst [vmem:[#allocation3 + $0x20] sm:$0xff] %v3028
      %3037 = vst [vmem:[#allocation3 + $0x28] sm:$0xff] %v3029
      %3038 = vst [vmem:[#allocation3 + $0x30] sm:$0xff] %v3030
      %3039 = vst [vmem:[#allocation3 + $0x38] sm:$0xff] %v3031
      %v3040 = vld [vmem:[#allocation2] sm:$0xff]
      %v3041 = vld [vmem:[#allocation2 + $0x8] sm:$0xff]
      %v3042 = vld [vmem:[#allocation2 + $0x10] sm:$0xff]
      %v3043 = vld [vmem:[#allocation2 + $0x20] sm:$0xff]
      %v3044 = vld [vmem:[#allocation2 + $0x28] sm:$0xff]
      %v3045 = vld [vmem:[#allocation2 + $0x30] sm:$0xff]
      %v3046 = vsel %vm482, %v3040, 0
      %v3047 = vsel %vm483, %v3041, 0
      %v3048 = vsel %vm484, %v3042, 0
      %v3049 = vsel %vm482, %v3043, 0
      %v3050 = vsel %vm483, %v3044, 0
      %v3051 = vsel %vm484, %v3045, 0
      %3058 = vrot.lane.b32.xlu0 %v3046, 15
      %v3059 = vpop.permute.xlu0 %3058
      %3060 = vrot.lane.b32.xlu0 %v3047, 15
      %v3061 = vpop.permute.xlu0 %3060
      %3062 = vrot.lane.b32.xlu0 %v3048, 15
      %v3063 = vpop.permute.xlu0 %3062
      %3064 = vrot.lane.b32.xlu0 %v3049, 15
      %v3065 = vpop.permute.xlu0 %3064
      %3066 = vrot.lane.b32.xlu0 %v3050, 15
      %v3067 = vpop.permute.xlu0 %3066
      %3068 = vrot.lane.b32.xlu0 %v3051, 15
      %v3069 = vpop.permute.xlu0 %3068
      %v3070 = vsel %vm509, %v3059, %v3061
      %v3071 = vsel %vm509, %v3061, %v3063
      %v3072 = vsel %vm509, %v3065, %v3067
      %v3073 = vsel %vm509, %v3067, %v3069
      %3078 = vst [vmem:[#allocation3 + $0x40] sm:$0xff] %v3070
      %3079 = vst [vmem:[#allocation3 + $0x48] sm:$0xff] %v3071
      %3080 = vst [vmem:[#allocation3 + $0x50] sm:$0xff] %v3072
      %3081 = vst [vmem:[#allocation3 + $0x58] sm:$0xff] %v3073
      %v3082 = vld [vmem:[#allocation2] sm:$0xff]
      %v3083 = vld [vmem:[#allocation2 + $0x8] sm:$0xff]
      %v3084 = vld [vmem:[#allocation2 + $0x10] sm:$0xff]
      %v3085 = vld [vmem:[#allocation2 + $0x20] sm:$0xff]
      %v3086 = vld [vmem:[#allocation2 + $0x28] sm:$0xff]
      %v3087 = vld [vmem:[#allocation2 + $0x30] sm:$0xff]
      %v3088 = vsel %vm534, %v3082, 0
      %v3089 = vsel %vm535, %v3083, 0
      %v3090 = vsel %vm536, %v3084, 0
      %v3091 = vsel %vm534, %v3085, 0
      %v3092 = vsel %vm535, %v3086, 0
      %v3093 = vsel %vm536, %v3087, 0
      %3100 = vrot.lane.b32.xlu0 %v3088, 1
      %v3101 = vpop.permute.xlu0 %3100
      %3102 = vrot.lane.b32.xlu0 %v3089, 1
      %v3103 = vpop.permute.xlu0 %3102
      %3104 = vrot.lane.b32.xlu0 %v3090, 1
      %v3105 = vpop.permute.xlu0 %3104
      %3106 = vrot.lane.b32.xlu0 %v3091, 1
      %v3107 = vpop.permute.xlu0 %3106
      %3108 = vrot.lane.b32.xlu0 %v3092, 1
      %v3109 = vpop.permute.xlu0 %3108
      %3110 = vrot.lane.b32.xlu0 %v3093, 1
      %v3111 = vpop.permute.xlu0 %3110
      %v3112 = vsel %vm561, %v3101, %v3103
      %v3113 = vsel %vm561, %v3103, %v3105
      %v3114 = vsel %vm561, %v3107, %v3109
      %v3115 = vsel %vm561, %v3109, %v3111
      %3120 = vst [vmem:[#allocation3 + $0x60] sm:$0xff] %v3112
      %3121 = vst [vmem:[#allocation3 + $0x68] sm:$0xff] %v3113
      %3122 = vst [vmem:[#allocation3 + $0x70] sm:$0xff] %v3114
      %3123 = vst [vmem:[#allocation3 + $0x78] sm:$0xff] %v3115
      %v3124 = vld [vmem:[#allocation2 + $0x8] sm:$0xff]
      %v3125 = vld [vmem:[#allocation2 + $0x10] sm:$0xff]
      %v3126 = vld [vmem:[#allocation2 + $0x28] sm:$0xff]
      %v3127 = vld [vmem:[#allocation2 + $0x30] sm:$0xff]
      %3128 = vst [vmem:[#allocation3 + $0x80] sm:$0xff] %v3124
      %3129 = vst [vmem:[#allocation3 + $0x88] sm:$0xff] %v3125
      %3130 = vst [vmem:[#allocation3 + $0x90] sm:$0xff] %v3126
      %3131 = vst [vmem:[#allocation3 + $0x98] sm:$0xff] %v3127
      %v3132 = vld [vmem:[#allocation2 + $0x8] sm:$0xff]
      %v3133 = vld [vmem:[#allocation2 + $0x10] sm:$0xff]
      %v3134 = vld [vmem:[#allocation2 + $0x18] sm:$0xff]
      %v3135 = vld [vmem:[#allocation2 + $0x28] sm:$0xff]
      %v3136 = vld [vmem:[#allocation2 + $0x30] sm:$0xff]
      %v3137 = vld [vmem:[#allocation2 + $0x38] sm:$0xff]
      %v3138 = vsel %vm593, %v3132, 0
      %v3139 = vsel %vm594, %v3133, 0
      %v3140 = vsel %vm595, %v3134, 0
      %v3141 = vsel %vm593, %v3135, 0
      %v3142 = vsel %vm594, %v3136, 0
      %v3143 = vsel %vm595, %v3137, 0
      %3150 = vrot.lane.b32.xlu0 %v3138, 127
      %v3151 = vpop.permute.xlu0 %3150
      %3152 = vrot.lane.b32.xlu0 %v3139, 127
      %v3153 = vpop.permute.xlu0 %3152
      %3154 = vrot.lane.b32.xlu0 %v3140, 127
      %v3155 = vpop.permute.xlu0 %3154
      %3156 = vrot.lane.b32.xlu0 %v3141, 127
      %v3157 = vpop.permute.xlu0 %3156
      %3158 = vrot.lane.b32.xlu0 %v3142, 127
      %v3159 = vpop.permute.xlu0 %3158
      %3160 = vrot.lane.b32.xlu0 %v3143, 127
      %v3161 = vpop.permute.xlu0 %3160
      %v3162 = vsel %vm532, %v3151, %v3153
      %v3163 = vsel %vm532, %v3153, %v3155
      %v3164 = vsel %vm532, %v3157, %v3159
      %v3165 = vsel %vm532, %v3159, %v3161
      %3170 = vst [vmem:[#allocation3 + $0xa0] sm:$0xff] %v3162
      %3171 = vst [vmem:[#allocation3 + $0xa8] sm:$0xff] %v3163
      %3172 = vst [vmem:[#allocation3 + $0xb0] sm:$0xff] %v3164
      %3173 = vst [vmem:[#allocation3 + $0xb8] sm:$0xff] %v3165
      %v3174 = vld [vmem:[#allocation2 + $0x8] sm:$0xff]
      %v3175 = vld [vmem:[#allocation2 + $0x10] sm:$0xff]
      %v3176 = vld [vmem:[#allocation2 + $0x18] sm:$0xff]
      %v3177 = vld [vmem:[#allocation2 + $0x28] sm:$0xff]
      %v3178 = vld [vmem:[#allocation2 + $0x30] sm:$0xff]
      %v3179 = vld [vmem:[#allocation2 + $0x38] sm:$0xff]
      %v3180 = vsel %vm643, %v3174, 0
      %v3181 = vsel %vm644, %v3175, 0
      %v3182 = vsel %vm645, %v3176, 0
      %v3183 = vsel %vm643, %v3177, 0
      %v3184 = vsel %vm644, %v3178, 0
      %v3185 = vsel %vm645, %v3179, 0
      %3192 = vrot.lane.b32.xlu0 %v3180, 113
      %v3193 = vpop.permute.xlu0 %3192
      %3194 = vrot.lane.b32.xlu0 %v3181, 113
      %v3195 = vpop.permute.xlu0 %3194
      %3196 = vrot.lane.b32.xlu0 %v3182, 113
      %v3197 = vpop.permute.xlu0 %3196
      %3198 = vrot.lane.b32.xlu0 %v3183, 113
      %v3199 = vpop.permute.xlu0 %3198
      %3200 = vrot.lane.b32.xlu0 %v3184, 113
      %v3201 = vpop.permute.xlu0 %3200
      %3202 = vrot.lane.b32.xlu0 %v3185, 113
      %v3203 = vpop.permute.xlu0 %3202
      %v3204 = vsel %vm480, %v3193, %v3195
      %v3205 = vsel %vm480, %v3195, %v3197
      %v3206 = vsel %vm480, %v3199, %v3201
      %v3207 = vsel %vm480, %v3201, %v3203
      %3212 = vst [vmem:[#allocation3 + $0xc0] sm:$0xff] %v3204
      %3213 = vst [vmem:[#allocation3 + $0xc8] sm:$0xff] %v3205
      %3214 = vst [vmem:[#allocation3 + $0xd0] sm:$0xff] %v3206
      %3215 = vst [vmem:[#allocation3 + $0xd8] sm:$0xff] %v3207
      %v3216 = vld [vmem:[#allocation2 + $0x8] sm:$0xff]
      %v3217 = vld [vmem:[#allocation2 + $0x10] sm:$0xff]
      %v3218 = vld [vmem:[#allocation2 + $0x18] sm:$0xff]
      %v3219 = vld [vmem:[#allocation2 + $0x28] sm:$0xff]
      %v3220 = vld [vmem:[#allocation2 + $0x30] sm:$0xff]
      %v3221 = vld [vmem:[#allocation2 + $0x38] sm:$0xff]
      %3228 = vrot.lane.b32.xlu0 %v3216, 112
      %v3229 = vpop.permute.xlu0 %3228
      %3230 = vrot.lane.b32.xlu0 %v3217, 112
      %v3231 = vpop.permute.xlu0 %3230
      %3232 = vrot.lane.b32.xlu0 %v3218, 112
      %v3233 = vpop.permute.xlu0 %3232
      %3234 = vrot.lane.b32.xlu0 %v3219, 112
      %v3235 = vpop.permute.xlu0 %3234
      %3236 = vrot.lane.b32.xlu0 %v3220, 112
      %v3237 = vpop.permute.xlu0 %3236
      %3238 = vrot.lane.b32.xlu0 %v3221, 112
      %v3239 = vpop.permute.xlu0 %3238
      %v3240 = vsel %vm706, %v3229, %v3231
      %v3241 = vsel %vm706, %v3231, %v3233
      %v3242 = vsel %vm706, %v3235, %v3237
      %v3243 = vsel %vm706, %v3237, %v3239
      %3248 = vst [vmem:[#allocation3 + $0xe0] sm:$0xff] %v3240
      %3249 = vst [vmem:[#allocation3 + $0xe8] sm:$0xff] %v3241
      %3250 = vst [vmem:[#allocation3 + $0xf0] sm:$0xff] %v3242
      %3251 = vst [vmem:[#allocation3 + $0xf8] sm:$0xff] %v3243
      %v3252 = vld [vmem:[#allocation2 + $0x8] sm:$0xff]
      %v3253 = vld [vmem:[#allocation2 + $0x10] sm:$0xff]
      %v3254 = vld [vmem:[#allocation2 + $0x18] sm:$0xff]
      %v3255 = vld [vmem:[#allocation2 + $0x28] sm:$0xff]
      %v3256 = vld [vmem:[#allocation2 + $0x30] sm:$0xff]
      %v3257 = vld [vmem:[#allocation2 + $0x38] sm:$0xff]
      %v3258 = vsel %vm730, %v3252, 0
      %v3259 = vsel %vm731, %v3253, 0
      %v3260 = vsel %vm732, %v3254, 0
      %v3261 = vsel %vm730, %v3255, 0
      %v3262 = vsel %vm731, %v3256, 0
      %v3263 = vsel %vm732, %v3257, 0
      %3270 = vrot.lane.b32.xlu0 %v3258, 111
      %v3271 = vpop.permute.xlu0 %3270
      %3272 = vrot.lane.b32.xlu0 %v3259, 111
      %v3273 = vpop.permute.xlu0 %3272
      %3274 = vrot.lane.b32.xlu0 %v3260, 111
      %v3275 = vpop.permute.xlu0 %3274
      %3276 = vrot.lane.b32.xlu0 %v3261, 111
      %v3277 = vpop.permute.xlu0 %3276
      %3278 = vrot.lane.b32.xlu0 %v3262, 111
      %v3279 = vpop.permute.xlu0 %3278
      %3280 = vrot.lane.b32.xlu0 %v3263, 111
      %v3281 = vpop.permute.xlu0 %3280
      %v3282 = vsel %vm377, %v3271, %v3273
      %v3283 = vsel %vm377, %v3273, %v3275
      %v3284 = vsel %vm377, %v3277, %v3279
      %v3285 = vsel %vm377, %v3279, %v3281
      %3290 = vst [vmem:[#allocation3 + $0x100] sm:$0xff] %v3282
      %3291 = vst [vmem:[#allocation3 + $0x108] sm:$0xff] %v3283
      %3292 = vst [vmem:[#allocation3 + $0x110] sm:$0xff] %v3284
      %3293 = vst [vmem:[#allocation3 + $0x118] sm:$0xff] %v3285
      %s3294 = scalar_lea.vmem %s1, 192
      %v3295 = vld [vmem:[%s3294] sm:$0xff]
      %v3296 = vld [vmem:[%s3294 + $0x8] sm:$0xf]
      %v3297 = vld [vmem:[%s3294 + $0xc] sm:$0xff]
      %v3298 = vld [vmem:[%s3294 + $0x14] sm:$0xf]
      %v3299 = vld [vmem:[%s3294 + $0x18] sm:$0xff]
      %v3300 = vld [vmem:[%s3294 + $0x20] sm:$0xf]
      %v3301 = vld [vmem:[%s3294 + $0x24] sm:$0xff]
      %v3302 = vld [vmem:[%s3294 + $0x2c] sm:$0xf]
      %v3303 = vld [vmem:[#allocation3] sm:$0xff]
      %v3304 = vld [vmem:[#allocation3 + $0x8] sm:$0xff]
      %v3305 = vld [vmem:[#allocation3 + $0x10] sm:$0xff]
      %v3306 = vld [vmem:[#allocation3 + $0x18] sm:$0xff]
      %v3307 = vld [vmem:[#allocation3 + $0x20] sm:$0xff]
      %v3308 = vld [vmem:[#allocation3 + $0x28] sm:$0xff]
      %v3309 = vld [vmem:[#allocation3 + $0x30] sm:$0xff]
      %v3310 = vld [vmem:[#allocation3 + $0x38] sm:$0xff]
      %v3311 = vld [vmem:[#allocation3 + $0x40] sm:$0xff]
      %v3312 = vld [vmem:[#allocation3 + $0x48] sm:$0xff]
      %v3313 = vld [vmem:[#allocation3 + $0x50] sm:$0xff]
      %v3314 = vld [vmem:[#allocation3 + $0x58] sm:$0xff]
      %v3315 = vld [vmem:[#allocation3 + $0x60] sm:$0xff]
      %v3316 = vld [vmem:[#allocation3 + $0x68] sm:$0xff]
      %v3317 = vld [vmem:[#allocation3 + $0x70] sm:$0xff]
      %v3318 = vld [vmem:[#allocation3 + $0x78] sm:$0xff]
      %v3319 = vld [vmem:[#allocation3 + $0x80] sm:$0xff]
      %v3320 = vld [vmem:[#allocation3 + $0x88] sm:$0xff]
      %v3321 = vld [vmem:[#allocation3 + $0x90] sm:$0xff]
      %v3322 = vld [vmem:[#allocation3 + $0x98] sm:$0xff]
      %v3323 = vld [vmem:[#allocation3 + $0xa0] sm:$0xff]
      %v3324 = vld [vmem:[#allocation3 + $0xa8] sm:$0xff]
      %v3325 = vld [vmem:[#allocation3 + $0xb0] sm:$0xff]
      %v3326 = vld [vmem:[#allocation3 + $0xb8] sm:$0xff]
      %v3327 = vld [vmem:[#allocation3 + $0xc0] sm:$0xff]
      %v3328 = vld [vmem:[#allocation3 + $0xc8] sm:$0xff]
      %v3329 = vld [vmem:[#allocation3 + $0xd0] sm:$0xff]
      %v3330 = vld [vmem:[#allocation3 + $0xd8] sm:$0xff]
      %v3331 = vld [vmem:[#allocation3 + $0xe0] sm:$0xff]
      %v3332 = vld [vmem:[#allocation3 + $0xe8] sm:$0xff]
      %v3333 = vld [vmem:[#allocation3 + $0xf0] sm:$0xff]
      %v3334 = vld [vmem:[#allocation3 + $0xf8] sm:$0xff]
      %v3335 = vld [vmem:[#allocation3 + $0x100] sm:$0xff]
      %v3336 = vld [vmem:[#allocation3 + $0x108] sm:$0xff]
      %v3337 = vld [vmem:[#allocation3 + $0x110] sm:$0xff]
      %v3338 = vld [vmem:[#allocation3 + $0x118] sm:$0xff]
      %s3339 = scalar_lea.vmem %s2, 128
      %v3340 = vld [vmem:[%s3339] sm:$0xff]
      %v3341 = vld [vmem:[%s3339 + $0x8] sm:$0xff]
      %v3342 = vld [vmem:[%s3339 + $0x10] sm:$0xff]
      %v3343 = vld [vmem:[%s3339 + $0x18] sm:$0xff]
      %3345 = vset.pattern.permute.xlu0 0
      %3346 = vperm.xlu0 %3345, %v3340
      %v3347 = vpop.permute.xlu0 %3346
      %3350 = vset.pattern.permute.xlu0 0
      %3351 = vperm.xlu0 %3350, %v3341
      %v3352 = vpop.permute.xlu0 %3351
      %3355 = vset.pattern.permute.xlu0 0
      %3356 = vperm.xlu0 %3355, %v3342
      %v3357 = vpop.permute.xlu0 %3356
      %3360 = vset.pattern.permute.xlu0 0
      %3361 = vperm.xlu0 %3360, %v3343
      %v3362 = vpop.permute.xlu0 %3361
      %v3372 = vunpack.c.l.b16 %v3295
      %v3373 = vunpack.c.h.b16 %v3295
      %v3374 = vunpack.c.l.b16 %v3296
      %v3375 = vunpack.c.l.b16 %v3297
      %v3376 = vunpack.c.h.b16 %v3297
      %v3377 = vunpack.c.l.b16 %v3298
      %v3378 = vunpack.c.l.b16 %v3299
      %v3379 = vunpack.c.h.b16 %v3299
      %v3380 = vunpack.c.l.b16 %v3300
      %v3381 = vunpack.c.l.b16 %v3301
      %v3382 = vunpack.c.h.b16 %v3301
      %v3383 = vunpack.c.l.b16 %v3302
      %v3384 = vpack.c.b16 %v3375, %v3372
      %v3385 = vpack.c.b16 %v3376, %v3373
      %v3386 = vpack.c.b16 %v3377, %v3374
      %v3387 = vpack.c.b16 %v3381, %v3378
      %v3388 = vpack.c.b16 %v3382, %v3379
      %v3389 = vpack.c.b16 %v3383, %v3380
      %v3395 = vsel %vm867, %v3386, 0
      %v3398 = vsel %vm867, %v3389, 0
      %3400 = vmatprep.subr.bf16.mxu0 %v3304
      %3401 = vmatpush1.bf16.msra.mxu0 %v3303
      %3402 = vmatprep.subr.bf16.mxu0 %v3306
      %3403 = vmatpush1.bf16.msra.mxu0 %v3305
      %3404 = vmatprep.subr.bf16.mxu0 %v3308
      %3405 = vmatpush1.bf16.msra.mxu0 %v3307
      %3406 = vmatprep.subr.bf16.mxu0 %v3310
      %3407 = vmatpush1.bf16.msra.mxu0 %v3309
      %3408 = vmatprep.subr.bf16.mxu0 %v3312
      %3409 = vmatpush1.bf16.msra.mxu0 %v3311
      %3410 = vmatprep.subr.bf16.mxu0 %v3314
      %3411 = vmatpush1.bf16.msra.mxu0 %v3313
      %3412 = vmatprep.subr.bf16.mxu0 %v3316
      %3413 = vmatpush1.bf16.msra.mxu0 %v3315
      %3414 = vmatprep.subr.bf16.mxu0 %v3318
      %3415 = vmatpush1.bf16.msra.mxu0 %v3317
      %3416 = vmatprep.subr.bf16.mxu0 %v3320
      %3417 = vmatpush1.bf16.msra.mxu0 %v3319
      %3418 = vmatprep.subr.bf16.mxu0 %v3322
      %3419 = vmatpush1.bf16.msra.mxu0 %v3321
      %3420 = vmatprep.subr.bf16.mxu0 %v3324
      %3421 = vmatpush1.bf16.msra.mxu0 %v3323
      %3422 = vmatprep.subr.bf16.mxu0 %v3326
      %3423 = vmatpush1.bf16.msra.mxu0 %v3325
      %3424 = vmatprep.subr.bf16.mxu0 %v3328
      %3425 = vmatpush1.bf16.msra.mxu0 %v3327
      %3426 = vmatprep.subr.bf16.mxu0 %v3330
      %3427 = vmatpush1.bf16.msra.mxu0 %v3329
      %3428 = vmatprep.subr.bf16.mxu0 %v3332
      %3429 = vmatpush1.bf16.msra.mxu0 %v3331
      %3430 = vmatprep.subr.bf16.mxu0 %v3334
      %3431 = vmatpush1.bf16.msra.mxu0 %v3333
      %3432 = vmatprep.mubr.bf16.mxu0 %v3385
      %3433 = vmatmul.mubr.bf16.gmra.mrb[0].mxu0 %v3384
      %v3434 = vpop.f32.mrb[0].mxu0
      %v3435 = vadd.f32 %v3347, %v3434
      %v3436 = vpop.f32.mrb[0].mxu0
      %v3437 = vadd.f32 %v3347, %v3436
      %v3438 = vpop.f32.mrb[0].mxu0
      %v3439 = vadd.f32 %v3352, %v3438
      %v3440 = vpop.f32.mrb[0].mxu0
      %v3441 = vadd.f32 %v3352, %v3440
      %3442 = vmatprep.mubr.bf16.mxu0 %v3388
      %3443 = vmatmul.mubr.bf16.gmra.mrb[0].mxu0 %v3387
      %v3444 = vpop.f32.mrb[0].mxu0
      %v3445 = vadd.f32 %v3357, %v3444
      %v3446 = vpop.f32.mrb[0].mxu0
      %v3447 = vadd.f32 %v3357, %v3446
      %v3448 = vpop.f32.mrb[0].mxu0
      %v3449 = vadd.f32 %v3362, %v3448
      %v3450 = vpop.f32.mrb[0].mxu0
      %v3451 = vadd.f32 %v3362, %v3450
      %3452 = vdwg.mxu0
      %3453 = vmatprep.subr.bf16.mxu0 %v3336
      %3454 = vmatpush1.bf16.msra.mxu0 %v3335
      %3455 = vmatprep.subr.bf16.mxu0 %v3338
      %3456 = vmatpush1.bf16.msra.mxu0 %v3337
      %3457 = vmatprep.subr.bf16.mxu0 0
      %3458 = vmatpush1.bf16.msra.mxu0 0
      %3459 = vmatprep.subr.bf16.mxu0 0
      %3460 = vmatpush1.bf16.msra.mxu0 0
      %3461 = vmatprep.subr.bf16.mxu0 0
      %3462 = vmatpush1.bf16.msra.mxu0 0
      %3463 = vmatprep.subr.bf16.mxu0 0
      %3464 = vmatpush1.bf16.msra.mxu0 0
      %3465 = vmatprep.subr.bf16.mxu0 0
      %3466 = vmatpush1.bf16.msra.mxu0 0
      %3467 = vmatprep.subr.bf16.mxu0 0
      %3468 = vmatpush1.bf16.msra.mxu0 0
      %3469 = vmatprep.subr.bf16.mxu0 0
      %3470 = vmatpush1.bf16.msra.mxu0 0
      %3471 = vmatprep.subr.bf16.mxu0 0
      %3472 = vmatpush1.bf16.msra.mxu0 0
      %3473 = vmatprep.subr.bf16.mxu0 0
      %3474 = vmatpush1.bf16.msra.mxu0 0
      %3475 = vmatprep.subr.bf16.mxu0 0
      %3476 = vmatpush1.bf16.msra.mxu0 0
      %3477 = vmatprep.subr.bf16.mxu0 0
      %3478 = vmatpush1.bf16.msra.mxu0 0
      %3479 = vmatprep.subr.bf16.mxu0 0
      %3480 = vmatpush1.bf16.msra.mxu0 0
      %3481 = vmatprep.subr.bf16.mxu0 0
      %3482 = vmatpush1.bf16.msra.mxu0 0
      %3483 = vmatprep.subr.bf16.mxu0 0
      %3484 = vmatpush1.bf16.msra.mxu0 0
      %3485 = vmatprep.mubr.bf16.mxu0 0
      %3486 = vmatmul.mubr.bf16.gmra.mrb[0].mxu0 %v3395
      %v3487 = vpop.f32.mrb[0].mxu0
      %v3488 = vadd.f32 %v3435, %v3487
      %v3489 = vpop.f32.mrb[0].mxu0
      %v3490 = vadd.f32 %v3437, %v3489
      %v3491 = vpop.f32.mrb[0].mxu0
      %v3492 = vadd.f32 %v3439, %v3491
      %v3493 = vpop.f32.mrb[0].mxu0
      %v3494 = vadd.f32 %v3441, %v3493
      %3495 = vmatprep.mubr.bf16.mxu0 0
      %3496 = vmatmul.mubr.bf16.gmra.mrb[0].mxu0 %v3398
      %v3497 = vpop.f32.mrb[0].mxu0
      %v3498 = vadd.f32 %v3445, %v3497
      %v3499 = vpop.f32.mrb[0].mxu0
      %v3500 = vadd.f32 %v3447, %v3499
      %v3501 = vpop.f32.mrb[0].mxu0
      %v3502 = vadd.f32 %v3449, %v3501
      %v3503 = vpop.f32.mrb[0].mxu0
      %v3504 = vadd.f32 %v3451, %v3503
      %3505 = vdwg.mxu0
      %v3506 = vld [vmem:[%s273] sm:$0xff]
      %v3507 = vld [vmem:[%s273 + $0x8] sm:$0xff]
      %v3508 = vld [vmem:[%s273 + $0x10] sm:$0xff]
      %v3509 = vld [vmem:[%s273 + $0x18] sm:$0xff]
      %v3510 = vld [vmem:[%s273 + $0x20] sm:$0xff]
      %v3511 = vld [vmem:[%s273 + $0x28] sm:$0xff]
      %v3512 = vld [vmem:[%s273 + $0x30] sm:$0xff]
      %v3513 = vld [vmem:[%s273 + $0x38] sm:$0xff]
      %v3514 = vadd.f32 %v3488, %v3506
      %v3515 = vadd.f32 %v3490, %v3507
      %v3516 = vadd.f32 %v3492, %v3508
      %v3517 = vadd.f32 %v3494, %v3509
      %v3518 = vadd.f32 %v3498, %v3510
      %v3519 = vadd.f32 %v3500, %v3511
      %v3520 = vadd.f32 %v3502, %v3512
      %v3521 = vadd.f32 %v3504, %v3513
      %3522 = vst [vmem:[%s278] sm:$0xff] %v3514
      %3523 = vst [vmem:[%s278 + $0x8] sm:$0xff] %v3515
      %3524 = vst [vmem:[%s278 + $0x10] sm:$0xff] %v3516
      %3525 = vst [vmem:[%s278 + $0x18] sm:$0xff] %v3517
      %3526 = vst [vmem:[%s278 + $0x20] sm:$0xff] %v3518
      %3527 = vst [vmem:[%s278 + $0x28] sm:$0xff] %v3519
      %3528 = vst [vmem:[%s278 + $0x30] sm:$0xff] %v3520
      %3529 = vst [vmem:[%s278 + $0x38] sm:$0xff] %v3521
      %p3530 = scmp.lt.s32.totalorder %s18, 1
      %s3531 = scalar_select %p3530, %s18, 1
      %s3532 = smul.addr %s3531, 8
      %s3533 = smul.addr %s3532, 8
      %s3534 = scalar_lea.vmem %s7, %s3533
      // Predicated region
      $region49: #{residual_group_forward.1} parent=47 // pred_check
        %p3535 = pneg %p188
      $region50: #{residual_group_forward.1} parent=47 // pred_check_branch
        %3537 = sbr.rel (%p3535) target = $region52
      $region51: #{residual_group_forward.1} parent=47 // pred_region
        _
      $region52: #{residual_group_forward.1} parent=47 // pred_fallthru
        _
    $region48: #{residual_group_forward.1} parent=5 // pred_fallthru
      _
    %p3538 = scmp.le.s32.totalorder 2, %s13
    // Predicated region
    $region53: #{residual_group_forward.1} parent=5 // pred_check
      %p3539 = pneg %p3538
    $region54: #{residual_group_forward.1} parent=5 // pred_check_branch
      %3541 = sbr.rel (%p3539) target = $region56
    $region55: #{residual_group_forward.1} parent=5 // pred_region
      %s3542 = ssub.s32 %s13, 2
      // Predicated region
      $region57: #{residual_group_forward.1} parent=55 // pred_check
        %p3543 = pneg %p194
      $region58: #{residual_group_forward.1} parent=55 // pred_check_branch
        %3545 = sbr.rel (%p3543) target = $region60
      $region59: #{residual_group_forward.1} parent=55 // pred_region
        %p3546 = scmp.lt.s32.totalorder %s19, 1
        %s3547 = scalar_select %p3546, %s19, 1
        %s3548 = smul.addr %s3547, 8
        %s3549 = smul.addr %s3548, 8
        %s3550 = scalar_lea.vmem %s7, %s3549
      $region60: #{residual_group_forward.1} parent=55 // pred_fallthru
        _
    $region56: #{residual_group_forward.1} parent=5 // pred_fallthru
      _
  $region6: #{residual_group_forward.1} parent=0 // loop_footer
    %s17 = sadd.s32 1, %s13
  $region7: #{residual_group_forward.1} parent=0 // loop_footer_branch
    %12 = sbr.rel target = $region3
  $region8: #{residual_group_forward.1} parent=0 // loop_exit
    _

</llo_original>
